<compile_context>
chip_gen: v7x
topology: tpu7x:2x2x1
jax: 0.10.0
libtpu: 0.0.40
codegen_flags: <defaults>
</compile_context>

<pallas_src>
import math
import functools

import jax
import jax.numpy as jnp
from jax import lax
from jax.experimental import pallas as pl
from jax.experimental.pallas import tpu as pltpu


def _pick_h_blk(heads, dim_head):
    """Heads per grid step: fold everything when small, else target ~256-wide MXU ops."""
    if heads * dim_head <= 512:
        return heads
    target = max(1, 256 // dim_head)
    for h in range(min(target, heads), 0, -1):
        if heads % h == 0:
            return h
    return 1


def _attention_kernel(x_ref, wqkv_ref, wo_ref, bo_ref, o_ref, *, h_blk, dim_head):
    # x_ref:    (1, N, dim) bf16       tokens for this batch element
    # wqkv_ref: (n_blk, dim, 3*hd) bf16  resident fused QKV weights (scale folded into Wq)
    # wo_ref:   (n_blk, hd, dim) bf16    resident output-projection weights
    # bo_ref:   (1, dim) f32             output bias
    # o_ref:    (1, N, dim) f32          output tile, resident across the head-block axis
    g = pl.program_id(1)
    _, N, dim = x_ref.shape
    hd = h_blk * dim_head

    x = x_ref[0]                         # (N, dim) bf16
    w_qkv = wqkv_ref[g]                  # (dim, 3*hd) bf16

    # Fused QKV projection: one wide MXU matmul for the whole head-block.
    qkv = jnp.dot(x, w_qkv, preferred_element_type=jnp.float32).astype(jnp.bfloat16)

    head_outs = []
    for h in range(h_blk):               # static unroll over heads in this block
        lo = h * dim_head
        q = qkv[:, lo:lo + dim_head]                       # (N, dh) (already scaled)
        k = qkv[:, hd + lo:hd + lo + dim_head]             # (N, dh)
        v = qkv[:, 2 * hd + lo:2 * hd + lo + dim_head]     # (N, dh)

        # scores = q @ k^T (contract over dh, no explicit transpose)
        scores = lax.dot_general(q, k, (((1,), (1,)), ((), ())),
                                 preferred_element_type=jnp.float32)   # (N, N) f32

        # Numerically-stable softmax in f32, approx reciprocal on the EUP.
        m = jnp.max(scores, axis=-1, keepdims=True)
        p = jnp.exp(scores - m)
        attn = p * pl.reciprocal(jnp.sum(p, axis=-1, keepdims=True), approx=True)

        head_outs.append(jnp.dot(attn.astype(jnp.bfloat16), v,
                                 preferred_element_type=jnp.float32))  # (N, dh)

    # Concatenate heads -> (N, hd) and do one deep output-projection matmul.
    head_out = jnp.concatenate(head_outs, axis=-1).astype(jnp.bfloat16)
    partial = jnp.dot(head_out, wo_ref[g], preferred_element_type=jnp.float32)  # (N, dim)

    # Output block is resident across the head-block axis: fold the bias in once,
    # then accumulate partial projections directly into o_ref (f32).
    @pl.when(g == 0)
    def _init():
        o_ref[0] = jnp.broadcast_to(bo_ref[...], (N, dim)).astype(o_ref.dtype)

    o_ref[0] += partial.astype(o_ref.dtype)


@functools.partial(jax.jit, static_argnames=("heads", "dim_head", "h_blk"))
def attention(x, w_qkv, w_out, b_out, *, heads=8, dim_head=64, h_blk=None):
    """x: (B, N, dim).  w_qkv: (dim, 3*heads*dim_head) so qkv = x @ w_qkv.
    w_out: (heads*dim_head, dim), b_out: (dim,).  Returns (B, N, dim) f32."""
    B, N, dim = x.shape
    inner = heads * dim_head
    assert w_qkv.shape == (dim, 3 * inner)
    assert w_out.shape == (inner, dim)

    if h_blk is None:
        h_blk = _pick_h_blk(heads, dim_head)
    assert heads % h_blk == 0
    n_blk = heads // h_blk
    hd = h_blk * dim_head
    scale = dim_head ** (-0.5)

    # Fold the softmax scale into Wq (exact, in f32), then regroup weights per head-block.
    wq = w_qkv[:, 0 * inner:1 * inner] * scale
    wk = w_qkv[:, 1 * inner:2 * inner]
    wv = w_qkv[:, 2 * inner:3 * inner]

    def group(w):  # (dim, inner) -> (n_blk, dim, hd); columns stay in (head, d) order
        return w.reshape(dim, n_blk, hd).transpose(1, 0, 2)

    wqkv_blk = jnp.concatenate([group(wq), group(wk), group(wv)], axis=-1)  # (n_blk, dim, 3*hd)
    wo_blk = w_out.reshape(n_blk, hd, dim)                                  # rows in (head, d) order
    bo = b_out.reshape(1, dim).astype(jnp.float32)

    # Cast activations and weights to bf16 ONCE (MXU inputs); accumulation stays f32.
    x_bf16 = x.astype(jnp.bfloat16)
    wqkv_bf16 = wqkv_blk.astype(jnp.bfloat16)
    wo_bf16 = wo_blk.astype(jnp.bfloat16)

    # Explicit VMEM budget: resident weights + double-buffered x/out blocks + work, x2 margin,
    # clamped to stay inside v7x's 64 MiB physical VMEM.
    weight_bytes = wqkv_bf16.size * 2 + wo_bf16.size * 2 + bo.size * 4
    block_bytes = 2 * (N * dim * 2) + 2 * (N * dim * 4)
    work_bytes = N * 3 * hd * (4 + 2) + 2 * N * N * 4 + N * hd * (4 + 2)
    vmem_limit = int(min(64 * 1024 * 1024,
                         max(32 * 1024 * 1024,
                             2 * (weight_bytes + block_bytes + work_bytes))))

    grid = (B, n_blk)

    out = pl.pallas_call(
        functools.partial(_attention_kernel, h_blk=h_blk, dim_head=dim_head),
        out_shape=jax.ShapeDtypeStruct((B, N, dim), jnp.float32),
        grid_spec=pltpu.PrefetchScalarGridSpec(
            num_scalar_prefetch=0,
            grid=grid,
            in_specs=[
                pl.BlockSpec((1, N, dim), lambda b, g: (b, 0, 0)),            # x (bf16)
                pl.BlockSpec((n_blk, dim, 3 * hd), lambda b, g: (0, 0, 0)),   # Wqkv (resident)
                pl.BlockSpec((n_blk, hd, dim), lambda b, g: (0, 0, 0)),       # Wout (resident)
                pl.BlockSpec((1, dim), lambda b, g: (0, 0)),                  # b_out
            ],
            out_specs=pl.BlockSpec((1, N, dim), lambda b, g: (b, 0, 0)),
        ),
        compiler_params=pltpu.CompilerParams(
            dimension_semantics=("parallel", "arbitrary"),
            vmem_limit_bytes=vmem_limit,
        ),
    )(x_bf16, wqkv_bf16, wo_bf16, bo)

    return out


def _torch_linear_init(key, fan_in, shape):
    # nn.Linear default init: U(-1/sqrt(fan_in), 1/sqrt(fan_in))
    bound = 1.0 / math.sqrt(fan_in)
    return jax.random.uniform(key, shape, jnp.float32, minval=-bound, maxval=bound)


if __name__ == "__main__":
    B, N, dim = 2, 64, 128
    heads, dim_head = 8, 64
    inner = heads * dim_head

    key = jax.random.PRNGKey(0)
    kx, kqkv, kwo, kbo = jax.random.split(key, 4)

    x = jax.random.normal(kx, (B, N, dim), jnp.float32)
    # Weights stored (in, out) so y = x @ W (== x @ torch_weight.T).
    w_qkv = _torch_linear_init(kqkv, dim, (dim, 3 * inner))
    w_out = _torch_linear_init(kwo, inner, (inner, dim))
    b_out = _torch_linear_init(kbo, inner, (dim,))

    out = attention(x, w_qkv, w_out, b_out, heads=heads, dim_head=dim_head)
    jax.block_until_ready(out)

    # Pure-JAX f32 reference mirroring the torch module.
    scale = dim_head ** (-0.5)
    qkv = x.reshape(-1, dim) @ w_qkv
    q_r, k_r, v_r = jnp.split(qkv, 3, axis=-1)

    def to_heads(t):
        return t.reshape(B, N, heads, dim_head).transpose(0, 2, 1, 3)

    q_r, k_r, v_r = to_heads(q_r), to_heads(k_r), to_heads(v_r)
    dots = jnp.einsum('bhid,bhjd->bhij', q_r, k_r) * scale
    attn_w = jax.nn.softmax(dots, axis=-1)
    o_r = jnp.einsum('bhij,bhjd->bhid', attn_w, v_r)
    o_r = o_r.transpose(0, 2, 1, 3).reshape(B, N, inner)
    ref = (o_r @ w_out + b_out).reshape(B, N, dim)

    err = jnp.max(jnp.abs(out - ref))
    assert jnp.allclose(out, ref, atol=3e-2, rtol=3e-2), f"mismatch vs reference, max|err|={err}"

    print("KERNEL_OK")
</pallas_src>

<mosaic_0001>
module attributes {stable_mosaic.version = 11 : i64} {
  func.func @_attention_kernel(%arg0: i32, %arg1: i32, %arg2: memref<1x64x128xbf16, #tpu.memory_space<vmem>>, %arg3: memref<1x128x1536xbf16, #tpu.memory_space<vmem>>, %arg4: memref<1x512x128xbf16, #tpu.memory_space<vmem>>, %arg5: memref<1x128xf32, #tpu.memory_space<vmem>>, %arg6: memref<1x64x128xf32, #tpu.memory_space<vmem>>) attributes {dimension_semantics = [#tpu.dimension_semantics<parallel>, #tpu.dimension_semantics<arbitrary>], iteration_bounds = array<i64: 2, 1>, scalar_prefetch = 0 : i64, scratch_operands = 0 : i64, tpu.core_type = #tpu.core_type<tc>, window_params = [{transform_indices = @transform_0, window_bounds = array<i64: 1, 64, 128>}, {pipeline_mode = #tpu.pipeline_mode<synchronous>, transform_indices = @transform_1, window_bounds = array<i64: 1, 128, 1536>}, {pipeline_mode = #tpu.pipeline_mode<synchronous>, transform_indices = @transform_2, window_bounds = array<i64: 1, 512, 128>}, {pipeline_mode = #tpu.pipeline_mode<synchronous>, transform_indices = @transform_3, window_bounds = array<i64: 1, 128>}, {transform_indices = @transform_4, window_bounds = array<i64: 1, 64, 128>}]} {
    %c0 = arith.constant 0 : index
    %c0_0 = arith.constant 0 : index
    %c0_1 = arith.constant 0 : index
    %0 = vector.load %arg2[%c0, %c0_0, %c0_1] : memref<1x64x128xbf16, #tpu.memory_space<vmem>>, vector<1x64x128xbf16>
    %1 = vector.shape_cast %0 : vector<1x64x128xbf16> to vector<64x128xbf16>
    %2 = arith.index_cast %arg1 : i32 to index
    %c0_2 = arith.constant 0 : index
    %c0_3 = arith.constant 0 : index
    %3 = vector.load %arg3[%2, %c0_2, %c0_3] : memref<1x128x1536xbf16, #tpu.memory_space<vmem>>, vector<1x128x1536xbf16>
    %4 = vector.shape_cast %3 : vector<1x128x1536xbf16> to vector<128x1536xbf16>
    %cst = arith.constant dense<0.000000e+00> : vector<64x1536xf32>
    %5 = tpu.matmul %1, %4, %cst {dimension_numbers = #tpu.dot_dimension_numbers<[1], [0], [0], [1], [0, 0, 1, 1], [], []>} : vector<64x128xbf16>, vector<128x1536xbf16>, vector<64x1536xf32> -> vector<64x1536xf32>
    %6 = arith.truncf %5 : vector<64x1536xf32> to vector<64x1536xbf16>
    %7 = vector.extract_strided_slice %6 {offsets = [0, 0], sizes = [64, 64], strides = [1, 1]} : vector<64x1536xbf16> to vector<64x64xbf16>
    %8 = vector.extract_strided_slice %6 {offsets = [0, 512], sizes = [64, 64], strides = [1, 1]} : vector<64x1536xbf16> to vector<64x64xbf16>
    %9 = vector.extract_strided_slice %6 {offsets = [0, 1024], sizes = [64, 64], strides = [1, 1]} : vector<64x1536xbf16> to vector<64x64xbf16>
    %cst_4 = arith.constant dense<0.000000e+00> : vector<64x64xf32>
    %10 = tpu.matmul %7, %8, %cst_4 {dimension_numbers = #tpu.dot_dimension_numbers<[1], [1], [0], [0], [0, 0, 1, 0], [], []>} : vector<64x64xbf16>, vector<64x64xbf16>, vector<64x64xf32> -> vector<64x64xf32>
    %cst_5 = arith.constant dense<0xFF800000> : vector<64xf32>
    %11 = vector.multi_reduction <maximumf>, %10, %cst_5 [1] : vector<64x64xf32> to vector<64xf32>
    %12 = vector.shape_cast %11 : vector<64xf32> to vector<64x1xf32>
    %13 = vector.broadcast %12 : vector<64x1xf32> to vector<64x64xf32>
    %14 = arith.subf %10, %13 : vector<64x64xf32>
    %15 = math.exp %14 : vector<64x64xf32>
    %cst_6 = arith.constant dense<0.000000e+00> : vector<64xf32>
    %16 = vector.multi_reduction <add>, %15, %cst_6 [1] : vector<64x64xf32> to vector<64xf32>
    %17 = vector.shape_cast %16 : vector<64xf32> to vector<64x1xf32>
    %18 = tpu.reciprocal %17 {approx = true} : vector<64x1xf32> -> vector<64x1xf32>
    %19 = vector.broadcast %18 : vector<64x1xf32> to vector<64x64xf32>
    %20 = arith.mulf %15, %19 : vector<64x64xf32>
    %21 = arith.truncf %20 : vector<64x64xf32> to vector<64x64xbf16>
    %cst_7 = arith.constant dense<0.000000e+00> : vector<64x64xf32>
    %22 = tpu.matmul %21, %9, %cst_7 {dimension_numbers = #tpu.dot_dimension_numbers<[1], [0], [0], [1], [0, 0, 1, 1], [], []>} : vector<64x64xbf16>, vector<64x64xbf16>, vector<64x64xf32> -> vector<64x64xf32>
    %23 = vector.extract_strided_slice %6 {offsets = [0, 64], sizes = [64, 64], strides = [1, 1]} : vector<64x1536xbf16> to vector<64x64xbf16>
    %24 = vector.extract_strided_slice %6 {offsets = [0, 576], sizes = [64, 64], strides = [1, 1]} : vector<64x1536xbf16> to vector<64x64xbf16>
    %25 = vector.extract_strided_slice %6 {offsets = [0, 1088], sizes = [64, 64], strides = [1, 1]} : vector<64x1536xbf16> to vector<64x64xbf16>
    %cst_8 = arith.constant dense<0.000000e+00> : vector<64x64xf32>
    %26 = tpu.matmul %23, %24, %cst_8 {dimension_numbers = #tpu.dot_dimension_numbers<[1], [1], [0], [0], [0, 0, 1, 0], [], []>} : vector<64x64xbf16>, vector<64x64xbf16>, vector<64x64xf32> -> vector<64x64xf32>
    %cst_9 = arith.constant dense<0xFF800000> : vector<64xf32>
    %27 = vector.multi_reduction <maximumf>, %26, %cst_9 [1] : vector<64x64xf32> to vector<64xf32>
    %28 = vector.shape_cast %27 : vector<64xf32> to vector<64x1xf32>
    %29 = vector.broadcast %28 : vector<64x1xf32> to vector<64x64xf32>
    %30 = arith.subf %26, %29 : vector<64x64xf32>
    %31 = math.exp %30 : vector<64x64xf32>
    %cst_10 = arith.constant dense<0.000000e+00> : vector<64xf32>
    %32 = vector.multi_reduction <add>, %31, %cst_10 [1] : vector<64x64xf32> to vector<64xf32>
    %33 = vector.shape_cast %32 : vector<64xf32> to vector<64x1xf32>
    %34 = tpu.reciprocal %33 {approx = true} : vector<64x1xf32> -> vector<64x1xf32>
    %35 = vector.broadcast %34 : vector<64x1xf32> to vector<64x64xf32>
    %36 = arith.mulf %31, %35 : vector<64x64xf32>
    %37 = arith.truncf %36 : vector<64x64xf32> to vector<64x64xbf16>
    %cst_11 = arith.constant dense<0.000000e+00> : vector<64x64xf32>
    %38 = tpu.matmul %37, %25, %cst_11 {dimension_numbers = #tpu.dot_dimension_numbers<[1], [0], [0], [1], [0, 0, 1, 1], [], []>} : vector<64x64xbf16>, vector<64x64xbf16>, vector<64x64xf32> -> vector<64x64xf32>
    %39 = vector.extract_strided_slice %6 {offsets = [0, 128], sizes = [64, 64], strides = [1, 1]} : vector<64x1536xbf16> to vector<64x64xbf16>
    %40 = vector.extract_strided_slice %6 {offsets = [0, 640], sizes = [64, 64], strides = [1, 1]} : vector<64x1536xbf16> to vector<64x64xbf16>
    %41 = vector.extract_strided_slice %6 {offsets = [0, 1152], sizes = [64, 64], strides = [1, 1]} : vector<64x1536xbf16> to vector<64x64xbf16>
    %cst_12 = arith.constant dense<0.000000e+00> : vector<64x64xf32>
    %42 = tpu.matmul %39, %40, %cst_12 {dimension_numbers = #tpu.dot_dimension_numbers<[1], [1], [0], [0], [0, 0, 1, 0], [], []>} : vector<64x64xbf16>, vector<64x64xbf16>, vector<64x64xf32> -> vector<64x64xf32>
    %cst_13 = arith.constant dense<0xFF800000> : vector<64xf32>
    %43 = vector.multi_reduction <maximumf>, %42, %cst_13 [1] : vector<64x64xf32> to vector<64xf32>
    %44 = vector.shape_cast %43 : vector<64xf32> to vector<64x1xf32>
    %45 = vector.broadcast %44 : vector<64x1xf32> to vector<64x64xf32>
    %46 = arith.subf %42, %45 : vector<64x64xf32>
    %47 = math.exp %46 : vector<64x64xf32>
    %cst_14 = arith.constant dense<0.000000e+00> : vector<64xf32>
    %48 = vector.multi_reduction <add>, %47, %cst_14 [1] : vector<64x64xf32> to vector<64xf32>
    %49 = vector.shape_cast %48 : vector<64xf32> to vector<64x1xf32>
    %50 = tpu.reciprocal %49 {approx = true} : vector<64x1xf32> -> vector<64x1xf32>
    %51 = vector.broadcast %50 : vector<64x1xf32> to vector<64x64xf32>
    %52 = arith.mulf %47, %51 : vector<64x64xf32>
    %53 = arith.truncf %52 : vector<64x64xf32> to vector<64x64xbf16>
    %cst_15 = arith.constant dense<0.000000e+00> : vector<64x64xf32>
    %54 = tpu.matmul %53, %41, %cst_15 {dimension_numbers = #tpu.dot_dimension_numbers<[1], [0], [0], [1], [0, 0, 1, 1], [], []>} : vector<64x64xbf16>, vector<64x64xbf16>, vector<64x64xf32> -> vector<64x64xf32>
    %55 = vector.extract_strided_slice %6 {offsets = [0, 192], sizes = [64, 64], strides = [1, 1]} : vector<64x1536xbf16> to vector<64x64xbf16>
    %56 = vector.extract_strided_slice %6 {offsets = [0, 704], sizes = [64, 64], strides = [1, 1]} : vector<64x1536xbf16> to vector<64x64xbf16>
    %57 = vector.extract_strided_slice %6 {offsets = [0, 1216], sizes = [64, 64], strides = [1, 1]} : vector<64x1536xbf16> to vector<64x64xbf16>
    %cst_16 = arith.constant dense<0.000000e+00> : vector<64x64xf32>
    %58 = tpu.matmul %55, %56, %cst_16 {dimension_numbers = #tpu.dot_dimension_numbers<[1], [1], [0], [0], [0, 0, 1, 0], [], []>} : vector<64x64xbf16>, vector<64x64xbf16>, vector<64x64xf32> -> vector<64x64xf32>
    %cst_17 = arith.constant dense<0xFF800000> : vector<64xf32>
    %59 = vector.multi_reduction <maximumf>, %58, %cst_17 [1] : vector<64x64xf32> to vector<64xf32>
    %60 = vector.shape_cast %59 : vector<64xf32> to vector<64x1xf32>
    %61 = vector.broadcast %60 : vector<64x1xf32> to vector<64x64xf32>
    %62 = arith.subf %58, %61 : vector<64x64xf32>
    %63 = math.exp %62 : vector<64x64xf32>
    %cst_18 = arith.constant dense<0.000000e+00> : vector<64xf32>
    %64 = vector.multi_reduction <add>, %63, %cst_18 [1] : vector<64x64xf32> to vector<64xf32>
    %65 = vector.shape_cast %64 : vector<64xf32> to vector<64x1xf32>
    %66 = tpu.reciprocal %65 {approx = true} : vector<64x1xf32> -> vector<64x1xf32>
    %67 = vector.broadcast %66 : vector<64x1xf32> to vector<64x64xf32>
    %68 = arith.mulf %63, %67 : vector<64x64xf32>
    %69 = arith.truncf %68 : vector<64x64xf32> to vector<64x64xbf16>
    %cst_19 = arith.constant dense<0.000000e+00> : vector<64x64xf32>
    %70 = tpu.matmul %69, %57, %cst_19 {dimension_numbers = #tpu.dot_dimension_numbers<[1], [0], [0], [1], [0, 0, 1, 1], [], []>} : vector<64x64xbf16>, vector<64x64xbf16>, vector<64x64xf32> -> vector<64x64xf32>
    %71 = vector.extract_strided_slice %6 {offsets = [0, 256], sizes = [64, 64], strides = [1, 1]} : vector<64x1536xbf16> to vector<64x64xbf16>
    %72 = vector.extract_strided_slice %6 {offsets = [0, 768], sizes = [64, 64], strides = [1, 1]} : vector<64x1536xbf16> to vector<64x64xbf16>
    %73 = vector.extract_strided_slice %6 {offsets = [0, 1280], sizes = [64, 64], strides = [1, 1]} : vector<64x1536xbf16> to vector<64x64xbf16>
    %cst_20 = arith.constant dense<0.000000e+00> : vector<64x64xf32>
    %74 = tpu.matmul %71, %72, %cst_20 {dimension_numbers = #tpu.dot_dimension_numbers<[1], [1], [0], [0], [0, 0, 1, 0], [], []>} : vector<64x64xbf16>, vector<64x64xbf16>, vector<64x64xf32> -> vector<64x64xf32>
    %cst_21 = arith.constant dense<0xFF800000> : vector<64xf32>
    %75 = vector.multi_reduction <maximumf>, %74, %cst_21 [1] : vector<64x64xf32> to vector<64xf32>
    %76 = vector.shape_cast %75 : vector<64xf32> to vector<64x1xf32>
    %77 = vector.broadcast %76 : vector<64x1xf32> to vector<64x64xf32>
    %78 = arith.subf %74, %77 : vector<64x64xf32>
    %79 = math.exp %78 : vector<64x64xf32>
    %cst_22 = arith.constant dense<0.000000e+00> : vector<64xf32>
    %80 = vector.multi_reduction <add>, %79, %cst_22 [1] : vector<64x64xf32> to vector<64xf32>
    %81 = vector.shape_cast %80 : vector<64xf32> to vector<64x1xf32>
    %82 = tpu.reciprocal %81 {approx = true} : vector<64x1xf32> -> vector<64x1xf32>
    %83 = vector.broadcast %82 : vector<64x1xf32> to vector<64x64xf32>
    %84 = arith.mulf %79, %83 : vector<64x64xf32>
    %85 = arith.truncf %84 : vector<64x64xf32> to vector<64x64xbf16>
    %cst_23 = arith.constant dense<0.000000e+00> : vector<64x64xf32>
    %86 = tpu.matmul %85, %73, %cst_23 {dimension_numbers = #tpu.dot_dimension_numbers<[1], [0], [0], [1], [0, 0, 1, 1], [], []>} : vector<64x64xbf16>, vector<64x64xbf16>, vector<64x64xf32> -> vector<64x64xf32>
    %87 = vector.extract_strided_slice %6 {offsets = [0, 320], sizes = [64, 64], strides = [1, 1]} : vector<64x1536xbf16> to vector<64x64xbf16>
    %88 = vector.extract_strided_slice %6 {offsets = [0, 832], sizes = [64, 64], strides = [1, 1]} : vector<64x1536xbf16> to vector<64x64xbf16>
    %89 = vector.extract_strided_slice %6 {offsets = [0, 1344], sizes = [64, 64], strides = [1, 1]} : vector<64x1536xbf16> to vector<64x64xbf16>
    %cst_24 = arith.constant dense<0.000000e+00> : vector<64x64xf32>
    %90 = tpu.matmul %87, %88, %cst_24 {dimension_numbers = #tpu.dot_dimension_numbers<[1], [1], [0], [0], [0, 0, 1, 0], [], []>} : vector<64x64xbf16>, vector<64x64xbf16>, vector<64x64xf32> -> vector<64x64xf32>
    %cst_25 = arith.constant dense<0xFF800000> : vector<64xf32>
    %91 = vector.multi_reduction <maximumf>, %90, %cst_25 [1] : vector<64x64xf32> to vector<64xf32>
    %92 = vector.shape_cast %91 : vector<64xf32> to vector<64x1xf32>
    %93 = vector.broadcast %92 : vector<64x1xf32> to vector<64x64xf32>
    %94 = arith.subf %90, %93 : vector<64x64xf32>
    %95 = math.exp %94 : vector<64x64xf32>
    %cst_26 = arith.constant dense<0.000000e+00> : vector<64xf32>
    %96 = vector.multi_reduction <add>, %95, %cst_26 [1] : vector<64x64xf32> to vector<64xf32>
    %97 = vector.shape_cast %96 : vector<64xf32> to vector<64x1xf32>
    %98 = tpu.reciprocal %97 {approx = true} : vector<64x1xf32> -> vector<64x1xf32>
    %99 = vector.broadcast %98 : vector<64x1xf32> to vector<64x64xf32>
    %100 = arith.mulf %95, %99 : vector<64x64xf32>
    %101 = arith.truncf %100 : vector<64x64xf32> to vector<64x64xbf16>
    %cst_27 = arith.constant dense<0.000000e+00> : vector<64x64xf32>
    %102 = tpu.matmul %101, %89, %cst_27 {dimension_numbers = #tpu.dot_dimension_numbers<[1], [0], [0], [1], [0, 0, 1, 1], [], []>} : vector<64x64xbf16>, vector<64x64xbf16>, vector<64x64xf32> -> vector<64x64xf32>
    %103 = vector.extract_strided_slice %6 {offsets = [0, 384], sizes = [64, 64], strides = [1, 1]} : vector<64x1536xbf16> to vector<64x64xbf16>
    %104 = vector.extract_strided_slice %6 {offsets = [0, 896], sizes = [64, 64], strides = [1, 1]} : vector<64x1536xbf16> to vector<64x64xbf16>
    %105 = vector.extract_strided_slice %6 {offsets = [0, 1408], sizes = [64, 64], strides = [1, 1]} : vector<64x1536xbf16> to vector<64x64xbf16>
    %cst_28 = arith.constant dense<0.000000e+00> : vector<64x64xf32>
    %106 = tpu.matmul %103, %104, %cst_28 {dimension_numbers = #tpu.dot_dimension_numbers<[1], [1], [0], [0], [0, 0, 1, 0], [], []>} : vector<64x64xbf16>, vector<64x64xbf16>, vector<64x64xf32> -> vector<64x64xf32>
    %cst_29 = arith.constant dense<0xFF800000> : vector<64xf32>
    %107 = vector.multi_reduction <maximumf>, %106, %cst_29 [1] : vector<64x64xf32> to vector<64xf32>
    %108 = vector.shape_cast %107 : vector<64xf32> to vector<64x1xf32>
    %109 = vector.broadcast %108 : vector<64x1xf32> to vector<64x64xf32>
    %110 = arith.subf %106, %109 : vector<64x64xf32>
    %111 = math.exp %110 : vector<64x64xf32>
    %cst_30 = arith.constant dense<0.000000e+00> : vector<64xf32>
    %112 = vector.multi_reduction <add>, %111, %cst_30 [1] : vector<64x64xf32> to vector<64xf32>
    %113 = vector.shape_cast %112 : vector<64xf32> to vector<64x1xf32>
    %114 = tpu.reciprocal %113 {approx = true} : vector<64x1xf32> -> vector<64x1xf32>
    %115 = vector.broadcast %114 : vector<64x1xf32> to vector<64x64xf32>
    %116 = arith.mulf %111, %115 : vector<64x64xf32>
    %117 = arith.truncf %116 : vector<64x64xf32> to vector<64x64xbf16>
    %cst_31 = arith.constant dense<0.000000e+00> : vector<64x64xf32>
    %118 = tpu.matmul %117, %105, %cst_31 {dimension_numbers = #tpu.dot_dimension_numbers<[1], [0], [0], [1], [0, 0, 1, 1], [], []>} : vector<64x64xbf16>, vector<64x64xbf16>, vector<64x64xf32> -> vector<64x64xf32>
    %119 = vector.extract_strided_slice %6 {offsets = [0, 448], sizes = [64, 64], strides = [1, 1]} : vector<64x1536xbf16> to vector<64x64xbf16>
    %120 = vector.extract_strided_slice %6 {offsets = [0, 960], sizes = [64, 64], strides = [1, 1]} : vector<64x1536xbf16> to vector<64x64xbf16>
    %121 = vector.extract_strided_slice %6 {offsets = [0, 1472], sizes = [64, 64], strides = [1, 1]} : vector<64x1536xbf16> to vector<64x64xbf16>
    %cst_32 = arith.constant dense<0.000000e+00> : vector<64x64xf32>
    %122 = tpu.matmul %119, %120, %cst_32 {dimension_numbers = #tpu.dot_dimension_numbers<[1], [1], [0], [0], [0, 0, 1, 0], [], []>} : vector<64x64xbf16>, vector<64x64xbf16>, vector<64x64xf32> -> vector<64x64xf32>
    %cst_33 = arith.constant dense<0xFF800000> : vector<64xf32>
    %123 = vector.multi_reduction <maximumf>, %122, %cst_33 [1] : vector<64x64xf32> to vector<64xf32>
    %124 = vector.shape_cast %123 : vector<64xf32> to vector<64x1xf32>
    %125 = vector.broadcast %124 : vector<64x1xf32> to vector<64x64xf32>
    %126 = arith.subf %122, %125 : vector<64x64xf32>
    %127 = math.exp %126 : vector<64x64xf32>
    %cst_34 = arith.constant dense<0.000000e+00> : vector<64xf32>
    %128 = vector.multi_reduction <add>, %127, %cst_34 [1] : vector<64x64xf32> to vector<64xf32>
    %129 = vector.shape_cast %128 : vector<64xf32> to vector<64x1xf32>
    %130 = tpu.reciprocal %129 {approx = true} : vector<64x1xf32> -> vector<64x1xf32>
    %131 = vector.broadcast %130 : vector<64x1xf32> to vector<64x64xf32>
    %132 = arith.mulf %127, %131 : vector<64x64xf32>
    %133 = arith.truncf %132 : vector<64x64xf32> to vector<64x64xbf16>
    %cst_35 = arith.constant dense<0.000000e+00> : vector<64x64xf32>
    %134 = tpu.matmul %133, %121, %cst_35 {dimension_numbers = #tpu.dot_dimension_numbers<[1], [0], [0], [1], [0, 0, 1, 1], [], []>} : vector<64x64xbf16>, vector<64x64xbf16>, vector<64x64xf32> -> vector<64x64xf32>
    %135 = tpu.concatenate %22, %38, %54, %70, %86, %102, %118, %134 in 1 : vector<64x64xf32>, vector<64x64xf32>, vector<64x64xf32>, vector<64x64xf32>, vector<64x64xf32>, vector<64x64xf32>, vector<64x64xf32>, vector<64x64xf32> -> vector<64x512xf32>
    %136 = arith.truncf %135 : vector<64x512xf32> to vector<64x512xbf16>
    %137 = arith.index_cast %arg1 : i32 to index
    %c0_36 = arith.constant 0 : index
    %c0_37 = arith.constant 0 : index
    %138 = vector.load %arg4[%137, %c0_36, %c0_37] : memref<1x512x128xbf16, #tpu.memory_space<vmem>>, vector<1x512x128xbf16>
    %139 = vector.shape_cast %138 : vector<1x512x128xbf16> to vector<512x128xbf16>
    %cst_38 = arith.constant dense<0.000000e+00> : vector<64x128xf32>
    %140 = tpu.matmul %136, %139, %cst_38 {dimension_numbers = #tpu.dot_dimension_numbers<[1], [0], [0], [1], [0, 0, 1, 1], [], []>} : vector<64x512xbf16>, vector<512x128xbf16>, vector<64x128xf32> -> vector<64x128xf32>
    %c0_i32 = arith.constant 0 : i32
    %141 = arith.cmpi eq, %arg1, %c0_i32 : i32
    %142 = arith.extui %141 : i1 to i32
    %c0_i32_39 = arith.constant 0 : i32
    %143 = arith.cmpi ne, %142, %c0_i32_39 : i32
    scf.if %143 {
      %c0_46 = arith.constant 0 : index
      %c0_47 = arith.constant 0 : index
      %150 = vector.load %arg5[%c0_46, %c0_47] : memref<1x128xf32, #tpu.memory_space<vmem>>, vector<1x128xf32>
      %151 = vector.shape_cast %150 : vector<1x128xf32> to vector<1x128xf32>
      %152 = vector.broadcast %151 : vector<1x128xf32> to vector<64x128xf32>
      %c0_48 = arith.constant 0 : index
      %c0_49 = arith.constant 0 : index
      %c0_50 = arith.constant 0 : index
      %153 = vector.load %arg6[%c0_48, %c0_49, %c0_50] : memref<1x64x128xf32, #tpu.memory_space<vmem>>, vector<1x64x128xf32>
      %154 = vector.shape_cast %153 : vector<1x64x128xf32> to vector<64x128xf32>
      %155 = vector.shape_cast %152 : vector<64x128xf32> to vector<1x64x128xf32>
      tpu.vector_store %arg6[%c0_48, %c0_49, %c0_50], %155 {strides = array<i32>} : memref<1x64x128xf32, #tpu.memory_space<vmem>>, vector<1x64x128xf32>,
    } else {
    }
    %c0_40 = arith.constant 0 : index
    %c0_41 = arith.constant 0 : index
    %c0_42 = arith.constant 0 : index
    %144 = vector.load %arg6[%c0_40, %c0_41, %c0_42] : memref<1x64x128xf32, #tpu.memory_space<vmem>>, vector<1x64x128xf32>
    %145 = vector.shape_cast %144 : vector<1x64x128xf32> to vector<64x128xf32>
    %146 = arith.addf %145, %140 : vector<64x128xf32>
    %c0_43 = arith.constant 0 : index
    %c0_44 = arith.constant 0 : index
    %c0_45 = arith.constant 0 : index
    %147 = vector.load %arg6[%c0_43, %c0_44, %c0_45] : memref<1x64x128xf32, #tpu.memory_space<vmem>>, vector<1x64x128xf32>
    %148 = vector.shape_cast %147 : vector<1x64x128xf32> to vector<64x128xf32>
    %149 = vector.shape_cast %146 : vector<64x128xf32> to vector<1x64x128xf32>
    tpu.vector_store %arg6[%c0_43, %c0_44, %c0_45], %149 {strides = array<i32>} : memref<1x64x128xf32, #tpu.memory_space<vmem>>, vector<1x64x128xf32>,
    return
  }
  func.func @transform_0(%arg0: i32, %arg1: i32) -> (i32, i32, i32) {
    %c0_i32 = arith.constant 0 : i32
    %c0_i32_0 = arith.constant 0 : i32
    %c0_i32_1 = arith.constant 0 : i32
    return %arg0, %c0_i32, %c0_i32_0 : i32, i32, i32
  }
  func.func @transform_1(%arg0: i32, %arg1: i32) -> (i32, i32, i32) {
    %c0_i32 = arith.constant 0 : i32
    %c0_i32_0 = arith.constant 0 : i32
    %c0_i32_1 = arith.constant 0 : i32
    %c0_i32_2 = arith.constant 0 : i32
    return %c0_i32, %c0_i32_0, %c0_i32_1 : i32, i32, i32
  }
  func.func @transform_2(%arg0: i32, %arg1: i32) -> (i32, i32, i32) {
    %c0_i32 = arith.constant 0 : i32
    %c0_i32_0 = arith.constant 0 : i32
    %c0_i32_1 = arith.constant 0 : i32
    %c0_i32_2 = arith.constant 0 : i32
    return %c0_i32, %c0_i32_0, %c0_i32_1 : i32, i32, i32
  }
  func.func @transform_3(%arg0: i32, %arg1: i32) -> (i32, i32) {
    %c0_i32 = arith.constant 0 : i32
    %c0_i32_0 = arith.constant 0 : i32
    %c0_i32_1 = arith.constant 0 : i32
    return %c0_i32, %c0_i32_0 : i32, i32
  }
  func.func @transform_4(%arg0: i32, %arg1: i32) -> (i32, i32, i32) {
    %c0_i32 = arith.constant 0 : i32
    %c0_i32_0 = arith.constant 0 : i32
    %c0_i32_1 = arith.constant 0 : i32
    return %arg0, %c0_i32, %c0_i32_0 : i32, i32, i32
  }
}

</mosaic_0001>

<llo_original>
// kernel: attention.1
$region0: #{attention.1}
  #allocation0 [shape = 'u32[]', space=smem, size = 0x4, offset = 0x4, fixed_abs, tag = 'smem constant byte address 0x4 - core index']
  #allocation1 [shape = 'u32[144,128]{1,0:T(1,128)}', space=vmem, size = 0x12000, scoped, tag = 'internal scratch']
  %s0 = inlined_call_operand.vmem [shape: bf16[2,64,128], index: 0, kind: input, shape index: {}]
  %s1 = inlined_call_operand.vmem [shape: bf16[1,128,1536], index: 1, kind: input, shape index: {}]
  %s2 = inlined_call_operand.vmem [shape: bf16[1,512,128], index: 2, kind: input, shape index: {}]
  %s3 = inlined_call_operand.vmem [shape: f32[1,128], index: 3, kind: input, shape index: {}]
  %s4 = inlined_call_operand.hbm [shape: f32[2,64,128], index: 4, kind: output, shape index: {}]
  %s5 = sld [smem:[#allocation0]]
  $region53: #{attention.1} parent=0
    _
  %s7 = ssub.s32 1, %s5
  %s8 = scalar_select 0, %s7, %s5
  $region1: #{attention.1} parent=0
    #allocation2 [shape = 'u8[65536]{0}', space=vmem, size = 0x10000, scoped, tag = 'output window, operand 0']
    #allocation3 [shape = 's32[2]{0}', space=sflag, size = 0x8, scoped, tag = 'scoped memory for attention.1']
    %9 = vsyncpa [#allocation3], 0
    %s10 = scalar_lea.sflag [#allocation3], 1
    %11 = vsyncpa %s10, 0
    loop: start=0, step=1, limit=4
    $region2: #{attention.1} parent=1 // loop_pre_header
      _
    $region3: #{attention.1} parent=1 // loop_header
      %s13 = sphi 0, %s17
      %p14 = scmp.ge.s32.totalorder %s13, 4
      %s20 = sphi 0, %s32
      %s21 = sphi 0, %s28
      %s22 = sphi 0, %s20
      %s23 = sphi 0, %s21
      %s24 = sphi 0, %s22
      %s25 = sphi 0, %s23
      %s35 = sphi 0, %s37
      %s38 = sphi 0, %s35
      %s39 = sphi 0, %s38
      %s55 = sphi 0, %s39
      %s59 = sphi 0, %s59
      %s61 = sphi 0, %s59
      %s62 = sphi 0, %s61
      %s76 = sphi 0, %s62
      %s80 = sphi 0, %s80
      %s82 = sphi 0, %s80
      %s83 = sphi 0, %s82
      %s97 = sphi 0, %s83
      %s101 = sphi 0, %s101
      %s103 = sphi 0, %s101
      %s104 = sphi 0, %s103
      %s118 = sphi 0, %s104
      %s124 = sphi 0, %s126
      %s127 = sphi 0, %s124
      %s128 = sphi 0, %s127
      %s144 = sphi 0, %s128
    $region4: #{attention.1} parent=1 // loop_header_branch
      %16 = sbr.rel (%p14) target = $region8
    $region5: #{attention.1} parent=1 // loop_body
      %s18 = ssub.s32 %s13, 1
      %s19 = ssub.s32 %s13, 2
      %s26 = sadd.s32 1, %s21
      %p27 = scmp.ge.s32.totalorder %s26, 1
      %s28 = scalar_select %p27, 0, %s26
      %s29 = sadd.s32 1, %s20
      %s30 = scalar_select %p27, %s29, %s20
      %p31 = scmp.ge.s32.totalorder %s30, 2
      %s32 = scalar_select %p31, 0, %s30
      %s33 = ssub.s32 %s20, %s32
      %p34 = scmp.eq.s32.totalorder %s33, 0
      %s36 = sadd.s32 %s35, 1
      %s37 = scalar_select %p34, %s35, %s36
      %p40 = pneg %p34
      %p41 = scmp.eq.s32.totalorder %s13, 1
      %p42 = por %p40, %p41
      %p43 = scmp.ne.s32.totalorder %s35, %s38
      %p44 = scmp.eq.s32.totalorder %s13, 0
      %p45 = por %p43, %p44
      %p46 = scmp.ne.s32.totalorder %s35, %s38
      %p47 = scmp.eq.s32.totalorder %s18, 1
      %p48 = por %p46, %p47
      %p49 = scmp.ne.s32.totalorder %s38, %s39
      %p50 = scmp.eq.s32.totalorder %s18, 0
      %p51 = por %p49, %p50
      %p52 = scmp.ne.s32.totalorder %s38, %s39
      %p53 = scmp.eq.s32.totalorder %s19, 1
      %p54 = por %p52, %p53
      %p56 = scmp.ne.s32.totalorder %s39, %s55
      %p57 = scmp.eq.s32.totalorder %s19, 0
      %p58 = por %p56, %p57
      %s60 = sadd.s32 %s59, 1
      %p63 = scmp.eq.s32.totalorder %s13, 1
      %p64 = scmp.ne.s32.totalorder %s59, %s61
      %p65 = scmp.eq.s32.totalorder %s13, 0
      %p66 = por %p64, %p65
      %p67 = scmp.ne.s32.totalorder %s59, %s61
      %p68 = scmp.eq.s32.totalorder %s18, 1
      %p69 = por %p67, %p68
      %p70 = scmp.ne.s32.totalorder %s61, %s62
      %p71 = scmp.eq.s32.totalorder %s18, 0
      %p72 = por %p70, %p71
      %p73 = scmp.ne.s32.totalorder %s61, %s62
      %p74 = scmp.eq.s32.totalorder %s19, 1
      %p75 = por %p73, %p74
      %p77 = scmp.ne.s32.totalorder %s62, %s76
      %p78 = scmp.eq.s32.totalorder %s19, 0
      %p79 = por %p77, %p78
      %s81 = sadd.s32 %s80, 1
      %p84 = scmp.eq.s32.totalorder %s13, 1
      %p85 = scmp.ne.s32.totalorder %s80, %s82
      %p86 = scmp.eq.s32.totalorder %s13, 0
      %p87 = por %p85, %p86
      %p88 = scmp.ne.s32.totalorder %s80, %s82
      %p89 = scmp.eq.s32.totalorder %s18, 1
      %p90 = por %p88, %p89
      %p91 = scmp.ne.s32.totalorder %s82, %s83
      %p92 = scmp.eq.s32.totalorder %s18, 0
      %p93 = por %p91, %p92
      %p94 = scmp.ne.s32.totalorder %s82, %s83
      %p95 = scmp.eq.s32.totalorder %s19, 1
      %p96 = por %p94, %p95
      %p98 = scmp.ne.s32.totalorder %s83, %s97
      %p99 = scmp.eq.s32.totalorder %s19, 0
      %p100 = por %p98, %p99
      %s102 = sadd.s32 %s101, 1
      %p105 = scmp.eq.s32.totalorder %s13, 1
      %p106 = scmp.ne.s32.totalorder %s101, %s103
      %p107 = scmp.eq.s32.totalorder %s13, 0
      %p108 = por %p106, %p107
      %p109 = scmp.ne.s32.totalorder %s101, %s103
      %p110 = scmp.eq.s32.totalorder %s18, 1
      %p111 = por %p109, %p110
      %p112 = scmp.ne.s32.totalorder %s103, %s104
      %p113 = scmp.eq.s32.totalorder %s18, 0
      %p114 = por %p112, %p113
      %p115 = scmp.ne.s32.totalorder %s103, %s104
      %p116 = scmp.eq.s32.totalorder %s19, 1
      %p117 = por %p115, %p116
      %p119 = scmp.ne.s32.totalorder %s104, %s118
      %p120 = scmp.eq.s32.totalorder %s19, 0
      %p121 = por %p119, %p120
      %s122 = ssub.s32 %s20, %s32
      %p123 = scmp.eq.s32.totalorder %s122, 0
      %s125 = sadd.s32 %s124, 1
      %s126 = scalar_select %p123, %s124, %s125
      %p129 = pneg %p123
      %p130 = scmp.eq.s32.totalorder %s13, 1
      %p131 = por %p129, %p130
      %p132 = scmp.ne.s32.totalorder %s124, %s127
      %p133 = scmp.eq.s32.totalorder %s13, 0
      %p134 = por %p132, %p133
      %p135 = scmp.ne.s32.totalorder %s124, %s127
      %p136 = scmp.eq.s32.totalorder %s18, 1
      %p137 = por %p135, %p136
      %p138 = scmp.ne.s32.totalorder %s127, %s128
      %p139 = scmp.eq.s32.totalorder %s18, 0
      %p140 = por %p138, %p139
      %p141 = scmp.ne.s32.totalorder %s127, %s128
      %p142 = scmp.eq.s32.totalorder %s19, 1
      %p143 = por %p141, %p142
      %p145 = scmp.ne.s32.totalorder %s128, %s144
      %p146 = scmp.eq.s32.totalorder %s19, 0
      %p147 = por %p145, %p146
      %p148 = scmp.le.s32.totalorder 1, %s13
      %p149 = scmp.lt.s32.totalorder %s13, 3
      %p150 = pnand %p148, %p149
      %p151 = pneg %p150
      // Predicated region
      $region9: #{attention.1} parent=5 // pred_check
        _
      $region10: #{attention.1} parent=5 // pred_check_branch
        %153 = sbr.rel (%p150) target = $region12
      $region11: #{attention.1} parent=5 // pred_region
        %s154 = ssub.s32 %s13, 1
        // Predicated region
        $region13: #{attention.1} parent=11 // pred_check
          %p155 = pneg %p72
        $region14: #{attention.1} parent=11 // pred_check_branch
          %157 = sbr.rel (%p155) target = $region16
        $region15: #{attention.1} parent=11 // pred_region
          _
        $region16: #{attention.1} parent=11 // pred_fallthru
          _
        // Predicated region
        $region17: #{attention.1} parent=11 // pred_check
          %p158 = pneg %p93
        $region18: #{attention.1} parent=11 // pred_check_branch
          %160 = sbr.rel (%p158) target = $region20
        $region19: #{attention.1} parent=11 // pred_region
          _
        $region20: #{attention.1} parent=11 // pred_fallthru
          _
        // Predicated region
        $region21: #{attention.1} parent=11 // pred_check
          %p161 = pneg %p114
        $region22: #{attention.1} parent=11 // pred_check_branch
          %163 = sbr.rel (%p161) target = $region24
        $region23: #{attention.1} parent=11 // pred_region
          _
        $region24: #{attention.1} parent=11 // pred_fallthru
          _
      $region12: #{attention.1} parent=5 // pred_fallthru
        _
      %p164 = scmp.lt.s32.totalorder %s13, 2
      // Predicated region
      $region25: #{attention.1} parent=5 // pred_check
        %p165 = pneg %p164
      $region26: #{attention.1} parent=5 // pred_check_branch
        %167 = sbr.rel (%p165) target = $region28
      $region27: #{attention.1} parent=5 // pred_region
        // Predicated region
        $region29: #{attention.1} parent=27 // pred_check
          %p168 = pneg %p45
        $region30: #{attention.1} parent=27 // pred_check_branch
          %170 = sbr.rel (%p168) target = $region32
        $region31: #{attention.1} parent=27 // pred_region
          %p171 = scmp.lt.s32.totalorder %s20, 1
          %s172 = scalar_select %p171, %s20, 1
          %s173 = smul.addr %s172, 8
          %s174 = smul.addr %s173, 4
          %s175 = scalar_lea.vmem %s0, %s174
        $region32: #{attention.1} parent=27 // pred_fallthru
          _
      $region28: #{attention.1} parent=5 // pred_fallthru
        _
      %p176 = scmp.le.s32.totalorder 1, %s13
      %p177 = scmp.lt.s32.totalorder %s13, 3
      %p178 = pnand %p176, %p177
      %p179 = pneg %p178
      // Predicated region
      $region33: #{attention.1} parent=5 // pred_check
        _
      $region34: #{attention.1} parent=5 // pred_check_branch
        %181 = sbr.rel (%p178) target = $region36
      $region35: #{attention.1} parent=5 // pred_region
        %s182 = ssub.s32 %s13, 1
        %p183 = scmp.lt.s32.totalorder %s22, 1
        %s184 = scalar_select %p183, %s22, 1
        %s185 = smul.addr %s184, 8
        %s186 = smul.addr %s185, 4
        %s187 = scalar_lea.vmem %s0, %s186
        %p188 = pneg %p51
        %p189 = pneg %p48
        %p190 = pneg %p72
        %p191 = pneg %p69
        %p192 = pneg %p93
        %p193 = pneg %p90
        %p194 = pneg %p114
        %p195 = pneg %p111
        %p196 = pneg %p140
        %p197 = pneg %p137
        %s198 = sand.u32 %s127, 1
        %s199 = scalar_lea.sflag [#allocation3], %s198
        %s200 = sand.u32 %s127, 1
        %s201 = smul.addr %s200, 64
        %s202 = scalar_lea.vmem [#allocation2], %s201
        %p203 = scmp.lt.s32.totalorder %s22, 1
        %s204 = scalar_select %p203, %s22, 1
        %s205 = smul.addr %s204, 8
        %s206 = smul.addr %s205, 4
        %s207 = scalar_lea.vmem %s0, %s206
        %v209 = vld [vmem:[%s207] sm:$0xf]
        %v210 = vld [vmem:[%s207 + $0x4] sm:$0xf]
        %v211 = vld [vmem:[%s207 + $0x8] sm:$0xf]
        %v212 = vld [vmem:[%s207 + $0xc] sm:$0xf]
        %v213 = vld [vmem:[%s207 + $0x10] sm:$0xf]
        %v214 = vld [vmem:[%s207 + $0x14] sm:$0xf]
        %v215 = vld [vmem:[%s207 + $0x18] sm:$0xf]
        %v216 = vld [vmem:[%s207 + $0x1c] sm:$0xf]
        %s217 = smul.u32 %s23, 192
        %s218 = smul.addr %s217, 4
        %s219 = scalar_lea.vmem %s1, %s218
        %v220 = vld [vmem:[%s219] sm:$0xff]
        %v221 = vld [vmem:[%s219 + $0x8] sm:$0xff]
        %v222 = vld [vmem:[%s219 + $0x10] sm:$0xff]
        %v223 = vld [vmem:[%s219 + $0x18] sm:$0xff]
        %v224 = vld [vmem:[%s219 + $0x20] sm:$0xff]
        %v225 = vld [vmem:[%s219 + $0x28] sm:$0xff]
        %v226 = vld [vmem:[%s219 + $0x30] sm:$0xff]
        %v227 = vld [vmem:[%s219 + $0x38] sm:$0xff]
        %v228 = vld [vmem:[%s219 + $0x40] sm:$0xff]
        %v229 = vld [vmem:[%s219 + $0x48] sm:$0xff]
        %v230 = vld [vmem:[%s219 + $0x50] sm:$0xff]
        %v231 = vld [vmem:[%s219 + $0x58] sm:$0xff]
        %v232 = vld [vmem:[%s219 + $0x60] sm:$0xff]
        %v233 = vld [vmem:[%s219 + $0x68] sm:$0xff]
        %v234 = vld [vmem:[%s219 + $0x70] sm:$0xff]
        %v235 = vld [vmem:[%s219 + $0x78] sm:$0xff]
        %v236 = vld [vmem:[%s219 + $0x80] sm:$0xff]
        %v237 = vld [vmem:[%s219 + $0x88] sm:$0xff]
        %v238 = vld [vmem:[%s219 + $0x90] sm:$0xff]
        %v239 = vld [vmem:[%s219 + $0x98] sm:$0xff]
        %v240 = vld [vmem:[%s219 + $0xa0] sm:$0xff]
        %v241 = vld [vmem:[%s219 + $0xa8] sm:$0xff]
        %v242 = vld [vmem:[%s219 + $0xb0] sm:$0xff]
        %v243 = vld [vmem:[%s219 + $0xb8] sm:$0xff]
        %v244 = vld [vmem:[%s219 + $0xc0] sm:$0xff]
        %v245 = vld [vmem:[%s219 + $0xc8] sm:$0xff]
        %v246 = vld [vmem:[%s219 + $0xd0] sm:$0xff]
        %v247 = vld [vmem:[%s219 + $0xd8] sm:$0xff]
        %v248 = vld [vmem:[%s219 + $0xe0] sm:$0xff]
        %v249 = vld [vmem:[%s219 + $0xe8] sm:$0xff]
        %v250 = vld [vmem:[%s219 + $0xf0] sm:$0xff]
        %v251 = vld [vmem:[%s219 + $0xf8] sm:$0xff]
        %v252 = vld [vmem:[%s219 + $0x100] sm:$0xff]
        %v253 = vld [vmem:[%s219 + $0x108] sm:$0xff]
        %v254 = vld [vmem:[%s219 + $0x110] sm:$0xff]
        %v255 = vld [vmem:[%s219 + $0x118] sm:$0xff]
        %v256 = vld [vmem:[%s219 + $0x120] sm:$0xff]
        %v257 = vld [vmem:[%s219 + $0x128] sm:$0xff]
        %v258 = vld [vmem:[%s219 + $0x130] sm:$0xff]
        %v259 = vld [vmem:[%s219 + $0x138] sm:$0xff]
        %v260 = vld [vmem:[%s219 + $0x140] sm:$0xff]
        %v261 = vld [vmem:[%s219 + $0x148] sm:$0xff]
        %v262 = vld [vmem:[%s219 + $0x150] sm:$0xff]
        %v263 = vld [vmem:[%s219 + $0x158] sm:$0xff]
        %v264 = vld [vmem:[%s219 + $0x160] sm:$0xff]
        %v265 = vld [vmem:[%s219 + $0x168] sm:$0xff]
        %v266 = vld [vmem:[%s219 + $0x170] sm:$0xff]
        %v267 = vld [vmem:[%s219 + $0x178] sm:$0xff]
        %v268 = vld [vmem:[%s219 + $0x180] sm:$0xff]
        %v269 = vld [vmem:[%s219 + $0x188] sm:$0xff]
        %v270 = vld [vmem:[%s219 + $0x190] sm:$0xff]
        %v271 = vld [vmem:[%s219 + $0x198] sm:$0xff]
        %v272 = vld [vmem:[%s219 + $0x1a0] sm:$0xff]
        %v273 = vld [vmem:[%s219 + $0x1a8] sm:$0xff]
        %v274 = vld [vmem:[%s219 + $0x1b0] sm:$0xff]
        %v275 = vld [vmem:[%s219 + $0x1b8] sm:$0xff]
        %v276 = vld [vmem:[%s219 + $0x1c0] sm:$0xff]
        %v277 = vld [vmem:[%s219 + $0x1c8] sm:$0xff]
        %v278 = vld [vmem:[%s219 + $0x1d0] sm:$0xff]
        %v279 = vld [vmem:[%s219 + $0x1d8] sm:$0xff]
        %v280 = vld [vmem:[%s219 + $0x1e0] sm:$0xff]
        %v281 = vld [vmem:[%s219 + $0x1e8] sm:$0xff]
        %v282 = vld [vmem:[%s219 + $0x1f0] sm:$0xff]
        %v283 = vld [vmem:[%s219 + $0x1f8] sm:$0xff]
        %v284 = vld [vmem:[%s219 + $0x200] sm:$0xff]
        %v285 = vld [vmem:[%s219 + $0x208] sm:$0xff]
        %v286 = vld [vmem:[%s219 + $0x210] sm:$0xff]
        %v287 = vld [vmem:[%s219 + $0x218] sm:$0xff]
        %v288 = vld [vmem:[%s219 + $0x220] sm:$0xff]
        %v289 = vld [vmem:[%s219 + $0x228] sm:$0xff]
        %v290 = vld [vmem:[%s219 + $0x230] sm:$0xff]
        %v291 = vld [vmem:[%s219 + $0x238] sm:$0xff]
        %v292 = vld [vmem:[%s219 + $0x240] sm:$0xff]
        %v293 = vld [vmem:[%s219 + $0x248] sm:$0xff]
        %v294 = vld [vmem:[%s219 + $0x250] sm:$0xff]
        %v295 = vld [vmem:[%s219 + $0x258] sm:$0xff]
        %v296 = vld [vmem:[%s219 + $0x260] sm:$0xff]
        %v297 = vld [vmem:[%s219 + $0x268] sm:$0xff]
        %v298 = vld [vmem:[%s219 + $0x270] sm:$0xff]
        %v299 = vld [vmem:[%s219 + $0x278] sm:$0xff]
        %v300 = vld [vmem:[%s219 + $0x280] sm:$0xff]
        %v301 = vld [vmem:[%s219 + $0x288] sm:$0xff]
        %v302 = vld [vmem:[%s219 + $0x290] sm:$0xff]
        %v303 = vld [vmem:[%s219 + $0x298] sm:$0xff]
        %v304 = vld [vmem:[%s219 + $0x2a0] sm:$0xff]
        %v305 = vld [vmem:[%s219 + $0x2a8] sm:$0xff]
        %v306 = vld [vmem:[%s219 + $0x2b0] sm:$0xff]
        %v307 = vld [vmem:[%s219 + $0x2b8] sm:$0xff]
        %v308 = vld [vmem:[%s219 + $0x2c0] sm:$0xff]
        %v309 = vld [vmem:[%s219 + $0x2c8] sm:$0xff]
        %v310 = vld [vmem:[%s219 + $0x2d0] sm:$0xff]
        %v311 = vld [vmem:[%s219 + $0x2d8] sm:$0xff]
        %v312 = vld [vmem:[%s219 + $0x2e0] sm:$0xff]
        %v313 = vld [vmem:[%s219 + $0x2e8] sm:$0xff]
        %v314 = vld [vmem:[%s219 + $0x2f0] sm:$0xff]
        %v315 = vld [vmem:[%s219 + $0x2f8] sm:$0xff]
        %v324 = vunpack.c.l.b16 %v209
        %v325 = vunpack.c.l.b16 %v210
        %v326 = vunpack.c.l.b16 %v211
        %v327 = vunpack.c.l.b16 %v212
        %v328 = vunpack.c.l.b16 %v213
        %v329 = vunpack.c.l.b16 %v214
        %v330 = vunpack.c.l.b16 %v215
        %v331 = vunpack.c.l.b16 %v216
        %v332 = vpack.c.b16 %v325, %v324
        %v333 = vpack.c.b16 %v327, %v326
        %v334 = vpack.c.b16 %v329, %v328
        %v335 = vpack.c.b16 %v331, %v330
        %v436 = vunpack.c.l.b16 %v220
        %v437 = vunpack.c.h.b16 %v220
        %v438 = vunpack.c.l.b16 %v221
        %v439 = vunpack.c.h.b16 %v221
        %v440 = vunpack.c.l.b16 %v222
        %v441 = vunpack.c.h.b16 %v222
        %v442 = vunpack.c.l.b16 %v223
        %v443 = vunpack.c.h.b16 %v223
        %v444 = vunpack.c.l.b16 %v224
        %v445 = vunpack.c.h.b16 %v224
        %v446 = vunpack.c.l.b16 %v225
        %v447 = vunpack.c.h.b16 %v225
        %v448 = vunpack.c.l.b16 %v226
        %v449 = vunpack.c.h.b16 %v226
        %v450 = vunpack.c.l.b16 %v227
        %v451 = vunpack.c.h.b16 %v227
        %v452 = vunpack.c.l.b16 %v228
        %v453 = vunpack.c.h.b16 %v228
        %v454 = vunpack.c.l.b16 %v229
        %v455 = vunpack.c.h.b16 %v229
        %v456 = vunpack.c.l.b16 %v230
        %v457 = vunpack.c.h.b16 %v230
        %v458 = vunpack.c.l.b16 %v231
        %v459 = vunpack.c.h.b16 %v231
        %v460 = vunpack.c.l.b16 %v232
        %v461 = vunpack.c.h.b16 %v232
        %v462 = vunpack.c.l.b16 %v233
        %v463 = vunpack.c.h.b16 %v233
        %v464 = vunpack.c.l.b16 %v234
        %v465 = vunpack.c.h.b16 %v234
        %v466 = vunpack.c.l.b16 %v235
        %v467 = vunpack.c.h.b16 %v235
        %v468 = vunpack.c.l.b16 %v236
        %v469 = vunpack.c.h.b16 %v236
        %v470 = vunpack.c.l.b16 %v237
        %v471 = vunpack.c.h.b16 %v237
        %v472 = vunpack.c.l.b16 %v238
        %v473 = vunpack.c.h.b16 %v238
        %v474 = vunpack.c.l.b16 %v239
        %v475 = vunpack.c.h.b16 %v239
        %v476 = vunpack.c.l.b16 %v240
        %v477 = vunpack.c.h.b16 %v240
        %v478 = vunpack.c.l.b16 %v241
        %v479 = vunpack.c.h.b16 %v241
        %v480 = vunpack.c.l.b16 %v242
        %v481 = vunpack.c.h.b16 %v242
        %v482 = vunpack.c.l.b16 %v243
        %v483 = vunpack.c.h.b16 %v243
        %v484 = vunpack.c.l.b16 %v244
        %v485 = vunpack.c.h.b16 %v244
        %v486 = vunpack.c.l.b16 %v245
        %v487 = vunpack.c.h.b16 %v245
        %v488 = vunpack.c.l.b16 %v246
        %v489 = vunpack.c.h.b16 %v246
        %v490 = vunpack.c.l.b16 %v247
        %v491 = vunpack.c.h.b16 %v247
        %v492 = vunpack.c.l.b16 %v248
        %v493 = vunpack.c.h.b16 %v248
        %v494 = vunpack.c.l.b16 %v249
        %v495 = vunpack.c.h.b16 %v249
        %v496 = vunpack.c.l.b16 %v250
        %v497 = vunpack.c.h.b16 %v250
        %v498 = vunpack.c.l.b16 %v251
        %v499 = vunpack.c.h.b16 %v251
        %v500 = vunpack.c.l.b16 %v252
        %v501 = vunpack.c.h.b16 %v252
        %v502 = vunpack.c.l.b16 %v253
        %v503 = vunpack.c.h.b16 %v253
        %v504 = vunpack.c.l.b16 %v254
        %v505 = vunpack.c.h.b16 %v254
        %v506 = vunpack.c.l.b16 %v255
        %v507 = vunpack.c.h.b16 %v255
        %v508 = vunpack.c.l.b16 %v256
        %v509 = vunpack.c.h.b16 %v256
        %v510 = vunpack.c.l.b16 %v257
        %v511 = vunpack.c.h.b16 %v257
        %v512 = vunpack.c.l.b16 %v258
        %v513 = vunpack.c.h.b16 %v258
        %v514 = vunpack.c.l.b16 %v259
        %v515 = vunpack.c.h.b16 %v259
        %v516 = vunpack.c.l.b16 %v260
        %v517 = vunpack.c.h.b16 %v260
        %v518 = vunpack.c.l.b16 %v261
        %v519 = vunpack.c.h.b16 %v261
        %v520 = vunpack.c.l.b16 %v262
        %v521 = vunpack.c.h.b16 %v262
        %v522 = vunpack.c.l.b16 %v263
        %v523 = vunpack.c.h.b16 %v263
        %v524 = vunpack.c.l.b16 %v264
        %v525 = vunpack.c.h.b16 %v264
        %v526 = vunpack.c.l.b16 %v265
        %v527 = vunpack.c.h.b16 %v265
        %v528 = vunpack.c.l.b16 %v266
        %v529 = vunpack.c.h.b16 %v266
        %v530 = vunpack.c.l.b16 %v267
        %v531 = vunpack.c.h.b16 %v267
        %v532 = vunpack.c.l.b16 %v268
        %v533 = vunpack.c.h.b16 %v268
        %v534 = vunpack.c.l.b16 %v269
        %v535 = vunpack.c.h.b16 %v269
        %v536 = vunpack.c.l.b16 %v270
        %v537 = vunpack.c.h.b16 %v270
        %v538 = vunpack.c.l.b16 %v271
        %v539 = vunpack.c.h.b16 %v271
        %v540 = vunpack.c.l.b16 %v272
        %v541 = vunpack.c.h.b16 %v272
        %v542 = vunpack.c.l.b16 %v273
        %v543 = vunpack.c.h.b16 %v273
        %v544 = vunpack.c.l.b16 %v274
        %v545 = vunpack.c.h.b16 %v274
        %v546 = vunpack.c.l.b16 %v275
        %v547 = vunpack.c.h.b16 %v275
        %v548 = vunpack.c.l.b16 %v276
        %v549 = vunpack.c.h.b16 %v276
        %v550 = vunpack.c.l.b16 %v277
        %v551 = vunpack.c.h.b16 %v277
        %v552 = vunpack.c.l.b16 %v278
        %v553 = vunpack.c.h.b16 %v278
        %v554 = vunpack.c.l.b16 %v279
        %v555 = vunpack.c.h.b16 %v279
        %v556 = vunpack.c.l.b16 %v280
        %v557 = vunpack.c.h.b16 %v280
        %v558 = vunpack.c.l.b16 %v281
        %v559 = vunpack.c.h.b16 %v281
        %v560 = vunpack.c.l.b16 %v282
        %v561 = vunpack.c.h.b16 %v282
        %v562 = vunpack.c.l.b16 %v283
        %v563 = vunpack.c.h.b16 %v283
        %v564 = vunpack.c.l.b16 %v284
        %v565 = vunpack.c.h.b16 %v284
        %v566 = vunpack.c.l.b16 %v285
        %v567 = vunpack.c.h.b16 %v285
        %v568 = vunpack.c.l.b16 %v286
        %v569 = vunpack.c.h.b16 %v286
        %v570 = vunpack.c.l.b16 %v287
        %v571 = vunpack.c.h.b16 %v287
        %v572 = vunpack.c.l.b16 %v288
        %v573 = vunpack.c.h.b16 %v288
        %v574 = vunpack.c.l.b16 %v289
        %v575 = vunpack.c.h.b16 %v289
        %v576 = vunpack.c.l.b16 %v290
        %v577 = vunpack.c.h.b16 %v290
        %v578 = vunpack.c.l.b16 %v291
        %v579 = vunpack.c.h.b16 %v291
        %v580 = vunpack.c.l.b16 %v292
        %v581 = vunpack.c.h.b16 %v292
        %v582 = vunpack.c.l.b16 %v293
        %v583 = vunpack.c.h.b16 %v293
        %v584 = vunpack.c.l.b16 %v294
        %v585 = vunpack.c.h.b16 %v294
        %v586 = vunpack.c.l.b16 %v295
        %v587 = vunpack.c.h.b16 %v295
        %v588 = vunpack.c.l.b16 %v296
        %v589 = vunpack.c.h.b16 %v296
        %v590 = vunpack.c.l.b16 %v297
        %v591 = vunpack.c.h.b16 %v297
        %v592 = vunpack.c.l.b16 %v298
        %v593 = vunpack.c.h.b16 %v298
        %v594 = vunpack.c.l.b16 %v299
        %v595 = vunpack.c.h.b16 %v299
        %v596 = vunpack.c.l.b16 %v300
        %v597 = vunpack.c.h.b16 %v300
        %v598 = vunpack.c.l.b16 %v301
        %v599 = vunpack.c.h.b16 %v301
        %v600 = vunpack.c.l.b16 %v302
        %v601 = vunpack.c.h.b16 %v302
        %v602 = vunpack.c.l.b16 %v303
        %v603 = vunpack.c.h.b16 %v303
        %v604 = vunpack.c.l.b16 %v304
        %v605 = vunpack.c.h.b16 %v304
        %v606 = vunpack.c.l.b16 %v305
        %v607 = vunpack.c.h.b16 %v305
        %v608 = vunpack.c.l.b16 %v306
        %v609 = vunpack.c.h.b16 %v306
        %v610 = vunpack.c.l.b16 %v307
        %v611 = vunpack.c.h.b16 %v307
        %v612 = vunpack.c.l.b16 %v308
        %v613 = vunpack.c.h.b16 %v308
        %v614 = vunpack.c.l.b16 %v309
        %v615 = vunpack.c.h.b16 %v309
        %v616 = vunpack.c.l.b16 %v310
        %v617 = vunpack.c.h.b16 %v310
        %v618 = vunpack.c.l.b16 %v311
        %v619 = vunpack.c.h.b16 %v311
        %v620 = vunpack.c.l.b16 %v312
        %v621 = vunpack.c.h.b16 %v312
        %v622 = vunpack.c.l.b16 %v313
        %v623 = vunpack.c.h.b16 %v313
        %v624 = vunpack.c.l.b16 %v314
        %v625 = vunpack.c.h.b16 %v314
        %v626 = vunpack.c.l.b16 %v315
        %v627 = vunpack.c.h.b16 %v315
        %v628 = vpack.c.b16 %v448, %v436
        %v629 = vpack.c.b16 %v449, %v437
        %v630 = vpack.c.b16 %v450, %v438
        %v631 = vpack.c.b16 %v451, %v439
        %v632 = vpack.c.b16 %v452, %v440
        %v633 = vpack.c.b16 %v453, %v441
        %v634 = vpack.c.b16 %v454, %v442
        %v635 = vpack.c.b16 %v455, %v443
        %v636 = vpack.c.b16 %v456, %v444
        %v637 = vpack.c.b16 %v457, %v445
        %v638 = vpack.c.b16 %v458, %v446
        %v639 = vpack.c.b16 %v459, %v447
        %v640 = vpack.c.b16 %v472, %v460
        %v641 = vpack.c.b16 %v473, %v461
        %v642 = vpack.c.b16 %v474, %v462
        %v643 = vpack.c.b16 %v475, %v463
        %v644 = vpack.c.b16 %v476, %v464
        %v645 = vpack.c.b16 %v477, %v465
        %v646 = vpack.c.b16 %v478, %v466
        %v647 = vpack.c.b16 %v479, %v467
        %v648 = vpack.c.b16 %v480, %v468
        %v649 = vpack.c.b16 %v481, %v469
        %v650 = vpack.c.b16 %v482, %v470
        %v651 = vpack.c.b16 %v483, %v471
        %v652 = vpack.c.b16 %v496, %v484
        %v653 = vpack.c.b16 %v497, %v485
        %v654 = vpack.c.b16 %v498, %v486
        %v655 = vpack.c.b16 %v499, %v487
        %v656 = vpack.c.b16 %v500, %v488
        %v657 = vpack.c.b16 %v501, %v489
        %v658 = vpack.c.b16 %v502, %v490
        %v659 = vpack.c.b16 %v503, %v491
        %v660 = vpack.c.b16 %v504, %v492
        %v661 = vpack.c.b16 %v505, %v493
        %v662 = vpack.c.b16 %v506, %v494
        %v663 = vpack.c.b16 %v507, %v495
        %v664 = vpack.c.b16 %v520, %v508
        %v665 = vpack.c.b16 %v521, %v509
        %v666 = vpack.c.b16 %v522, %v510
        %v667 = vpack.c.b16 %v523, %v511
        %v668 = vpack.c.b16 %v524, %v512
        %v669 = vpack.c.b16 %v525, %v513
        %v670 = vpack.c.b16 %v526, %v514
        %v671 = vpack.c.b16 %v527, %v515
        %v672 = vpack.c.b16 %v528, %v516
        %v673 = vpack.c.b16 %v529, %v517
        %v674 = vpack.c.b16 %v530, %v518
        %v675 = vpack.c.b16 %v531, %v519
        %v676 = vpack.c.b16 %v544, %v532
        %v677 = vpack.c.b16 %v545, %v533
        %v678 = vpack.c.b16 %v546, %v534
        %v679 = vpack.c.b16 %v547, %v535
        %v680 = vpack.c.b16 %v548, %v536
        %v681 = vpack.c.b16 %v549, %v537
        %v682 = vpack.c.b16 %v550, %v538
        %v683 = vpack.c.b16 %v551, %v539
        %v684 = vpack.c.b16 %v552, %v540
        %v685 = vpack.c.b16 %v553, %v541
        %v686 = vpack.c.b16 %v554, %v542
        %v687 = vpack.c.b16 %v555, %v543
        %v688 = vpack.c.b16 %v568, %v556
        %v689 = vpack.c.b16 %v569, %v557
        %v690 = vpack.c.b16 %v570, %v558
        %v691 = vpack.c.b16 %v571, %v559
        %v692 = vpack.c.b16 %v572, %v560
        %v693 = vpack.c.b16 %v573, %v561
        %v694 = vpack.c.b16 %v574, %v562
        %v695 = vpack.c.b16 %v575, %v563
        %v696 = vpack.c.b16 %v576, %v564
        %v697 = vpack.c.b16 %v577, %v565
        %v698 = vpack.c.b16 %v578, %v566
        %v699 = vpack.c.b16 %v579, %v567
        %v700 = vpack.c.b16 %v592, %v580
        %v701 = vpack.c.b16 %v593, %v581
        %v702 = vpack.c.b16 %v594, %v582
        %v703 = vpack.c.b16 %v595, %v583
        %v704 = vpack.c.b16 %v596, %v584
        %v705 = vpack.c.b16 %v597, %v585
        %v706 = vpack.c.b16 %v598, %v586
        %v707 = vpack.c.b16 %v599, %v587
        %v708 = vpack.c.b16 %v600, %v588
        %v709 = vpack.c.b16 %v601, %v589
        %v710 = vpack.c.b16 %v602, %v590
        %v711 = vpack.c.b16 %v603, %v591
        %v712 = vpack.c.b16 %v616, %v604
        %v713 = vpack.c.b16 %v617, %v605
        %v714 = vpack.c.b16 %v618, %v606
        %v715 = vpack.c.b16 %v619, %v607
        %v716 = vpack.c.b16 %v620, %v608
        %v717 = vpack.c.b16 %v621, %v609
        %v718 = vpack.c.b16 %v622, %v610
        %v719 = vpack.c.b16 %v623, %v611
        %v720 = vpack.c.b16 %v624, %v612
        %v721 = vpack.c.b16 %v625, %v613
        %v722 = vpack.c.b16 %v626, %v614
        %v723 = vpack.c.b16 %v627, %v615
        %820 = vmatprep.subr.bf16.mxu0 %v629
        %821 = vmatpush1.bf16.msra.mxu0 %v628
        %822 = vmatprep.subr.bf16.mxu0 %v641
        %823 = vmatpush1.bf16.msra.mxu0 %v640
        %824 = vmatprep.subr.bf16.mxu0 %v653
        %825 = vmatpush1.bf16.msra.mxu0 %v652
        %826 = vmatprep.subr.bf16.mxu0 %v665
        %827 = vmatpush1.bf16.msra.mxu0 %v664
        %828 = vmatprep.subr.bf16.mxu0 %v677
        %829 = vmatpush1.bf16.msra.mxu0 %v676
        %830 = vmatprep.subr.bf16.mxu0 %v689
        %831 = vmatpush1.bf16.msra.mxu0 %v688
        %832 = vmatprep.subr.bf16.mxu0 %v701
        %833 = vmatpush1.bf16.msra.mxu0 %v700
        %834 = vmatprep.subr.bf16.mxu0 %v713
        %835 = vmatpush1.bf16.msra.mxu0 %v712
        %836 = vmatprep.subr.bf16.mxu0 0
        %837 = vmatpush1.bf16.msra.mxu0 0
        %838 = vmatprep.subr.bf16.mxu0 0
        %839 = vmatpush1.bf16.msra.mxu0 0
        %840 = vmatprep.subr.bf16.mxu0 0
        %841 = vmatpush1.bf16.msra.mxu0 0
        %842 = vmatprep.subr.bf16.mxu0 0
        %843 = vmatpush1.bf16.msra.mxu0 0
        %844 = vmatprep.subr.bf16.mxu0 0
        %845 = vmatpush1.bf16.msra.mxu0 0
        %846 = vmatprep.subr.bf16.mxu0 0
        %847 = vmatpush1.bf16.msra.mxu0 0
        %848 = vmatprep.subr.bf16.mxu0 0
        %849 = vmatpush1.bf16.msra.mxu0 0
        %850 = vmatprep.subr.bf16.mxu0 0
        %851 = vmatpush1.bf16.msra.mxu0 0
        %852 = vmatprep.mubr.bf16.mxu0 0
        %853 = vmatmul.mubr.bf16.gmra.mrb[0].mxu0 %v332
        %v854 = vpop.f32.mrb[0].mxu0
        %v855 = vadd.f32 0.0, %v854
        %v856 = vpop.f32.mrb[0].mxu0
        %v857 = vadd.f32 0.0, %v856
        %v858 = vpop.f32.mrb[0].mxu0
        %v859 = vadd.f32 0.0, %v858
        %v860 = vpop.f32.mrb[0].mxu0
        %v861 = vadd.f32 0.0, %v860
        %862 = vmatprep.mubr.bf16.mxu0 0
        %863 = vmatmul.mubr.bf16.gmra.mrb[0].mxu0 %v333
        %v864 = vpop.f32.mrb[0].mxu0
        %v865 = vadd.f32 0.0, %v864
        %v866 = vpop.f32.mrb[0].mxu0
        %v867 = vadd.f32 0.0, %v866
        %v868 = vpop.f32.mrb[0].mxu0
        %v869 = vadd.f32 0.0, %v868
        %v870 = vpop.f32.mrb[0].mxu0
        %v871 = vadd.f32 0.0, %v870
        %872 = vmatprep.mubr.bf16.mxu0 0
        %873 = vmatmul.mubr.bf16.gmra.mrb[0].mxu0 %v334
        %v874 = vpop.f32.mrb[0].mxu0
        %v875 = vadd.f32 0.0, %v874
        %v876 = vpop.f32.mrb[0].mxu0
        %v877 = vadd.f32 0.0, %v876
        %v878 = vpop.f32.mrb[0].mxu0
        %v879 = vadd.f32 0.0, %v878
        %v880 = vpop.f32.mrb[0].mxu0
        %v881 = vadd.f32 0.0, %v880
        %882 = vmatprep.mubr.bf16.mxu0 0
        %883 = vmatmul.mubr.bf16.gmra.mrb[0].mxu0 %v335
        %v884 = vpop.f32.mrb[0].mxu0
        %v885 = vadd.f32 0.0, %v884
        %v886 = vpop.f32.mrb[0].mxu0
        %v887 = vadd.f32 0.0, %v886
        %v888 = vpop.f32.mrb[0].mxu0
        %v889 = vadd.f32 0.0, %v888
        %v890 = vpop.f32.mrb[0].mxu0
        %v891 = vadd.f32 0.0, %v890
        %892 = vdwg.mxu0
        %893 = vmatprep.subr.bf16.mxu0 %v631
        %894 = vmatpush1.bf16.msra.mxu0 %v630
        %895 = vmatprep.subr.bf16.mxu0 %v643
        %896 = vmatpush1.bf16.msra.mxu0 %v642
        %897 = vmatprep.subr.bf16.mxu0 %v655
        %898 = vmatpush1.bf16.msra.mxu0 %v654
        %899 = vmatprep.subr.bf16.mxu0 %v667
        %900 = vmatpush1.bf16.msra.mxu0 %v666
        %901 = vmatprep.subr.bf16.mxu0 %v679
        %902 = vmatpush1.bf16.msra.mxu0 %v678
        %903 = vmatprep.subr.bf16.mxu0 %v691
        %904 = vmatpush1.bf16.msra.mxu0 %v690
        %905 = vmatprep.subr.bf16.mxu0 %v703
        %906 = vmatpush1.bf16.msra.mxu0 %v702
        %907 = vmatprep.subr.bf16.mxu0 %v715
        %908 = vmatpush1.bf16.msra.mxu0 %v714
        %909 = vmatprep.subr.bf16.mxu0 0
        %910 = vmatpush1.bf16.msra.mxu0 0
        %911 = vmatprep.subr.bf16.mxu0 0
        %912 = vmatpush1.bf16.msra.mxu0 0
        %913 = vmatprep.subr.bf16.mxu0 0
        %914 = vmatpush1.bf16.msra.mxu0 0
        %915 = vmatprep.subr.bf16.mxu0 0
        %916 = vmatpush1.bf16.msra.mxu0 0
        %917 = vmatprep.subr.bf16.mxu0 0
        %918 = vmatpush1.bf16.msra.mxu0 0
        %919 = vmatprep.subr.bf16.mxu0 0
        %920 = vmatpush1.bf16.msra.mxu0 0
        %921 = vmatprep.subr.bf16.mxu0 0
        %922 = vmatpush1.bf16.msra.mxu0 0
        %923 = vmatprep.subr.bf16.mxu0 0
        %924 = vmatpush1.bf16.msra.mxu0 0
        %925 = vmatprep.mubr.bf16.mxu0 0
        %926 = vmatmul.mubr.bf16.gmra.mrb[0].mxu0 %v332
        %v927 = vpop.f32.mrb[0].mxu0
        %v928 = vadd.f32 0.0, %v927
        %v929 = vpop.f32.mrb[0].mxu0
        %v930 = vadd.f32 0.0, %v929
        %v931 = vpop.f32.mrb[0].mxu0
        %v932 = vadd.f32 0.0, %v931
        %v933 = vpop.f32.mrb[0].mxu0
        %v934 = vadd.f32 0.0, %v933
        %935 = vmatprep.mubr.bf16.mxu0 0
        %936 = vmatmul.mubr.bf16.gmra.mrb[0].mxu0 %v333
        %v937 = vpop.f32.mrb[0].mxu0
        %v938 = vadd.f32 0.0, %v937
        %v939 = vpop.f32.mrb[0].mxu0
        %v940 = vadd.f32 0.0, %v939
        %v941 = vpop.f32.mrb[0].mxu0
        %v942 = vadd.f32 0.0, %v941
        %v943 = vpop.f32.mrb[0].mxu0
        %v944 = vadd.f32 0.0, %v943
        %945 = vmatprep.mubr.bf16.mxu0 0
        %946 = vmatmul.mubr.bf16.gmra.mrb[0].mxu0 %v334
        %v947 = vpop.f32.mrb[0].mxu0
        %v948 = vadd.f32 0.0, %v947
        %v949 = vpop.f32.mrb[0].mxu0
        %v950 = vadd.f32 0.0, %v949
        %v951 = vpop.f32.mrb[0].mxu0
        %v952 = vadd.f32 0.0, %v951
        %v953 = vpop.f32.mrb[0].mxu0
        %v954 = vadd.f32 0.0, %v953
        %955 = vmatprep.mubr.bf16.mxu0 0
        %956 = vmatmul.mubr.bf16.gmra.mrb[0].mxu0 %v335
        %v957 = vpop.f32.mrb[0].mxu0
        %v958 = vadd.f32 0.0, %v957
        %v959 = vpop.f32.mrb[0].mxu0
        %v960 = vadd.f32 0.0, %v959
        %v961 = vpop.f32.mrb[0].mxu0
        %v962 = vadd.f32 0.0, %v961
        %v963 = vpop.f32.mrb[0].mxu0
        %v964 = vadd.f32 0.0, %v963
        %965 = vdwg.mxu0
        %966 = vmatprep.subr.bf16.mxu0 %v633
        %967 = vmatpush1.bf16.msra.mxu0 %v632
        %968 = vmatprep.subr.bf16.mxu0 %v645
        %969 = vmatpush1.bf16.msra.mxu0 %v644
        %970 = vmatprep.subr.bf16.mxu0 %v657
        %971 = vmatpush1.bf16.msra.mxu0 %v656
        %972 = vmatprep.subr.bf16.mxu0 %v669
        %973 = vmatpush1.bf16.msra.mxu0 %v668
        %974 = vmatprep.subr.bf16.mxu0 %v681
        %975 = vmatpush1.bf16.msra.mxu0 %v680
        %976 = vmatprep.subr.bf16.mxu0 %v693
        %977 = vmatpush1.bf16.msra.mxu0 %v692
        %978 = vmatprep.subr.bf16.mxu0 %v705
        %979 = vmatpush1.bf16.msra.mxu0 %v704
        %980 = vmatprep.subr.bf16.mxu0 %v717
        %981 = vmatpush1.bf16.msra.mxu0 %v716
        %982 = vmatprep.subr.bf16.mxu0 0
        %983 = vmatpush1.bf16.msra.mxu0 0
        %984 = vmatprep.subr.bf16.mxu0 0
        %985 = vmatpush1.bf16.msra.mxu0 0
        %986 = vmatprep.subr.bf16.mxu0 0
        %987 = vmatpush1.bf16.msra.mxu0 0
        %988 = vmatprep.subr.bf16.mxu0 0
        %989 = vmatpush1.bf16.msra.mxu0 0
        %990 = vmatprep.subr.bf16.mxu0 0
        %991 = vmatpush1.bf16.msra.mxu0 0
        %992 = vmatprep.subr.bf16.mxu0 0
        %993 = vmatpush1.bf16.msra.mxu0 0
        %994 = vmatprep.subr.bf16.mxu0 0
        %995 = vmatpush1.bf16.msra.mxu0 0
        %996 = vmatprep.subr.bf16.mxu0 0
        %997 = vmatpush1.bf16.msra.mxu0 0
        %998 = vmatprep.mubr.bf16.mxu0 0
        %999 = vmatmul.mubr.bf16.gmra.mrb[0].mxu0 %v332
        %v1000 = vpop.f32.mrb[0].mxu0
        %v1001 = vadd.f32 0.0, %v1000
        %v1002 = vpop.f32.mrb[0].mxu0
        %v1003 = vadd.f32 0.0, %v1002
        %v1004 = vpop.f32.mrb[0].mxu0
        %v1005 = vadd.f32 0.0, %v1004
        %v1006 = vpop.f32.mrb[0].mxu0
        %v1007 = vadd.f32 0.0, %v1006
        %1008 = vmatprep.mubr.bf16.mxu0 0
        %1009 = vmatmul.mubr.bf16.gmra.mrb[0].mxu0 %v333
        %v1010 = vpop.f32.mrb[0].mxu0
        %v1011 = vadd.f32 0.0, %v1010
        %v1012 = vpop.f32.mrb[0].mxu0
        %v1013 = vadd.f32 0.0, %v1012
        %v1014 = vpop.f32.mrb[0].mxu0
        %v1015 = vadd.f32 0.0, %v1014
        %v1016 = vpop.f32.mrb[0].mxu0
        %v1017 = vadd.f32 0.0, %v1016
        %1018 = vmatprep.mubr.bf16.mxu0 0
        %1019 = vmatmul.mubr.bf16.gmra.mrb[0].mxu0 %v334
        %v1020 = vpop.f32.mrb[0].mxu0
        %v1021 = vadd.f32 0.0, %v1020
        %v1022 = vpop.f32.mrb[0].mxu0
        %v1023 = vadd.f32 0.0, %v1022
        %v1024 = vpop.f32.mrb[0].mxu0
        %v1025 = vadd.f32 0.0, %v1024
        %v1026 = vpop.f32.mrb[0].mxu0
        %v1027 = vadd.f32 0.0, %v1026
        %1028 = vmatprep.mubr.bf16.mxu0 0
        %1029 = vmatmul.mubr.bf16.gmra.mrb[0].mxu0 %v335
        %v1030 = vpop.f32.mrb[0].mxu0
        %v1031 = vadd.f32 0.0, %v1030
        %v1032 = vpop.f32.mrb[0].mxu0
        %v1033 = vadd.f32 0.0, %v1032
        %v1034 = vpop.f32.mrb[0].mxu0
        %v1035 = vadd.f32 0.0, %v1034
        %v1036 = vpop.f32.mrb[0].mxu0
        %v1037 = vadd.f32 0.0, %v1036
        %1038 = vdwg.mxu0
        %1039 = vmatprep.subr.bf16.mxu0 %v635
        %1040 = vmatpush1.bf16.msra.mxu0 %v634
        %1041 = vmatprep.subr.bf16.mxu0 %v647
        %1042 = vmatpush1.bf16.msra.mxu0 %v646
        %1043 = vmatprep.subr.bf16.mxu0 %v659
        %1044 = vmatpush1.bf16.msra.mxu0 %v658
        %1045 = vmatprep.subr.bf16.mxu0 %v671
        %1046 = vmatpush1.bf16.msra.mxu0 %v670
        %1047 = vmatprep.subr.bf16.mxu0 %v683
        %1048 = vmatpush1.bf16.msra.mxu0 %v682
        %1049 = vmatprep.subr.bf16.mxu0 %v695
        %1050 = vmatpush1.bf16.msra.mxu0 %v694
        %1051 = vmatprep.subr.bf16.mxu0 %v707
        %1052 = vmatpush1.bf16.msra.mxu0 %v706
        %1053 = vmatprep.subr.bf16.mxu0 %v719
        %1054 = vmatpush1.bf16.msra.mxu0 %v718
        %1055 = vmatprep.subr.bf16.mxu0 0
        %1056 = vmatpush1.bf16.msra.mxu0 0
        %1057 = vmatprep.subr.bf16.mxu0 0
        %1058 = vmatpush1.bf16.msra.mxu0 0
        %1059 = vmatprep.subr.bf16.mxu0 0
        %1060 = vmatpush1.bf16.msra.mxu0 0
        %1061 = vmatprep.subr.bf16.mxu0 0
        %1062 = vmatpush1.bf16.msra.mxu0 0
        %1063 = vmatprep.subr.bf16.mxu0 0
        %1064 = vmatpush1.bf16.msra.mxu0 0
        %1065 = vmatprep.subr.bf16.mxu0 0
        %1066 = vmatpush1.bf16.msra.mxu0 0
        %1067 = vmatprep.subr.bf16.mxu0 0
        %1068 = vmatpush1.bf16.msra.mxu0 0
        %1069 = vmatprep.subr.bf16.mxu0 0
        %1070 = vmatpush1.bf16.msra.mxu0 0
        %1071 = vmatprep.mubr.bf16.mxu0 0
        %1072 = vmatmul.mubr.bf16.gmra.mrb[0].mxu0 %v332
        %v1073 = vpop.f32.mrb[0].mxu0
        %v1074 = vadd.f32 0.0, %v1073
        %v1075 = vpop.f32.mrb[0].mxu0
        %v1076 = vadd.f32 0.0, %v1075
        %v1077 = vpop.f32.mrb[0].mxu0
        %v1078 = vadd.f32 0.0, %v1077
        %v1079 = vpop.f32.mrb[0].mxu0
        %v1080 = vadd.f32 0.0, %v1079
        %1081 = vmatprep.mubr.bf16.mxu0 0
        %1082 = vmatmul.mubr.bf16.gmra.mrb[0].mxu0 %v333
        %v1083 = vpop.f32.mrb[0].mxu0
        %v1084 = vadd.f32 0.0, %v1083
        %v1085 = vpop.f32.mrb[0].mxu0
        %v1086 = vadd.f32 0.0, %v1085
        %v1087 = vpop.f32.mrb[0].mxu0
        %v1088 = vadd.f32 0.0, %v1087
        %v1089 = vpop.f32.mrb[0].mxu0
        %v1090 = vadd.f32 0.0, %v1089
        %1091 = vmatprep.mubr.bf16.mxu0 0
        %1092 = vmatmul.mubr.bf16.gmra.mrb[0].mxu0 %v334
        %v1093 = vpop.f32.mrb[0].mxu0
        %v1094 = vadd.f32 0.0, %v1093
        %v1095 = vpop.f32.mrb[0].mxu0
        %v1096 = vadd.f32 0.0, %v1095
        %v1097 = vpop.f32.mrb[0].mxu0
        %v1098 = vadd.f32 0.0, %v1097
        %v1099 = vpop.f32.mrb[0].mxu0
        %v1100 = vadd.f32 0.0, %v1099
        %1101 = vmatprep.mubr.bf16.mxu0 0
        %1102 = vmatmul.mubr.bf16.gmra.mrb[0].mxu0 %v335
        %v1103 = vpop.f32.mrb[0].mxu0
        %v1104 = vadd.f32 0.0, %v1103
        %v1105 = vpop.f32.mrb[0].mxu0
        %v1106 = vadd.f32 0.0, %v1105
        %v1107 = vpop.f32.mrb[0].mxu0
        %v1108 = vadd.f32 0.0, %v1107
        %v1109 = vpop.f32.mrb[0].mxu0
        %v1110 = vadd.f32 0.0, %v1109
        %1111 = vdwg.mxu0
        %1112 = vmatprep.subr.bf16.mxu0 %v637
        %1113 = vmatpush1.bf16.msra.mxu0 %v636
        %1114 = vmatprep.subr.bf16.mxu0 %v649
        %1115 = vmatpush1.bf16.msra.mxu0 %v648
        %1116 = vmatprep.subr.bf16.mxu0 %v661
        %1117 = vmatpush1.bf16.msra.mxu0 %v660
        %1118 = vmatprep.subr.bf16.mxu0 %v673
        %1119 = vmatpush1.bf16.msra.mxu0 %v672
        %1120 = vmatprep.subr.bf16.mxu0 %v685
        %1121 = vmatpush1.bf16.msra.mxu0 %v684
        %1122 = vmatprep.subr.bf16.mxu0 %v697
        %1123 = vmatpush1.bf16.msra.mxu0 %v696
        %1124 = vmatprep.subr.bf16.mxu0 %v709
        %1125 = vmatpush1.bf16.msra.mxu0 %v708
        %1126 = vmatprep.subr.bf16.mxu0 %v721
        %1127 = vmatpush1.bf16.msra.mxu0 %v720
        %1128 = vmatprep.subr.bf16.mxu0 0
        %1129 = vmatpush1.bf16.msra.mxu0 0
        %1130 = vmatprep.subr.bf16.mxu0 0
        %1131 = vmatpush1.bf16.msra.mxu0 0
        %1132 = vmatprep.subr.bf16.mxu0 0
        %1133 = vmatpush1.bf16.msra.mxu0 0
        %1134 = vmatprep.subr.bf16.mxu0 0
        %1135 = vmatpush1.bf16.msra.mxu0 0
        %1136 = vmatprep.subr.bf16.mxu0 0
        %1137 = vmatpush1.bf16.msra.mxu0 0
        %1138 = vmatprep.subr.bf16.mxu0 0
        %1139 = vmatpush1.bf16.msra.mxu0 0
        %1140 = vmatprep.subr.bf16.mxu0 0
        %1141 = vmatpush1.bf16.msra.mxu0 0
        %1142 = vmatprep.subr.bf16.mxu0 0
        %1143 = vmatpush1.bf16.msra.mxu0 0
        %1144 = vmatprep.mubr.bf16.mxu0 0
        %1145 = vmatmul.mubr.bf16.gmra.mrb[0].mxu0 %v332
        %v1146 = vpop.f32.mrb[0].mxu0
        %v1147 = vadd.f32 0.0, %v1146
        %v1148 = vpop.f32.mrb[0].mxu0
        %v1149 = vadd.f32 0.0, %v1148
        %v1150 = vpop.f32.mrb[0].mxu0
        %v1151 = vadd.f32 0.0, %v1150
        %v1152 = vpop.f32.mrb[0].mxu0
        %v1153 = vadd.f32 0.0, %v1152
        %1154 = vmatprep.mubr.bf16.mxu0 0
        %1155 = vmatmul.mubr.bf16.gmra.mrb[0].mxu0 %v333
        %v1156 = vpop.f32.mrb[0].mxu0
        %v1157 = vadd.f32 0.0, %v1156
        %v1158 = vpop.f32.mrb[0].mxu0
        %v1159 = vadd.f32 0.0, %v1158
        %v1160 = vpop.f32.mrb[0].mxu0
        %v1161 = vadd.f32 0.0, %v1160
        %v1162 = vpop.f32.mrb[0].mxu0
        %v1163 = vadd.f32 0.0, %v1162
        %1164 = vmatprep.mubr.bf16.mxu0 0
        %1165 = vmatmul.mubr.bf16.gmra.mrb[0].mxu0 %v334
        %v1166 = vpop.f32.mrb[0].mxu0
        %v1167 = vadd.f32 0.0, %v1166
        %v1168 = vpop.f32.mrb[0].mxu0
        %v1169 = vadd.f32 0.0, %v1168
        %v1170 = vpop.f32.mrb[0].mxu0
        %v1171 = vadd.f32 0.0, %v1170
        %v1172 = vpop.f32.mrb[0].mxu0
        %v1173 = vadd.f32 0.0, %v1172
        %1174 = vmatprep.mubr.bf16.mxu0 0
        %1175 = vmatmul.mubr.bf16.gmra.mrb[0].mxu0 %v335
        %v1176 = vpop.f32.mrb[0].mxu0
        %v1177 = vadd.f32 0.0, %v1176
        %v1178 = vpop.f32.mrb[0].mxu0
        %v1179 = vadd.f32 0.0, %v1178
        %v1180 = vpop.f32.mrb[0].mxu0
        %v1181 = vadd.f32 0.0, %v1180
        %v1182 = vpop.f32.mrb[0].mxu0
        %v1183 = vadd.f32 0.0, %v1182
        %1184 = vdwg.mxu0
        %1185 = vmatprep.subr.bf16.mxu0 %v639
        %1186 = vmatpush1.bf16.msra.mxu0 %v638
        %1187 = vmatprep.subr.bf16.mxu0 %v651
        %1188 = vmatpush1.bf16.msra.mxu0 %v650
        %1189 = vmatprep.subr.bf16.mxu0 %v663
        %1190 = vmatpush1.bf16.msra.mxu0 %v662
        %1191 = vmatprep.subr.bf16.mxu0 %v675
        %1192 = vmatpush1.bf16.msra.mxu0 %v674
        %1193 = vmatprep.subr.bf16.mxu0 %v687
        %1194 = vmatpush1.bf16.msra.mxu0 %v686
        %1195 = vmatprep.subr.bf16.mxu0 %v699
        %1196 = vmatpush1.bf16.msra.mxu0 %v698
        %1197 = vmatprep.subr.bf16.mxu0 %v711
        %1198 = vmatpush1.bf16.msra.mxu0 %v710
        %1199 = vmatprep.subr.bf16.mxu0 %v723
        %1200 = vmatpush1.bf16.msra.mxu0 %v722
        %1201 = vmatprep.subr.bf16.mxu0 0
        %1202 = vmatpush1.bf16.msra.mxu0 0
        %1203 = vmatprep.subr.bf16.mxu0 0
        %1204 = vmatpush1.bf16.msra.mxu0 0
        %1205 = vmatprep.subr.bf16.mxu0 0
        %1206 = vmatpush1.bf16.msra.mxu0 0
        %1207 = vmatprep.subr.bf16.mxu0 0
        %1208 = vmatpush1.bf16.msra.mxu0 0
        %1209 = vmatprep.subr.bf16.mxu0 0
        %1210 = vmatpush1.bf16.msra.mxu0 0
        %1211 = vmatprep.subr.bf16.mxu0 0
        %1212 = vmatpush1.bf16.msra.mxu0 0
        %1213 = vmatprep.subr.bf16.mxu0 0
        %1214 = vmatpush1.bf16.msra.mxu0 0
        %1215 = vmatprep.subr.bf16.mxu0 0
        %1216 = vmatpush1.bf16.msra.mxu0 0
        %1217 = vmatprep.mubr.bf16.mxu0 0
        %1218 = vmatmul.mubr.bf16.gmra.mrb[0].mxu0 %v332
        %v1219 = vpop.f32.mrb[0].mxu0
        %v1220 = vadd.f32 0.0, %v1219
        %v1221 = vpop.f32.mrb[0].mxu0
        %v1222 = vadd.f32 0.0, %v1221
        %v1223 = vpop.f32.mrb[0].mxu0
        %v1224 = vadd.f32 0.0, %v1223
        %v1225 = vpop.f32.mrb[0].mxu0
        %v1226 = vadd.f32 0.0, %v1225
        %1227 = vmatprep.mubr.bf16.mxu0 0
        %1228 = vmatmul.mubr.bf16.gmra.mrb[0].mxu0 %v333
        %v1229 = vpop.f32.mrb[0].mxu0
        %v1230 = vadd.f32 0.0, %v1229
        %v1231 = vpop.f32.mrb[0].mxu0
        %v1232 = vadd.f32 0.0, %v1231
        %v1233 = vpop.f32.mrb[0].mxu0
        %v1234 = vadd.f32 0.0, %v1233
        %v1235 = vpop.f32.mrb[0].mxu0
        %v1236 = vadd.f32 0.0, %v1235
        %1237 = vmatprep.mubr.bf16.mxu0 0
        %1238 = vmatmul.mubr.bf16.gmra.mrb[0].mxu0 %v334
        %v1239 = vpop.f32.mrb[0].mxu0
        %v1240 = vadd.f32 0.0, %v1239
        %v1241 = vpop.f32.mrb[0].mxu0
        %v1242 = vadd.f32 0.0, %v1241
        %v1243 = vpop.f32.mrb[0].mxu0
        %v1244 = vadd.f32 0.0, %v1243
        %v1245 = vpop.f32.mrb[0].mxu0
        %v1246 = vadd.f32 0.0, %v1245
        %1247 = vmatprep.mubr.bf16.mxu0 0
        %1248 = vmatmul.mubr.bf16.gmra.mrb[0].mxu0 %v335
        %v1249 = vpop.f32.mrb[0].mxu0
        %v1250 = vadd.f32 0.0, %v1249
        %v1251 = vpop.f32.mrb[0].mxu0
        %v1252 = vadd.f32 0.0, %v1251
        %v1253 = vpop.f32.mrb[0].mxu0
        %v1254 = vadd.f32 0.0, %v1253
        %v1255 = vpop.f32.mrb[0].mxu0
        %v1256 = vadd.f32 0.0, %v1255
        %1257 = vdwg.mxu0
        %v1258 = vpack.c.bf16 %v859, %v855
        %v1259 = vpack.c.bf16 %v861, %v857
        %v1260 = vpack.c.bf16 %v932, %v928
        %v1261 = vpack.c.bf16 %v934, %v930
        %v1262 = vpack.c.bf16 %v1005, %v1001
        %v1263 = vpack.c.bf16 %v1007, %v1003
        %v1264 = vpack.c.bf16 %v1078, %v1074
        %v1265 = vpack.c.bf16 %v1080, %v1076
        %v1266 = vpack.c.bf16 %v1151, %v1147
        %v1267 = vpack.c.bf16 %v1153, %v1149
        %v1268 = vpack.c.bf16 %v1224, %v1220
        %v1269 = vpack.c.bf16 %v1226, %v1222
        %v1270 = vpack.c.bf16 %v869, %v865
        %v1271 = vpack.c.bf16 %v871, %v867
        %v1272 = vpack.c.bf16 %v942, %v938
        %v1273 = vpack.c.bf16 %v944, %v940
        %v1274 = vpack.c.bf16 %v1015, %v1011
        %v1275 = vpack.c.bf16 %v1017, %v1013
        %v1276 = vpack.c.bf16 %v1088, %v1084
        %v1277 = vpack.c.bf16 %v1090, %v1086
        %v1278 = vpack.c.bf16 %v1161, %v1157
        %v1279 = vpack.c.bf16 %v1163, %v1159
        %v1280 = vpack.c.bf16 %v1234, %v1230
        %v1281 = vpack.c.bf16 %v1236, %v1232
        %v1282 = vpack.c.bf16 %v879, %v875
        %v1283 = vpack.c.bf16 %v881, %v877
        %v1284 = vpack.c.bf16 %v952, %v948
        %v1285 = vpack.c.bf16 %v954, %v950
        %v1286 = vpack.c.bf16 %v1025, %v1021
        %v1287 = vpack.c.bf16 %v1027, %v1023
        %v1288 = vpack.c.bf16 %v1098, %v1094
        %v1289 = vpack.c.bf16 %v1100, %v1096
        %v1290 = vpack.c.bf16 %v1171, %v1167
        %v1291 = vpack.c.bf16 %v1173, %v1169
        %v1292 = vpack.c.bf16 %v1244, %v1240
        %v1293 = vpack.c.bf16 %v1246, %v1242
        %v1294 = vpack.c.bf16 %v889, %v885
        %v1295 = vpack.c.bf16 %v891, %v887
        %v1296 = vpack.c.bf16 %v962, %v958
        %v1297 = vpack.c.bf16 %v964, %v960
        %v1298 = vpack.c.bf16 %v1035, %v1031
        %v1299 = vpack.c.bf16 %v1037, %v1033
        %v1300 = vpack.c.bf16 %v1108, %v1104
        %v1301 = vpack.c.bf16 %v1110, %v1106
        %v1302 = vpack.c.bf16 %v1181, %v1177
        %v1303 = vpack.c.bf16 %v1183, %v1179
        %v1304 = vpack.c.bf16 %v1254, %v1250
        %v1305 = vpack.c.bf16 %v1256, %v1252
        %vm1306 = vcmask 523264
        %v1308 = vsel %vm1306, %v1258, 0
        %v1311 = vsel %vm1306, %v1270, 0
        %v1314 = vsel %vm1306, %v1282, 0
        %v1317 = vsel %vm1306, %v1294, 0
        %v1320 = vsel %vm1306, %v1262, 0
        %v1323 = vsel %vm1306, %v1274, 0
        %v1326 = vsel %vm1306, %v1286, 0
        %v1329 = vsel %vm1306, %v1298, 0
        %1331 = vmatprep.subr.bf16.mxu0 0
        %1332 = vmatpush1.bf16.xpose.msra.mxu0 %v1320
        %1333 = vmatprep.subr.bf16.mxu0 0
        %1334 = vmatpush1.bf16.xpose.msra.mxu0 %v1323
        %1335 = vmatprep.subr.bf16.mxu0 0
        %1336 = vmatpush1.bf16.xpose.msra.mxu0 %v1326
        %1337 = vmatprep.subr.bf16.mxu0 0
        %1338 = vmatpush1.bf16.xpose.msra.mxu0 %v1329
        %1339 = vmatprep.subr.bf16.mxu0 0
        %1340 = vmatpush1.bf16.xpose.msra.mxu0 0
        %1341 = vmatprep.subr.bf16.mxu0 0
        %1342 = vmatpush1.bf16.xpose.msra.mxu0 0
        %1343 = vmatprep.subr.bf16.mxu0 0
        %1344 = vmatpush1.bf16.xpose.msra.mxu0 0
        %1345 = vmatprep.subr.bf16.mxu0 0
        %1346 = vmatpush1.bf16.xpose.msra.mxu0 0
        %1347 = vmatprep.subr.bf16.mxu0 0
        %1348 = vmatpush1.bf16.xpose.msra.mxu0 0
        %1349 = vmatprep.subr.bf16.mxu0 0
        %1350 = vmatpush1.bf16.xpose.msra.mxu0 0
        %1351 = vmatprep.subr.bf16.mxu0 0
        %1352 = vmatpush1.bf16.xpose.msra.mxu0 0
        %1353 = vmatprep.subr.bf16.mxu0 0
        %1354 = vmatpush1.bf16.xpose.msra.mxu0 0
        %1355 = vmatprep.subr.bf16.mxu0 0
        %1356 = vmatpush1.bf16.xpose.msra.mxu0 0
        %1357 = vmatprep.subr.bf16.mxu0 0
        %1358 = vmatpush1.bf16.xpose.msra.mxu0 0
        %1359 = vmatprep.subr.bf16.mxu0 0
        %1360 = vmatpush1.bf16.xpose.msra.mxu0 0
        %1361 = vmatprep.subr.bf16.mxu0 0
        %1362 = vmatpush1.bf16.xpose.msra.mxu0 0
        %1363 = vmatprep.mubr.bf16.mxu0 0
        %1364 = vmatmul.mubr.bf16.gmra.mrb[0].mxu0 %v1308
        %v1365 = vpop.f32.mrb[0].mxu0
        %v1366 = vadd.f32 0.0, %v1365
        %v1367 = vpop.f32.mrb[0].mxu0
        %v1368 = vpop.f32.mrb[0].mxu0
        %v1369 = vadd.f32 0.0, %v1368
        %v1370 = vpop.f32.mrb[0].mxu0
        %1371 = vmatprep.mubr.bf16.mxu0 0
        %1372 = vmatmul.mubr.bf16.gmra.mrb[0].mxu0 %v1311
        %v1373 = vpop.f32.mrb[0].mxu0
        %v1374 = vadd.f32 0.0, %v1373
        %v1375 = vpop.f32.mrb[0].mxu0
        %v1376 = vpop.f32.mrb[0].mxu0
        %v1377 = vadd.f32 0.0, %v1376
        %v1378 = vpop.f32.mrb[0].mxu0
        %1379 = vmatprep.mubr.bf16.mxu0 0
        %1380 = vmatmul.mubr.bf16.gmra.mrb[0].mxu0 %v1314
        %v1381 = vpop.f32.mrb[0].mxu0
        %v1382 = vadd.f32 0.0, %v1381
        %v1383 = vpop.f32.mrb[0].mxu0
        %v1384 = vpop.f32.mrb[0].mxu0
        %v1385 = vadd.f32 0.0, %v1384
        %v1386 = vpop.f32.mrb[0].mxu0
        %1387 = vmatprep.mubr.bf16.mxu0 0
        %1388 = vmatmul.mubr.bf16.gmra.mrb[0].mxu0 %v1317
        %v1389 = vpop.f32.mrb[0].mxu0
        %v1390 = vadd.f32 0.0, %v1389
        %v1391 = vpop.f32.mrb[0].mxu0
        %v1392 = vpop.f32.mrb[0].mxu0
        %v1393 = vadd.f32 0.0, %v1392
        %v1394 = vpop.f32.mrb[0].mxu0
        %1395 = vdwg.mxu0
        %v1396 = vsel %vm1306, %v1366, -inf
        %1397 = vmax.xlane.f32.xlu0 %v1396
        %v1398 = vpop.xlane.xlu0 %1397
        %v1399 = vsel %vm1306, %v1369, -inf
        %1400 = vmax.xlane.f32.xlu0 %v1399
        %v1401 = vpop.xlane.xlu0 %1400
        %v1402 = vsel %vm1306, %v1374, -inf
        %1403 = vmax.xlane.f32.xlu0 %v1402
        %v1404 = vpop.xlane.xlu0 %1403
        %v1405 = vsel %vm1306, %v1377, -inf
        %1406 = vmax.xlane.f32.xlu0 %v1405
        %v1407 = vpop.xlane.xlu0 %1406
        %v1408 = vsel %vm1306, %v1382, -inf
        %1409 = vmax.xlane.f32.xlu0 %v1408
        %v1410 = vpop.xlane.xlu0 %1409
        %v1411 = vsel %vm1306, %v1385, -inf
        %1412 = vmax.xlane.f32.xlu0 %v1411
        %v1413 = vpop.xlane.xlu0 %1412
        %v1414 = vsel %vm1306, %v1390, -inf
        %1415 = vmax.xlane.f32.xlu0 %v1414
        %v1416 = vpop.xlane.xlu0 %1415
        %v1417 = vsel %vm1306, %v1393, -inf
        %1418 = vmax.xlane.f32.xlu0 %v1417
        %v1419 = vpop.xlane.xlu0 %1418
        %v1420 = vsub.f32 %v1366, %v1398
        %v1421 = vsub.f32 %v1369, %v1401
        %v1422 = vsub.f32 %v1374, %v1404
        %v1423 = vsub.f32 %v1377, %v1407
        %v1424 = vsub.f32 %v1382, %v1410
        %v1425 = vsub.f32 %v1385, %v1413
        %v1426 = vsub.f32 %v1390, %v1416
        %v1427 = vsub.f32 %v1393, %v1419
        %v1428 = vmul.f32 %v1420, 1.442695
        %v1429 = vpow.pop %v1428
        %v1430 = vmul.f32 %v1421, 1.442695
        %v1431 = vpow.pop %v1430
        %v1432 = vmul.f32 %v1422, 1.442695
        %v1433 = vpow.pop %v1432
        %v1434 = vmul.f32 %v1423, 1.442695
        %v1435 = vpow.pop %v1434
        %v1436 = vmul.f32 %v1424, 1.442695
        %v1437 = vpow.pop %v1436
        %v1438 = vmul.f32 %v1425, 1.442695
        %v1439 = vpow.pop %v1438
        %v1440 = vmul.f32 %v1426, 1.442695
        %v1441 = vpow.pop %v1440
        %v1442 = vmul.f32 %v1427, 1.442695
        %v1443 = vpow.pop %v1442
        %v1444 = vsel %vm1306, %v1429, 0.0
        %1445 = vadd.xlane.f32.xlu0 %v1444
        %v1446 = vpop.xlane.xlu0 %1445
        %v1447 = vsel %vm1306, %v1431, 0.0
        %1448 = vadd.xlane.f32.xlu0 %v1447
        %v1449 = vpop.xlane.xlu0 %1448
        %v1450 = vsel %vm1306, %v1433, 0.0
        %1451 = vadd.xlane.f32.xlu0 %v1450
        %v1452 = vpop.xlane.xlu0 %1451
        %v1453 = vsel %vm1306, %v1435, 0.0
        %1454 = vadd.xlane.f32.xlu0 %v1453
        %v1455 = vpop.xlane.xlu0 %1454
        %v1456 = vsel %vm1306, %v1437, 0.0
        %1457 = vadd.xlane.f32.xlu0 %v1456
        %v1458 = vpop.xlane.xlu0 %1457
        %v1459 = vsel %vm1306, %v1439, 0.0
        %1460 = vadd.xlane.f32.xlu0 %v1459
        %v1461 = vpop.xlane.xlu0 %1460
        %v1462 = vsel %vm1306, %v1441, 0.0
        %1463 = vadd.xlane.f32.xlu0 %v1462
        %v1464 = vpop.xlane.xlu0 %1463
        %v1465 = vsel %vm1306, %v1443, 0.0
        %1466 = vadd.xlane.f32.xlu0 %v1465
        %v1467 = vpop.xlane.xlu0 %1466
        %v1468 = vrcp.pop %v1446
        %v1469 = vrcp.pop %v1449
        %v1470 = vrcp.pop %v1452
        %v1471 = vrcp.pop %v1455
        %v1472 = vrcp.pop %v1458
        %v1473 = vrcp.pop %v1461
        %v1474 = vrcp.pop %v1464
        %v1475 = vrcp.pop %v1467
        %v1476 = vmul.f32 %v1429, %v1468
        %v1477 = vmul.f32 %v1431, %v1469
        %v1478 = vmul.f32 %v1433, %v1470
        %v1479 = vmul.f32 %v1435, %v1471
        %v1480 = vmul.f32 %v1437, %v1472
        %v1481 = vmul.f32 %v1439, %v1473
        %v1482 = vmul.f32 %v1441, %v1474
        %v1483 = vmul.f32 %v1443, %v1475
        %v1484 = vpack.c.bf16 %v1477, %v1476
        %v1485 = vpack.c.bf16 %v1479, %v1478
        %v1486 = vpack.c.bf16 %v1481, %v1480
        %v1487 = vpack.c.bf16 %v1483, %v1482
        %v1489 = vsel %vm1306, %v1484, 0
        %v1492 = vsel %vm1306, %v1485, 0
        %v1495 = vsel %vm1306, %v1486, 0
        %v1498 = vsel %vm1306, %v1487, 0
        %1500 = vmatprep.subr.bf16.mxu0 0
        %1501 = vmatpush1.bf16.msra.mxu0 %v1266
        %1502 = vmatprep.subr.bf16.mxu0 0
        %1503 = vmatpush1.bf16.msra.mxu0 %v1278
        %1504 = vmatprep.subr.bf16.mxu0 0
        %1505 = vmatpush1.bf16.msra.mxu0 %v1290
        %1506 = vmatprep.subr.bf16.mxu0 0
        %1507 = vmatpush1.bf16.msra.mxu0 %v1302
        %1508 = vmatprep.subr.bf16.mxu0 0
        %1509 = vmatpush1.bf16.msra.mxu0 0
        %1510 = vmatprep.subr.bf16.mxu0 0
        %1511 = vmatpush1.bf16.msra.mxu0 0
        %1512 = vmatprep.subr.bf16.mxu0 0
        %1513 = vmatpush1.bf16.msra.mxu0 0
        %1514 = vmatprep.subr.bf16.mxu0 0
        %1515 = vmatpush1.bf16.msra.mxu0 0
        %1516 = vmatprep.subr.bf16.mxu0 0
        %1517 = vmatpush1.bf16.msra.mxu0 0
        %1518 = vmatprep.subr.bf16.mxu0 0
        %1519 = vmatpush1.bf16.msra.mxu0 0
        %1520 = vmatprep.subr.bf16.mxu0 0
        %1521 = vmatpush1.bf16.msra.mxu0 0
        %1522 = vmatprep.subr.bf16.mxu0 0
        %1523 = vmatpush1.bf16.msra.mxu0 0
        %1524 = vmatprep.subr.bf16.mxu0 0
        %1525 = vmatpush1.bf16.msra.mxu0 0
        %1526 = vmatprep.subr.bf16.mxu0 0
        %1527 = vmatpush1.bf16.msra.mxu0 0
        %1528 = vmatprep.subr.bf16.mxu0 0
        %1529 = vmatpush1.bf16.msra.mxu0 0
        %1530 = vmatprep.subr.bf16.mxu0 0
        %1531 = vmatpush1.bf16.msra.mxu0 0
        %1532 = vmatprep.mubr.bf16.mxu0 0
        %1533 = vmatmul.mubr.bf16.gmra.mrb[0].mxu0 %v1489
        %v1534 = vpop.f32.mrb[0].mxu0
        %v1535 = vadd.f32 0.0, %v1534
        %v1536 = vpop.f32.mrb[0].mxu0
        %v1537 = vpop.f32.mrb[0].mxu0
        %v1538 = vadd.f32 0.0, %v1537
        %v1539 = vpop.f32.mrb[0].mxu0
        %1540 = vmatprep.mubr.bf16.mxu0 0
        %1541 = vmatmul.mubr.bf16.gmra.mrb[0].mxu0 %v1492
        %v1542 = vpop.f32.mrb[0].mxu0
        %v1543 = vadd.f32 0.0, %v1542
        %v1544 = vpop.f32.mrb[0].mxu0
        %v1545 = vpop.f32.mrb[0].mxu0
        %v1546 = vadd.f32 0.0, %v1545
        %v1547 = vpop.f32.mrb[0].mxu0
        %1548 = vmatprep.mubr.bf16.mxu0 0
        %1549 = vmatmul.mubr.bf16.gmra.mrb[0].mxu0 %v1495
        %v1550 = vpop.f32.mrb[0].mxu0
        %v1551 = vadd.f32 0.0, %v1550
        %v1552 = vpop.f32.mrb[0].mxu0
        %v1553 = vpop.f32.mrb[0].mxu0
        %v1554 = vadd.f32 0.0, %v1553
        %v1555 = vpop.f32.mrb[0].mxu0
        %1556 = vmatprep.mubr.bf16.mxu0 0
        %1557 = vmatmul.mubr.bf16.gmra.mrb[0].mxu0 %v1498
        %v1558 = vpop.f32.mrb[0].mxu0
        %v1559 = vadd.f32 0.0, %v1558
        %v1560 = vpop.f32.mrb[0].mxu0
        %v1561 = vpop.f32.mrb[0].mxu0
        %v1562 = vadd.f32 0.0, %v1561
        %v1563 = vpop.f32.mrb[0].mxu0
        %1564 = vdwg.mxu0
        %1569 = vrot.lane.b32.xlu0 %v1258, 64
        %v1570 = vpop.permute.xlu0 %1569
        %1571 = vrot.lane.b32.xlu0 %v1270, 64
        %v1572 = vpop.permute.xlu0 %1571
        %1573 = vrot.lane.b32.xlu0 %v1282, 64
        %v1574 = vpop.permute.xlu0 %1573
        %1575 = vrot.lane.b32.xlu0 %v1294, 64
        %v1576 = vpop.permute.xlu0 %1575
        %1581 = vrot.lane.b32.xlu0 %v1262, 64
        %v1582 = vpop.permute.xlu0 %1581
        %1583 = vrot.lane.b32.xlu0 %v1274, 64
        %v1584 = vpop.permute.xlu0 %1583
        %1585 = vrot.lane.b32.xlu0 %v1286, 64
        %v1586 = vpop.permute.xlu0 %1585
        %1587 = vrot.lane.b32.xlu0 %v1298, 64
        %v1588 = vpop.permute.xlu0 %1587
        %v1590 = vsel %vm1306, %v1570, 0
        %v1593 = vsel %vm1306, %v1572, 0
        %v1596 = vsel %vm1306, %v1574, 0
        %v1599 = vsel %vm1306, %v1576, 0
        %v1602 = vsel %vm1306, %v1582, 0
        %v1605 = vsel %vm1306, %v1584, 0
        %v1608 = vsel %vm1306, %v1586, 0
        %v1611 = vsel %vm1306, %v1588, 0
        %1613 = vmatprep.subr.bf16.mxu0 0
        %1614 = vmatpush1.bf16.xpose.msra.mxu0 %v1602
        %1615 = vmatprep.subr.bf16.mxu0 0
        %1616 = vmatpush1.bf16.xpose.msra.mxu0 %v1605
        %1617 = vmatprep.subr.bf16.mxu0 0
        %1618 = vmatpush1.bf16.xpose.msra.mxu0 %v1608
        %1619 = vmatprep.subr.bf16.mxu0 0
        %1620 = vmatpush1.bf16.xpose.msra.mxu0 %v1611
        %1621 = vmatprep.subr.bf16.mxu0 0
        %1622 = vmatpush1.bf16.xpose.msra.mxu0 0
        %1623 = vmatprep.subr.bf16.mxu0 0
        %1624 = vmatpush1.bf16.xpose.msra.mxu0 0
        %1625 = vmatprep.subr.bf16.mxu0 0
        %1626 = vmatpush1.bf16.xpose.msra.mxu0 0
        %1627 = vmatprep.subr.bf16.mxu0 0
        %1628 = vmatpush1.bf16.xpose.msra.mxu0 0
        %1629 = vmatprep.subr.bf16.mxu0 0
        %1630 = vmatpush1.bf16.xpose.msra.mxu0 0
        %1631 = vmatprep.subr.bf16.mxu0 0
        %1632 = vmatpush1.bf16.xpose.msra.mxu0 0
        %1633 = vmatprep.subr.bf16.mxu0 0
        %1634 = vmatpush1.bf16.xpose.msra.mxu0 0
        %1635 = vmatprep.subr.bf16.mxu0 0
        %1636 = vmatpush1.bf16.xpose.msra.mxu0 0
        %1637 = vmatprep.subr.bf16.mxu0 0
        %1638 = vmatpush1.bf16.xpose.msra.mxu0 0
        %1639 = vmatprep.subr.bf16.mxu0 0
        %1640 = vmatpush1.bf16.xpose.msra.mxu0 0
        %1641 = vmatprep.subr.bf16.mxu0 0
        %1642 = vmatpush1.bf16.xpose.msra.mxu0 0
        %1643 = vmatprep.subr.bf16.mxu0 0
        %1644 = vmatpush1.bf16.xpose.msra.mxu0 0
        %1645 = vmatprep.mubr.bf16.mxu0 0
        %1646 = vmatmul.mubr.bf16.gmra.mrb[0].mxu0 %v1590
        %v1647 = vpop.f32.mrb[0].mxu0
        %v1648 = vadd.f32 0.0, %v1647
        %v1649 = vpop.f32.mrb[0].mxu0
        %v1650 = vpop.f32.mrb[0].mxu0
        %v1651 = vadd.f32 0.0, %v1650
        %v1652 = vpop.f32.mrb[0].mxu0
        %1653 = vmatprep.mubr.bf16.mxu0 0
        %1654 = vmatmul.mubr.bf16.gmra.mrb[0].mxu0 %v1593
        %v1655 = vpop.f32.mrb[0].mxu0
        %v1656 = vadd.f32 0.0, %v1655
        %v1657 = vpop.f32.mrb[0].mxu0
        %v1658 = vpop.f32.mrb[0].mxu0
        %v1659 = vadd.f32 0.0, %v1658
        %v1660 = vpop.f32.mrb[0].mxu0
        %1661 = vmatprep.mubr.bf16.mxu0 0
        %1662 = vmatmul.mubr.bf16.gmra.mrb[0].mxu0 %v1596
        %v1663 = vpop.f32.mrb[0].mxu0
        %v1664 = vadd.f32 0.0, %v1663
        %v1665 = vpop.f32.mrb[0].mxu0
        %v1666 = vpop.f32.mrb[0].mxu0
        %v1667 = vadd.f32 0.0, %v1666
        %v1668 = vpop.f32.mrb[0].mxu0
        %1669 = vmatprep.mubr.bf16.mxu0 0
        %1670 = vmatmul.mubr.bf16.gmra.mrb[0].mxu0 %v1599
        %v1671 = vpop.f32.mrb[0].mxu0
        %v1672 = vadd.f32 0.0, %v1671
        %v1673 = vpop.f32.mrb[0].mxu0
        %v1674 = vpop.f32.mrb[0].mxu0
        %v1675 = vadd.f32 0.0, %v1674
        %v1676 = vpop.f32.mrb[0].mxu0
        %1677 = vdwg.mxu0
        %v1678 = vsel %vm1306, %v1648, -inf
        %1679 = vmax.xlane.f32.xlu0 %v1678
        %v1680 = vpop.xlane.xlu0 %1679
        %v1681 = vsel %vm1306, %v1651, -inf
        %1682 = vmax.xlane.f32.xlu0 %v1681
        %v1683 = vpop.xlane.xlu0 %1682
        %v1684 = vsel %vm1306, %v1656, -inf
        %1685 = vmax.xlane.f32.xlu0 %v1684
        %v1686 = vpop.xlane.xlu0 %1685
        %v1687 = vsel %vm1306, %v1659, -inf
        %1688 = vmax.xlane.f32.xlu0 %v1687
        %v1689 = vpop.xlane.xlu0 %1688
        %v1690 = vsel %vm1306, %v1664, -inf
        %1691 = vmax.xlane.f32.xlu0 %v1690
        %v1692 = vpop.xlane.xlu0 %1691
        %v1693 = vsel %vm1306, %v1667, -inf
        %1694 = vmax.xlane.f32.xlu0 %v1693
        %v1695 = vpop.xlane.xlu0 %1694
        %v1696 = vsel %vm1306, %v1672, -inf
        %1697 = vmax.xlane.f32.xlu0 %v1696
        %v1698 = vpop.xlane.xlu0 %1697
        %v1699 = vsel %vm1306, %v1675, -inf
        %1700 = vmax.xlane.f32.xlu0 %v1699
        %v1701 = vpop.xlane.xlu0 %1700
        %v1702 = vsub.f32 %v1648, %v1680
        %v1703 = vsub.f32 %v1651, %v1683
        %v1704 = vsub.f32 %v1656, %v1686
        %v1705 = vsub.f32 %v1659, %v1689
        %v1706 = vsub.f32 %v1664, %v1692
        %v1707 = vsub.f32 %v1667, %v1695
        %v1708 = vsub.f32 %v1672, %v1698
        %v1709 = vsub.f32 %v1675, %v1701
        %v1710 = vmul.f32 %v1702, 1.442695
        %v1711 = vpow.pop %v1710
        %v1712 = vmul.f32 %v1703, 1.442695
        %v1713 = vpow.pop %v1712
        %v1714 = vmul.f32 %v1704, 1.442695
        %v1715 = vpow.pop %v1714
        %v1716 = vmul.f32 %v1705, 1.442695
        %v1717 = vpow.pop %v1716
        %v1718 = vmul.f32 %v1706, 1.442695
        %v1719 = vpow.pop %v1718
        %v1720 = vmul.f32 %v1707, 1.442695
        %v1721 = vpow.pop %v1720
        %v1722 = vmul.f32 %v1708, 1.442695
        %v1723 = vpow.pop %v1722
        %v1724 = vmul.f32 %v1709, 1.442695
        %v1725 = vpow.pop %v1724
        %v1726 = vsel %vm1306, %v1711, 0.0
        %1727 = vadd.xlane.f32.xlu0 %v1726
        %v1728 = vpop.xlane.xlu0 %1727
        %v1729 = vsel %vm1306, %v1713, 0.0
        %1730 = vadd.xlane.f32.xlu0 %v1729
        %v1731 = vpop.xlane.xlu0 %1730
        %v1732 = vsel %vm1306, %v1715, 0.0
        %1733 = vadd.xlane.f32.xlu0 %v1732
        %v1734 = vpop.xlane.xlu0 %1733
        %v1735 = vsel %vm1306, %v1717, 0.0
        %1736 = vadd.xlane.f32.xlu0 %v1735
        %v1737 = vpop.xlane.xlu0 %1736
        %v1738 = vsel %vm1306, %v1719, 0.0
        %1739 = vadd.xlane.f32.xlu0 %v1738
        %v1740 = vpop.xlane.xlu0 %1739
        %v1741 = vsel %vm1306, %v1721, 0.0
        %1742 = vadd.xlane.f32.xlu0 %v1741
        %v1743 = vpop.xlane.xlu0 %1742
        %v1744 = vsel %vm1306, %v1723, 0.0
        %1745 = vadd.xlane.f32.xlu0 %v1744
        %v1746 = vpop.xlane.xlu0 %1745
        %v1747 = vsel %vm1306, %v1725, 0.0
        %1748 = vadd.xlane.f32.xlu0 %v1747
        %v1749 = vpop.xlane.xlu0 %1748
        %v1750 = vrcp.pop %v1728
        %v1751 = vrcp.pop %v1731
        %v1752 = vrcp.pop %v1734
        %v1753 = vrcp.pop %v1737
        %v1754 = vrcp.pop %v1740
        %v1755 = vrcp.pop %v1743
        %v1756 = vrcp.pop %v1746
        %v1757 = vrcp.pop %v1749
        %v1758 = vmul.f32 %v1711, %v1750
        %v1759 = vmul.f32 %v1713, %v1751
        %v1760 = vmul.f32 %v1715, %v1752
        %v1761 = vmul.f32 %v1717, %v1753
        %v1762 = vmul.f32 %v1719, %v1754
        %v1763 = vmul.f32 %v1721, %v1755
        %v1764 = vmul.f32 %v1723, %v1756
        %v1765 = vmul.f32 %v1725, %v1757
        %v1766 = vpack.c.bf16 %v1759, %v1758
        %v1767 = vpack.c.bf16 %v1761, %v1760
        %v1768 = vpack.c.bf16 %v1763, %v1762
        %v1769 = vpack.c.bf16 %v1765, %v1764
        %1774 = vrot.lane.b32.xlu0 %v1266, 64
        %v1775 = vpop.permute.xlu0 %1774
        %1776 = vrot.lane.b32.xlu0 %v1278, 64
        %v1777 = vpop.permute.xlu0 %1776
        %1778 = vrot.lane.b32.xlu0 %v1290, 64
        %v1779 = vpop.permute.xlu0 %1778
        %1780 = vrot.lane.b32.xlu0 %v1302, 64
        %v1781 = vpop.permute.xlu0 %1780
        %v1787 = vsel %vm1306, %v1766, 0
        %v1790 = vsel %vm1306, %v1767, 0
        %v1793 = vsel %vm1306, %v1768, 0
        %v1796 = vsel %vm1306, %v1769, 0
        %1798 = vmatprep.subr.bf16.mxu0 0
        %1799 = vmatpush1.bf16.msra.mxu0 %v1775
        %1800 = vmatprep.subr.bf16.mxu0 0
        %1801 = vmatpush1.bf16.msra.mxu0 %v1777
        %1802 = vmatprep.subr.bf16.mxu0 0
        %1803 = vmatpush1.bf16.msra.mxu0 %v1779
        %1804 = vmatprep.subr.bf16.mxu0 0
        %1805 = vmatpush1.bf16.msra.mxu0 %v1781
        %1806 = vmatprep.subr.bf16.mxu0 0
        %1807 = vmatpush1.bf16.msra.mxu0 0
        %1808 = vmatprep.subr.bf16.mxu0 0
        %1809 = vmatpush1.bf16.msra.mxu0 0
        %1810 = vmatprep.subr.bf16.mxu0 0
        %1811 = vmatpush1.bf16.msra.mxu0 0
        %1812 = vmatprep.subr.bf16.mxu0 0
        %1813 = vmatpush1.bf16.msra.mxu0 0
        %1814 = vmatprep.subr.bf16.mxu0 0
        %1815 = vmatpush1.bf16.msra.mxu0 0
        %1816 = vmatprep.subr.bf16.mxu0 0
        %1817 = vmatpush1.bf16.msra.mxu0 0
        %1818 = vmatprep.subr.bf16.mxu0 0
        %1819 = vmatpush1.bf16.msra.mxu0 0
        %1820 = vmatprep.subr.bf16.mxu0 0
        %1821 = vmatpush1.bf16.msra.mxu0 0
        %1822 = vmatprep.subr.bf16.mxu0 0
        %1823 = vmatpush1.bf16.msra.mxu0 0
        %1824 = vmatprep.subr.bf16.mxu0 0
        %1825 = vmatpush1.bf16.msra.mxu0 0
        %1826 = vmatprep.subr.bf16.mxu0 0
        %1827 = vmatpush1.bf16.msra.mxu0 0
        %1828 = vmatprep.subr.bf16.mxu0 0
        %1829 = vmatpush1.bf16.msra.mxu0 0
        %1830 = vmatprep.mubr.bf16.mxu0 0
        %1831 = vmatmul.mubr.bf16.gmra.mrb[0].mxu0 %v1787
        %v1832 = vpop.f32.mrb[0].mxu0
        %v1833 = vadd.f32 0.0, %v1832
        %v1834 = vpop.f32.mrb[0].mxu0
        %v1835 = vpop.f32.mrb[0].mxu0
        %v1836 = vadd.f32 0.0, %v1835
        %v1837 = vpop.f32.mrb[0].mxu0
        %1838 = vmatprep.mubr.bf16.mxu0 0
        %1839 = vmatmul.mubr.bf16.gmra.mrb[0].mxu0 %v1790
        %v1840 = vpop.f32.mrb[0].mxu0
        %v1841 = vadd.f32 0.0, %v1840
        %v1842 = vpop.f32.mrb[0].mxu0
        %v1843 = vpop.f32.mrb[0].mxu0
        %v1844 = vadd.f32 0.0, %v1843
        %v1845 = vpop.f32.mrb[0].mxu0
        %1846 = vmatprep.mubr.bf16.mxu0 0
        %1847 = vmatmul.mubr.bf16.gmra.mrb[0].mxu0 %v1793
        %v1848 = vpop.f32.mrb[0].mxu0
        %v1849 = vadd.f32 0.0, %v1848
        %v1850 = vpop.f32.mrb[0].mxu0
        %v1851 = vpop.f32.mrb[0].mxu0
        %v1852 = vadd.f32 0.0, %v1851
        %v1853 = vpop.f32.mrb[0].mxu0
        %1854 = vmatprep.mubr.bf16.mxu0 0
        %1855 = vmatmul.mubr.bf16.gmra.mrb[0].mxu0 %v1796
        %v1856 = vpop.f32.mrb[0].mxu0
        %v1857 = vadd.f32 0.0, %v1856
        %v1858 = vpop.f32.mrb[0].mxu0
        %v1859 = vpop.f32.mrb[0].mxu0
        %v1860 = vadd.f32 0.0, %v1859
        %v1861 = vpop.f32.mrb[0].mxu0
        %1862 = vdwg.mxu0
        %v1864 = vsel %vm1306, %v1259, 0
        %v1867 = vsel %vm1306, %v1271, 0
        %v1870 = vsel %vm1306, %v1283, 0
        %v1873 = vsel %vm1306, %v1295, 0
        %v1876 = vsel %vm1306, %v1263, 0
        %v1879 = vsel %vm1306, %v1275, 0
        %v1882 = vsel %vm1306, %v1287, 0
        %v1885 = vsel %vm1306, %v1299, 0
        %1887 = vmatprep.subr.bf16.mxu0 0
        %1888 = vmatpush1.bf16.xpose.msra.mxu0 %v1876
        %1889 = vmatprep.subr.bf16.mxu0 0
        %1890 = vmatpush1.bf16.xpose.msra.mxu0 %v1879
        %1891 = vmatprep.subr.bf16.mxu0 0
        %1892 = vmatpush1.bf16.xpose.msra.mxu0 %v1882
        %1893 = vmatprep.subr.bf16.mxu0 0
        %1894 = vmatpush1.bf16.xpose.msra.mxu0 %v1885
        %1895 = vmatprep.subr.bf16.mxu0 0
        %1896 = vmatpush1.bf16.xpose.msra.mxu0 0
        %1897 = vmatprep.subr.bf16.mxu0 0
        %1898 = vmatpush1.bf16.xpose.msra.mxu0 0
        %1899 = vmatprep.subr.bf16.mxu0 0
        %1900 = vmatpush1.bf16.xpose.msra.mxu0 0
        %1901 = vmatprep.subr.bf16.mxu0 0
        %1902 = vmatpush1.bf16.xpose.msra.mxu0 0
        %1903 = vmatprep.subr.bf16.mxu0 0
        %1904 = vmatpush1.bf16.xpose.msra.mxu0 0
        %1905 = vmatprep.subr.bf16.mxu0 0
        %1906 = vmatpush1.bf16.xpose.msra.mxu0 0
        %1907 = vmatprep.subr.bf16.mxu0 0
        %1908 = vmatpush1.bf16.xpose.msra.mxu0 0
        %1909 = vmatprep.subr.bf16.mxu0 0
        %1910 = vmatpush1.bf16.xpose.msra.mxu0 0
        %1911 = vmatprep.subr.bf16.mxu0 0
        %1912 = vmatpush1.bf16.xpose.msra.mxu0 0
        %1913 = vmatprep.subr.bf16.mxu0 0
        %1914 = vmatpush1.bf16.xpose.msra.mxu0 0
        %1915 = vmatprep.subr.bf16.mxu0 0
        %1916 = vmatpush1.bf16.xpose.msra.mxu0 0
        %1917 = vmatprep.subr.bf16.mxu0 0
        %1918 = vmatpush1.bf16.xpose.msra.mxu0 0
        %1919 = vmatprep.mubr.bf16.mxu0 0
        %1920 = vmatmul.mubr.bf16.gmra.mrb[0].mxu0 %v1864
        %v1921 = vpop.f32.mrb[0].mxu0
        %v1922 = vadd.f32 0.0, %v1921
        %v1923 = vpop.f32.mrb[0].mxu0
        %v1924 = vpop.f32.mrb[0].mxu0
        %v1925 = vadd.f32 0.0, %v1924
        %v1926 = vpop.f32.mrb[0].mxu0
        %1927 = vmatprep.mubr.bf16.mxu0 0
        %1928 = vmatmul.mubr.bf16.gmra.mrb[0].mxu0 %v1867
        %v1929 = vpop.f32.mrb[0].mxu0
        %v1930 = vadd.f32 0.0, %v1929
        %v1931 = vpop.f32.mrb[0].mxu0
        %v1932 = vpop.f32.mrb[0].mxu0
        %v1933 = vadd.f32 0.0, %v1932
        %v1934 = vpop.f32.mrb[0].mxu0
        %1935 = vmatprep.mubr.bf16.mxu0 0
        %1936 = vmatmul.mubr.bf16.gmra.mrb[0].mxu0 %v1870
        %v1937 = vpop.f32.mrb[0].mxu0
        %v1938 = vadd.f32 0.0, %v1937
        %v1939 = vpop.f32.mrb[0].mxu0
        %v1940 = vpop.f32.mrb[0].mxu0
        %v1941 = vadd.f32 0.0, %v1940
        %v1942 = vpop.f32.mrb[0].mxu0
        %1943 = vmatprep.mubr.bf16.mxu0 0
        %1944 = vmatmul.mubr.bf16.gmra.mrb[0].mxu0 %v1873
        %v1945 = vpop.f32.mrb[0].mxu0
        %v1946 = vadd.f32 0.0, %v1945
        %v1947 = vpop.f32.mrb[0].mxu0
        %v1948 = vpop.f32.mrb[0].mxu0
        %v1949 = vadd.f32 0.0, %v1948
        %v1950 = vpop.f32.mrb[0].mxu0
        %1951 = vdwg.mxu0
        %v1952 = vsel %vm1306, %v1922, -inf
        %1953 = vmax.xlane.f32.xlu0 %v1952
        %v1954 = vpop.xlane.xlu0 %1953
        %v1955 = vsel %vm1306, %v1925, -inf
        %1956 = vmax.xlane.f32.xlu0 %v1955
        %v1957 = vpop.xlane.xlu0 %1956
        %v1958 = vsel %vm1306, %v1930, -inf
        %1959 = vmax.xlane.f32.xlu0 %v1958
        %v1960 = vpop.xlane.xlu0 %1959
        %v1961 = vsel %vm1306, %v1933, -inf
        %1962 = vmax.xlane.f32.xlu0 %v1961
        %v1963 = vpop.xlane.xlu0 %1962
        %v1964 = vsel %vm1306, %v1938, -inf
        %1965 = vmax.xlane.f32.xlu0 %v1964
        %v1966 = vpop.xlane.xlu0 %1965
        %v1967 = vsel %vm1306, %v1941, -inf
        %1968 = vmax.xlane.f32.xlu0 %v1967
        %v1969 = vpop.xlane.xlu0 %1968
        %v1970 = vsel %vm1306, %v1946, -inf
        %1971 = vmax.xlane.f32.xlu0 %v1970
        %v1972 = vpop.xlane.xlu0 %1971
        %v1973 = vsel %vm1306, %v1949, -inf
        %1974 = vmax.xlane.f32.xlu0 %v1973
        %v1975 = vpop.xlane.xlu0 %1974
        %v1976 = vsub.f32 %v1922, %v1954
        %v1977 = vsub.f32 %v1925, %v1957
        %v1978 = vsub.f32 %v1930, %v1960
        %v1979 = vsub.f32 %v1933, %v1963
        %v1980 = vsub.f32 %v1938, %v1966
        %v1981 = vsub.f32 %v1941, %v1969
        %v1982 = vsub.f32 %v1946, %v1972
        %v1983 = vsub.f32 %v1949, %v1975
        %v1984 = vmul.f32 %v1976, 1.442695
        %v1985 = vpow.pop %v1984
        %v1986 = vmul.f32 %v1977, 1.442695
        %v1987 = vpow.pop %v1986
        %v1988 = vmul.f32 %v1978, 1.442695
        %v1989 = vpow.pop %v1988
        %v1990 = vmul.f32 %v1979, 1.442695
        %v1991 = vpow.pop %v1990
        %v1992 = vmul.f32 %v1980, 1.442695
        %v1993 = vpow.pop %v1992
        %v1994 = vmul.f32 %v1981, 1.442695
        %v1995 = vpow.pop %v1994
        %v1996 = vmul.f32 %v1982, 1.442695
        %v1997 = vpow.pop %v1996
        %v1998 = vmul.f32 %v1983, 1.442695
        %v1999 = vpow.pop %v1998
        %v2000 = vsel %vm1306, %v1985, 0.0
        %2001 = vadd.xlane.f32.xlu0 %v2000
        %v2002 = vpop.xlane.xlu0 %2001
        %v2003 = vsel %vm1306, %v1987, 0.0
        %2004 = vadd.xlane.f32.xlu0 %v2003
        %v2005 = vpop.xlane.xlu0 %2004
        %v2006 = vsel %vm1306, %v1989, 0.0
        %2007 = vadd.xlane.f32.xlu0 %v2006
        %v2008 = vpop.xlane.xlu0 %2007
        %v2009 = vsel %vm1306, %v1991, 0.0
        %2010 = vadd.xlane.f32.xlu0 %v2009
        %v2011 = vpop.xlane.xlu0 %2010
        %v2012 = vsel %vm1306, %v1993, 0.0
        %2013 = vadd.xlane.f32.xlu0 %v2012
        %v2014 = vpop.xlane.xlu0 %2013
        %v2015 = vsel %vm1306, %v1995, 0.0
        %2016 = vadd.xlane.f32.xlu0 %v2015
        %v2017 = vpop.xlane.xlu0 %2016
        %v2018 = vsel %vm1306, %v1997, 0.0
        %2019 = vadd.xlane.f32.xlu0 %v2018
        %v2020 = vpop.xlane.xlu0 %2019
        %v2021 = vsel %vm1306, %v1999, 0.0
        %2022 = vadd.xlane.f32.xlu0 %v2021
        %v2023 = vpop.xlane.xlu0 %2022
        %v2024 = vrcp.pop %v2002
        %v2025 = vrcp.pop %v2005
        %v2026 = vrcp.pop %v2008
        %v2027 = vrcp.pop %v2011
        %v2028 = vrcp.pop %v2014
        %v2029 = vrcp.pop %v2017
        %v2030 = vrcp.pop %v2020
        %v2031 = vrcp.pop %v2023
        %v2032 = vmul.f32 %v1985, %v2024
        %v2033 = vmul.f32 %v1987, %v2025
        %v2034 = vmul.f32 %v1989, %v2026
        %v2035 = vmul.f32 %v1991, %v2027
        %v2036 = vmul.f32 %v1993, %v2028
        %v2037 = vmul.f32 %v1995, %v2029
        %v2038 = vmul.f32 %v1997, %v2030
        %v2039 = vmul.f32 %v1999, %v2031
        %v2040 = vpack.c.bf16 %v2033, %v2032
        %v2041 = vpack.c.bf16 %v2035, %v2034
        %v2042 = vpack.c.bf16 %v2037, %v2036
        %v2043 = vpack.c.bf16 %v2039, %v2038
        %v2045 = vsel %vm1306, %v2040, 0
        %v2048 = vsel %vm1306, %v2041, 0
        %v2051 = vsel %vm1306, %v2042, 0
        %v2054 = vsel %vm1306, %v2043, 0
        %2056 = vmatprep.subr.bf16.mxu0 0
        %2057 = vmatpush1.bf16.msra.mxu0 %v1267
        %2058 = vmatprep.subr.bf16.mxu0 0
        %2059 = vmatpush1.bf16.msra.mxu0 %v1279
        %2060 = vmatprep.subr.bf16.mxu0 0
        %2061 = vmatpush1.bf16.msra.mxu0 %v1291
        %2062 = vmatprep.subr.bf16.mxu0 0
        %2063 = vmatpush1.bf16.msra.mxu0 %v1303
        %2064 = vmatprep.subr.bf16.mxu0 0
        %2065 = vmatpush1.bf16.msra.mxu0 0
        %2066 = vmatprep.subr.bf16.mxu0 0
        %2067 = vmatpush1.bf16.msra.mxu0 0
        %2068 = vmatprep.subr.bf16.mxu0 0
        %2069 = vmatpush1.bf16.msra.mxu0 0
        %2070 = vmatprep.subr.bf16.mxu0 0
        %2071 = vmatpush1.bf16.msra.mxu0 0
        %2072 = vmatprep.subr.bf16.mxu0 0
        %2073 = vmatpush1.bf16.msra.mxu0 0
        %2074 = vmatprep.subr.bf16.mxu0 0
        %2075 = vmatpush1.bf16.msra.mxu0 0
        %2076 = vmatprep.subr.bf16.mxu0 0
        %2077 = vmatpush1.bf16.msra.mxu0 0
        %2078 = vmatprep.subr.bf16.mxu0 0
        %2079 = vmatpush1.bf16.msra.mxu0 0
        %2080 = vmatprep.subr.bf16.mxu0 0
        %2081 = vmatpush1.bf16.msra.mxu0 0
        %2082 = vmatprep.subr.bf16.mxu0 0
        %2083 = vmatpush1.bf16.msra.mxu0 0
        %2084 = vmatprep.subr.bf16.mxu0 0
        %2085 = vmatpush1.bf16.msra.mxu0 0
        %2086 = vmatprep.subr.bf16.mxu0 0
        %2087 = vmatpush1.bf16.msra.mxu0 0
        %2088 = vmatprep.mubr.bf16.mxu0 0
        %2089 = vmatmul.mubr.bf16.gmra.mrb[0].mxu0 %v2045
        %v2090 = vpop.f32.mrb[0].mxu0
        %v2091 = vadd.f32 0.0, %v2090
        %v2092 = vpop.f32.mrb[0].mxu0
        %v2093 = vpop.f32.mrb[0].mxu0
        %v2094 = vadd.f32 0.0, %v2093
        %v2095 = vpop.f32.mrb[0].mxu0
        %2096 = vmatprep.mubr.bf16.mxu0 0
        %2097 = vmatmul.mubr.bf16.gmra.mrb[0].mxu0 %v2048
        %v2098 = vpop.f32.mrb[0].mxu0
        %v2099 = vadd.f32 0.0, %v2098
        %v2100 = vpop.f32.mrb[0].mxu0
        %v2101 = vpop.f32.mrb[0].mxu0
        %v2102 = vadd.f32 0.0, %v2101
        %v2103 = vpop.f32.mrb[0].mxu0
        %2104 = vmatprep.mubr.bf16.mxu0 0
        %2105 = vmatmul.mubr.bf16.gmra.mrb[0].mxu0 %v2051
        %v2106 = vpop.f32.mrb[0].mxu0
        %v2107 = vadd.f32 0.0, %v2106
        %v2108 = vpop.f32.mrb[0].mxu0
        %v2109 = vpop.f32.mrb[0].mxu0
        %v2110 = vadd.f32 0.0, %v2109
        %v2111 = vpop.f32.mrb[0].mxu0
        %2112 = vmatprep.mubr.bf16.mxu0 0
        %2113 = vmatmul.mubr.bf16.gmra.mrb[0].mxu0 %v2054
        %v2114 = vpop.f32.mrb[0].mxu0
        %v2115 = vadd.f32 0.0, %v2114
        %v2116 = vpop.f32.mrb[0].mxu0
        %v2117 = vpop.f32.mrb[0].mxu0
        %v2118 = vadd.f32 0.0, %v2117
        %v2119 = vpop.f32.mrb[0].mxu0
        %2120 = vdwg.mxu0
        %2125 = vrot.lane.b32.xlu0 %v1259, 64
        %v2126 = vpop.permute.xlu0 %2125
        %2127 = vrot.lane.b32.xlu0 %v1271, 64
        %v2128 = vpop.permute.xlu0 %2127
        %2129 = vrot.lane.b32.xlu0 %v1283, 64
        %v2130 = vpop.permute.xlu0 %2129
        %2131 = vrot.lane.b32.xlu0 %v1295, 64
        %v2132 = vpop.permute.xlu0 %2131
        %2137 = vrot.lane.b32.xlu0 %v1263, 64
        %v2138 = vpop.permute.xlu0 %2137
        %2139 = vrot.lane.b32.xlu0 %v1275, 64
        %v2140 = vpop.permute.xlu0 %2139
        %2141 = vrot.lane.b32.xlu0 %v1287, 64
        %v2142 = vpop.permute.xlu0 %2141
        %2143 = vrot.lane.b32.xlu0 %v1299, 64
        %v2144 = vpop.permute.xlu0 %2143
        %v2146 = vsel %vm1306, %v2126, 0
        %v2149 = vsel %vm1306, %v2128, 0
        %v2152 = vsel %vm1306, %v2130, 0
        %v2155 = vsel %vm1306, %v2132, 0
        %v2158 = vsel %vm1306, %v2138, 0
        %v2161 = vsel %vm1306, %v2140, 0
        %v2164 = vsel %vm1306, %v2142, 0
        %v2167 = vsel %vm1306, %v2144, 0
        %2169 = vmatprep.subr.bf16.mxu0 0
        %2170 = vmatpush1.bf16.xpose.msra.mxu0 %v2158
        %2171 = vmatprep.subr.bf16.mxu0 0
        %2172 = vmatpush1.bf16.xpose.msra.mxu0 %v2161
        %2173 = vmatprep.subr.bf16.mxu0 0
        %2174 = vmatpush1.bf16.xpose.msra.mxu0 %v2164
        %2175 = vmatprep.subr.bf16.mxu0 0
        %2176 = vmatpush1.bf16.xpose.msra.mxu0 %v2167
        %2177 = vmatprep.subr.bf16.mxu0 0
        %2178 = vmatpush1.bf16.xpose.msra.mxu0 0
        %2179 = vmatprep.subr.bf16.mxu0 0
        %2180 = vmatpush1.bf16.xpose.msra.mxu0 0
        %2181 = vmatprep.subr.bf16.mxu0 0
        %2182 = vmatpush1.bf16.xpose.msra.mxu0 0
        %2183 = vmatprep.subr.bf16.mxu0 0
        %2184 = vmatpush1.bf16.xpose.msra.mxu0 0
        %2185 = vmatprep.subr.bf16.mxu0 0
        %2186 = vmatpush1.bf16.xpose.msra.mxu0 0
        %2187 = vmatprep.subr.bf16.mxu0 0
        %2188 = vmatpush1.bf16.xpose.msra.mxu0 0
        %2189 = vmatprep.subr.bf16.mxu0 0
        %2190 = vmatpush1.bf16.xpose.msra.mxu0 0
        %2191 = vmatprep.subr.bf16.mxu0 0
        %2192 = vmatpush1.bf16.xpose.msra.mxu0 0
        %2193 = vmatprep.subr.bf16.mxu0 0
        %2194 = vmatpush1.bf16.xpose.msra.mxu0 0
        %2195 = vmatprep.subr.bf16.mxu0 0
        %2196 = vmatpush1.bf16.xpose.msra.mxu0 0
        %2197 = vmatprep.subr.bf16.mxu0 0
        %2198 = vmatpush1.bf16.xpose.msra.mxu0 0
        %2199 = vmatprep.subr.bf16.mxu0 0
        %2200 = vmatpush1.bf16.xpose.msra.mxu0 0
        %2201 = vmatprep.mubr.bf16.mxu0 0
        %2202 = vmatmul.mubr.bf16.gmra.mrb[0].mxu0 %v2146
        %v2203 = vpop.f32.mrb[0].mxu0
        %v2204 = vadd.f32 0.0, %v2203
        %v2205 = vpop.f32.mrb[0].mxu0
        %v2206 = vpop.f32.mrb[0].mxu0
        %v2207 = vadd.f32 0.0, %v2206
        %v2208 = vpop.f32.mrb[0].mxu0
        %2209 = vmatprep.mubr.bf16.mxu0 0
        %2210 = vmatmul.mubr.bf16.gmra.mrb[0].mxu0 %v2149
        %v2211 = vpop.f32.mrb[0].mxu0
        %v2212 = vadd.f32 0.0, %v2211
        %v2213 = vpop.f32.mrb[0].mxu0
        %v2214 = vpop.f32.mrb[0].mxu0
        %v2215 = vadd.f32 0.0, %v2214
        %v2216 = vpop.f32.mrb[0].mxu0
        %2217 = vmatprep.mubr.bf16.mxu0 0
        %2218 = vmatmul.mubr.bf16.gmra.mrb[0].mxu0 %v2152
        %v2219 = vpop.f32.mrb[0].mxu0
        %v2220 = vadd.f32 0.0, %v2219
        %v2221 = vpop.f32.mrb[0].mxu0
        %v2222 = vpop.f32.mrb[0].mxu0
        %v2223 = vadd.f32 0.0, %v2222
        %v2224 = vpop.f32.mrb[0].mxu0
        %2225 = vmatprep.mubr.bf16.mxu0 0
        %2226 = vmatmul.mubr.bf16.gmra.mrb[0].mxu0 %v2155
        %v2227 = vpop.f32.mrb[0].mxu0
        %v2228 = vadd.f32 0.0, %v2227
        %v2229 = vpop.f32.mrb[0].mxu0
        %v2230 = vpop.f32.mrb[0].mxu0
        %v2231 = vadd.f32 0.0, %v2230
        %v2232 = vpop.f32.mrb[0].mxu0
        %2233 = vdwg.mxu0
        %v2234 = vsel %vm1306, %v2204, -inf
        %2235 = vmax.xlane.f32.xlu0 %v2234
        %v2236 = vpop.xlane.xlu0 %2235
        %v2237 = vsel %vm1306, %v2207, -inf
        %2238 = vmax.xlane.f32.xlu0 %v2237
        %v2239 = vpop.xlane.xlu0 %2238
        %v2240 = vsel %vm1306, %v2212, -inf
        %2241 = vmax.xlane.f32.xlu0 %v2240
        %v2242 = vpop.xlane.xlu0 %2241
        %v2243 = vsel %vm1306, %v2215, -inf
        %2244 = vmax.xlane.f32.xlu0 %v2243
        %v2245 = vpop.xlane.xlu0 %2244
        %v2246 = vsel %vm1306, %v2220, -inf
        %2247 = vmax.xlane.f32.xlu0 %v2246
        %v2248 = vpop.xlane.xlu0 %2247
        %v2249 = vsel %vm1306, %v2223, -inf
        %2250 = vmax.xlane.f32.xlu0 %v2249
        %v2251 = vpop.xlane.xlu0 %2250
        %v2252 = vsel %vm1306, %v2228, -inf
        %2253 = vmax.xlane.f32.xlu0 %v2252
        %v2254 = vpop.xlane.xlu0 %2253
        %v2255 = vsel %vm1306, %v2231, -inf
        %2256 = vmax.xlane.f32.xlu0 %v2255
        %v2257 = vpop.xlane.xlu0 %2256
        %v2258 = vsub.f32 %v2204, %v2236
        %v2259 = vsub.f32 %v2207, %v2239
        %v2260 = vsub.f32 %v2212, %v2242
        %v2261 = vsub.f32 %v2215, %v2245
        %v2262 = vsub.f32 %v2220, %v2248
        %v2263 = vsub.f32 %v2223, %v2251
        %v2264 = vsub.f32 %v2228, %v2254
        %v2265 = vsub.f32 %v2231, %v2257
        %v2266 = vmul.f32 %v2258, 1.442695
        %v2267 = vpow.pop %v2266
        %v2268 = vmul.f32 %v2259, 1.442695
        %v2269 = vpow.pop %v2268
        %v2270 = vmul.f32 %v2260, 1.442695
        %v2271 = vpow.pop %v2270
        %v2272 = vmul.f32 %v2261, 1.442695
        %v2273 = vpow.pop %v2272
        %v2274 = vmul.f32 %v2262, 1.442695
        %v2275 = vpow.pop %v2274
        %v2276 = vmul.f32 %v2263, 1.442695
        %v2277 = vpow.pop %v2276
        %v2278 = vmul.f32 %v2264, 1.442695
        %v2279 = vpow.pop %v2278
        %v2280 = vmul.f32 %v2265, 1.442695
        %v2281 = vpow.pop %v2280
        %v2282 = vsel %vm1306, %v2267, 0.0
        %2283 = vadd.xlane.f32.xlu0 %v2282
        %v2284 = vpop.xlane.xlu0 %2283
        %v2285 = vsel %vm1306, %v2269, 0.0
        %2286 = vadd.xlane.f32.xlu0 %v2285
        %v2287 = vpop.xlane.xlu0 %2286
        %v2288 = vsel %vm1306, %v2271, 0.0
        %2289 = vadd.xlane.f32.xlu0 %v2288
        %v2290 = vpop.xlane.xlu0 %2289
        %v2291 = vsel %vm1306, %v2273, 0.0
        %2292 = vadd.xlane.f32.xlu0 %v2291
        %v2293 = vpop.xlane.xlu0 %2292
        %v2294 = vsel %vm1306, %v2275, 0.0
        %2295 = vadd.xlane.f32.xlu0 %v2294
        %v2296 = vpop.xlane.xlu0 %2295
        %v2297 = vsel %vm1306, %v2277, 0.0
        %2298 = vadd.xlane.f32.xlu0 %v2297
        %v2299 = vpop.xlane.xlu0 %2298
        %v2300 = vsel %vm1306, %v2279, 0.0
        %2301 = vadd.xlane.f32.xlu0 %v2300
        %v2302 = vpop.xlane.xlu0 %2301
        %v2303 = vsel %vm1306, %v2281, 0.0
        %2304 = vadd.xlane.f32.xlu0 %v2303
        %v2305 = vpop.xlane.xlu0 %2304
        %v2306 = vrcp.pop %v2284
        %v2307 = vrcp.pop %v2287
        %v2308 = vrcp.pop %v2290
        %v2309 = vrcp.pop %v2293
        %v2310 = vrcp.pop %v2296
        %v2311 = vrcp.pop %v2299
        %v2312 = vrcp.pop %v2302
        %v2313 = vrcp.pop %v2305
        %v2314 = vmul.f32 %v2267, %v2306
        %v2315 = vmul.f32 %v2269, %v2307
        %v2316 = vmul.f32 %v2271, %v2308
        %v2317 = vmul.f32 %v2273, %v2309
        %v2318 = vmul.f32 %v2275, %v2310
        %v2319 = vmul.f32 %v2277, %v2311
        %v2320 = vmul.f32 %v2279, %v2312
        %v2321 = vmul.f32 %v2281, %v2313
        %v2322 = vpack.c.bf16 %v2315, %v2314
        %v2323 = vpack.c.bf16 %v2317, %v2316
        %v2324 = vpack.c.bf16 %v2319, %v2318
        %v2325 = vpack.c.bf16 %v2321, %v2320
        %2330 = vrot.lane.b32.xlu0 %v1267, 64
        %v2331 = vpop.permute.xlu0 %2330
        %2332 = vrot.lane.b32.xlu0 %v1279, 64
        %v2333 = vpop.permute.xlu0 %2332
        %2334 = vrot.lane.b32.xlu0 %v1291, 64
        %v2335 = vpop.permute.xlu0 %2334
        %2336 = vrot.lane.b32.xlu0 %v1303, 64
        %v2337 = vpop.permute.xlu0 %2336
        %v2343 = vsel %vm1306, %v2322, 0
        %v2346 = vsel %vm1306, %v2323, 0
        %v2349 = vsel %vm1306, %v2324, 0
        %v2352 = vsel %vm1306, %v2325, 0
        %2354 = vmatprep.subr.bf16.mxu0 0
        %2355 = vmatpush1.bf16.msra.mxu0 %v2331
        %2356 = vmatprep.subr.bf16.mxu0 0
        %2357 = vmatpush1.bf16.msra.mxu0 %v2333
        %2358 = vmatprep.subr.bf16.mxu0 0
        %2359 = vmatpush1.bf16.msra.mxu0 %v2335
        %2360 = vmatprep.subr.bf16.mxu0 0
        %2361 = vmatpush1.bf16.msra.mxu0 %v2337
        %2362 = vmatprep.subr.bf16.mxu0 0
        %2363 = vmatpush1.bf16.msra.mxu0 0
        %2364 = vmatprep.subr.bf16.mxu0 0
        %2365 = vmatpush1.bf16.msra.mxu0 0
        %2366 = vmatprep.subr.bf16.mxu0 0
        %2367 = vmatpush1.bf16.msra.mxu0 0
        %2368 = vmatprep.subr.bf16.mxu0 0
        %2369 = vmatpush1.bf16.msra.mxu0 0
        %2370 = vmatprep.subr.bf16.mxu0 0
        %2371 = vmatpush1.bf16.msra.mxu0 0
        %2372 = vmatprep.subr.bf16.mxu0 0
        %2373 = vmatpush1.bf16.msra.mxu0 0
        %2374 = vmatprep.subr.bf16.mxu0 0
        %2375 = vmatpush1.bf16.msra.mxu0 0
        %2376 = vmatprep.subr.bf16.mxu0 0
        %2377 = vmatpush1.bf16.msra.mxu0 0
        %2378 = vmatprep.subr.bf16.mxu0 0
        %2379 = vmatpush1.bf16.msra.mxu0 0
        %2380 = vmatprep.subr.bf16.mxu0 0
        %2381 = vmatpush1.bf16.msra.mxu0 0
        %2382 = vmatprep.subr.bf16.mxu0 0
        %2383 = vmatpush1.bf16.msra.mxu0 0
        %2384 = vmatprep.subr.bf16.mxu0 0
        %2385 = vmatpush1.bf16.msra.mxu0 0
        %2386 = vmatprep.mubr.bf16.mxu0 0
        %2387 = vmatmul.mubr.bf16.gmra.mrb[0].mxu0 %v2343
        %v2388 = vpop.f32.mrb[0].mxu0
        %v2389 = vadd.f32 0.0, %v2388
        %v2390 = vpop.f32.mrb[0].mxu0
        %v2391 = vpop.f32.mrb[0].mxu0
        %v2392 = vadd.f32 0.0, %v2391
        %v2393 = vpop.f32.mrb[0].mxu0
        %2394 = vmatprep.mubr.bf16.mxu0 0
        %2395 = vmatmul.mubr.bf16.gmra.mrb[0].mxu0 %v2346
        %v2396 = vpop.f32.mrb[0].mxu0
        %v2397 = vadd.f32 0.0, %v2396
        %v2398 = vpop.f32.mrb[0].mxu0
        %v2399 = vpop.f32.mrb[0].mxu0
        %v2400 = vadd.f32 0.0, %v2399
        %v2401 = vpop.f32.mrb[0].mxu0
        %2402 = vmatprep.mubr.bf16.mxu0 0
        %2403 = vmatmul.mubr.bf16.gmra.mrb[0].mxu0 %v2349
        %v2404 = vpop.f32.mrb[0].mxu0
        %v2405 = vadd.f32 0.0, %v2404
        %v2406 = vpop.f32.mrb[0].mxu0
        %v2407 = vpop.f32.mrb[0].mxu0
        %v2408 = vadd.f32 0.0, %v2407
        %v2409 = vpop.f32.mrb[0].mxu0
        %2410 = vmatprep.mubr.bf16.mxu0 0
        %2411 = vmatmul.mubr.bf16.gmra.mrb[0].mxu0 %v2352
        %v2412 = vpop.f32.mrb[0].mxu0
        %v2413 = vadd.f32 0.0, %v2412
        %v2414 = vpop.f32.mrb[0].mxu0
        %v2415 = vpop.f32.mrb[0].mxu0
        %v2416 = vadd.f32 0.0, %v2415
        %v2417 = vpop.f32.mrb[0].mxu0
        %2418 = vdwg.mxu0
        %v2420 = vsel %vm1306, %v1260, 0
        %v2423 = vsel %vm1306, %v1272, 0
        %v2426 = vsel %vm1306, %v1284, 0
        %v2429 = vsel %vm1306, %v1296, 0
        %v2432 = vsel %vm1306, %v1264, 0
        %v2435 = vsel %vm1306, %v1276, 0
        %v2438 = vsel %vm1306, %v1288, 0
        %v2441 = vsel %vm1306, %v1300, 0
        %2443 = vmatprep.subr.bf16.mxu0 0
        %2444 = vmatpush1.bf16.xpose.msra.mxu0 %v2432
        %2445 = vmatprep.subr.bf16.mxu0 0
        %2446 = vmatpush1.bf16.xpose.msra.mxu0 %v2435
        %2447 = vmatprep.subr.bf16.mxu0 0
        %2448 = vmatpush1.bf16.xpose.msra.mxu0 %v2438
        %2449 = vmatprep.subr.bf16.mxu0 0
        %2450 = vmatpush1.bf16.xpose.msra.mxu0 %v2441
        %2451 = vmatprep.subr.bf16.mxu0 0
        %2452 = vmatpush1.bf16.xpose.msra.mxu0 0
        %2453 = vmatprep.subr.bf16.mxu0 0
        %2454 = vmatpush1.bf16.xpose.msra.mxu0 0
        %2455 = vmatprep.subr.bf16.mxu0 0
        %2456 = vmatpush1.bf16.xpose.msra.mxu0 0
        %2457 = vmatprep.subr.bf16.mxu0 0
        %2458 = vmatpush1.bf16.xpose.msra.mxu0 0
        %2459 = vmatprep.subr.bf16.mxu0 0
        %2460 = vmatpush1.bf16.xpose.msra.mxu0 0
        %2461 = vmatprep.subr.bf16.mxu0 0
        %2462 = vmatpush1.bf16.xpose.msra.mxu0 0
        %2463 = vmatprep.subr.bf16.mxu0 0
        %2464 = vmatpush1.bf16.xpose.msra.mxu0 0
        %2465 = vmatprep.subr.bf16.mxu0 0
        %2466 = vmatpush1.bf16.xpose.msra.mxu0 0
        %2467 = vmatprep.subr.bf16.mxu0 0
        %2468 = vmatpush1.bf16.xpose.msra.mxu0 0
        %2469 = vmatprep.subr.bf16.mxu0 0
        %2470 = vmatpush1.bf16.xpose.msra.mxu0 0
        %2471 = vmatprep.subr.bf16.mxu0 0
        %2472 = vmatpush1.bf16.xpose.msra.mxu0 0
        %2473 = vmatprep.subr.bf16.mxu0 0
        %2474 = vmatpush1.bf16.xpose.msra.mxu0 0
        %2475 = vmatprep.mubr.bf16.mxu0 0
        %2476 = vmatmul.mubr.bf16.gmra.mrb[0].mxu0 %v2420
        %v2477 = vpop.f32.mrb[0].mxu0
        %v2478 = vadd.f32 0.0, %v2477
        %v2479 = vpop.f32.mrb[0].mxu0
        %v2480 = vpop.f32.mrb[0].mxu0
        %v2481 = vadd.f32 0.0, %v2480
        %v2482 = vpop.f32.mrb[0].mxu0
        %2483 = vmatprep.mubr.bf16.mxu0 0
        %2484 = vmatmul.mubr.bf16.gmra.mrb[0].mxu0 %v2423
        %v2485 = vpop.f32.mrb[0].mxu0
        %v2486 = vadd.f32 0.0, %v2485
        %v2487 = vpop.f32.mrb[0].mxu0
        %v2488 = vpop.f32.mrb[0].mxu0
        %v2489 = vadd.f32 0.0, %v2488
        %v2490 = vpop.f32.mrb[0].mxu0
        %2491 = vmatprep.mubr.bf16.mxu0 0
        %2492 = vmatmul.mubr.bf16.gmra.mrb[0].mxu0 %v2426
        %v2493 = vpop.f32.mrb[0].mxu0
        %v2494 = vadd.f32 0.0, %v2493
        %v2495 = vpop.f32.mrb[0].mxu0
        %v2496 = vpop.f32.mrb[0].mxu0
        %v2497 = vadd.f32 0.0, %v2496
        %v2498 = vpop.f32.mrb[0].mxu0
        %2499 = vmatprep.mubr.bf16.mxu0 0
        %2500 = vmatmul.mubr.bf16.gmra.mrb[0].mxu0 %v2429
        %v2501 = vpop.f32.mrb[0].mxu0
        %v2502 = vadd.f32 0.0, %v2501
        %v2503 = vpop.f32.mrb[0].mxu0
        %v2504 = vpop.f32.mrb[0].mxu0
        %v2505 = vadd.f32 0.0, %v2504
        %v2506 = vpop.f32.mrb[0].mxu0
        %2507 = vdwg.mxu0
        %v2508 = vsel %vm1306, %v2478, -inf
        %2509 = vmax.xlane.f32.xlu0 %v2508
        %v2510 = vpop.xlane.xlu0 %2509
        %v2511 = vsel %vm1306, %v2481, -inf
        %2512 = vmax.xlane.f32.xlu0 %v2511
        %v2513 = vpop.xlane.xlu0 %2512
        %v2514 = vsel %vm1306, %v2486, -inf
        %2515 = vmax.xlane.f32.xlu0 %v2514
        %v2516 = vpop.xlane.xlu0 %2515
        %v2517 = vsel %vm1306, %v2489, -inf
        %2518 = vmax.xlane.f32.xlu0 %v2517
        %v2519 = vpop.xlane.xlu0 %2518
        %v2520 = vsel %vm1306, %v2494, -inf
        %2521 = vmax.xlane.f32.xlu0 %v2520
        %v2522 = vpop.xlane.xlu0 %2521
        %v2523 = vsel %vm1306, %v2497, -inf
        %2524 = vmax.xlane.f32.xlu0 %v2523
        %v2525 = vpop.xlane.xlu0 %2524
        %v2526 = vsel %vm1306, %v2502, -inf
        %2527 = vmax.xlane.f32.xlu0 %v2526
        %v2528 = vpop.xlane.xlu0 %2527
        %v2529 = vsel %vm1306, %v2505, -inf
        %2530 = vmax.xlane.f32.xlu0 %v2529
        %v2531 = vpop.xlane.xlu0 %2530
        %v2532 = vsub.f32 %v2478, %v2510
        %v2533 = vsub.f32 %v2481, %v2513
        %v2534 = vsub.f32 %v2486, %v2516
        %v2535 = vsub.f32 %v2489, %v2519
        %v2536 = vsub.f32 %v2494, %v2522
        %v2537 = vsub.f32 %v2497, %v2525
        %v2538 = vsub.f32 %v2502, %v2528
        %v2539 = vsub.f32 %v2505, %v2531
        %v2540 = vmul.f32 %v2532, 1.442695
        %v2541 = vpow.pop %v2540
        %v2542 = vmul.f32 %v2533, 1.442695
        %v2543 = vpow.pop %v2542
        %v2544 = vmul.f32 %v2534, 1.442695
        %v2545 = vpow.pop %v2544
        %v2546 = vmul.f32 %v2535, 1.442695
        %v2547 = vpow.pop %v2546
        %v2548 = vmul.f32 %v2536, 1.442695
        %v2549 = vpow.pop %v2548
        %v2550 = vmul.f32 %v2537, 1.442695
        %v2551 = vpow.pop %v2550
        %v2552 = vmul.f32 %v2538, 1.442695
        %v2553 = vpow.pop %v2552
        %v2554 = vmul.f32 %v2539, 1.442695
        %v2555 = vpow.pop %v2554
        %v2556 = vsel %vm1306, %v2541, 0.0
        %2557 = vadd.xlane.f32.xlu0 %v2556
        %v2558 = vpop.xlane.xlu0 %2557
        %v2559 = vsel %vm1306, %v2543, 0.0
        %2560 = vadd.xlane.f32.xlu0 %v2559
        %v2561 = vpop.xlane.xlu0 %2560
        %v2562 = vsel %vm1306, %v2545, 0.0
        %2563 = vadd.xlane.f32.xlu0 %v2562
        %v2564 = vpop.xlane.xlu0 %2563
        %v2565 = vsel %vm1306, %v2547, 0.0
        %2566 = vadd.xlane.f32.xlu0 %v2565
        %v2567 = vpop.xlane.xlu0 %2566
        %v2568 = vsel %vm1306, %v2549, 0.0
        %2569 = vadd.xlane.f32.xlu0 %v2568
        %v2570 = vpop.xlane.xlu0 %2569
        %v2571 = vsel %vm1306, %v2551, 0.0
        %2572 = vadd.xlane.f32.xlu0 %v2571
        %v2573 = vpop.xlane.xlu0 %2572
        %v2574 = vsel %vm1306, %v2553, 0.0
        %2575 = vadd.xlane.f32.xlu0 %v2574
        %v2576 = vpop.xlane.xlu0 %2575
        %v2577 = vsel %vm1306, %v2555, 0.0
        %2578 = vadd.xlane.f32.xlu0 %v2577
        %v2579 = vpop.xlane.xlu0 %2578
        %v2580 = vrcp.pop %v2558
        %v2581 = vrcp.pop %v2561
        %v2582 = vrcp.pop %v2564
        %v2583 = vrcp.pop %v2567
        %v2584 = vrcp.pop %v2570
        %v2585 = vrcp.pop %v2573
        %v2586 = vrcp.pop %v2576
        %v2587 = vrcp.pop %v2579
        %v2588 = vmul.f32 %v2541, %v2580
        %v2589 = vmul.f32 %v2543, %v2581
        %v2590 = vmul.f32 %v2545, %v2582
        %v2591 = vmul.f32 %v2547, %v2583
        %v2592 = vmul.f32 %v2549, %v2584
        %v2593 = vmul.f32 %v2551, %v2585
        %v2594 = vmul.f32 %v2553, %v2586
        %v2595 = vmul.f32 %v2555, %v2587
        %v2596 = vpack.c.bf16 %v2589, %v2588
        %v2597 = vpack.c.bf16 %v2591, %v2590
        %v2598 = vpack.c.bf16 %v2593, %v2592
        %v2599 = vpack.c.bf16 %v2595, %v2594
        %v2601 = vsel %vm1306, %v2596, 0
        %v2604 = vsel %vm1306, %v2597, 0
        %v2607 = vsel %vm1306, %v2598, 0
        %v2610 = vsel %vm1306, %v2599, 0
        %2612 = vmatprep.subr.bf16.mxu0 0
        %2613 = vmatpush1.bf16.msra.mxu0 %v1268
        %2614 = vmatprep.subr.bf16.mxu0 0
        %2615 = vmatpush1.bf16.msra.mxu0 %v1280
        %2616 = vmatprep.subr.bf16.mxu0 0
        %2617 = vmatpush1.bf16.msra.mxu0 %v1292
        %2618 = vmatprep.subr.bf16.mxu0 0
        %2619 = vmatpush1.bf16.msra.mxu0 %v1304
        %2620 = vmatprep.subr.bf16.mxu0 0
        %2621 = vmatpush1.bf16.msra.mxu0 0
        %2622 = vmatprep.subr.bf16.mxu0 0
        %2623 = vmatpush1.bf16.msra.mxu0 0
        %2624 = vmatprep.subr.bf16.mxu0 0
        %2625 = vmatpush1.bf16.msra.mxu0 0
        %2626 = vmatprep.subr.bf16.mxu0 0
        %2627 = vmatpush1.bf16.msra.mxu0 0
        %2628 = vmatprep.subr.bf16.mxu0 0
        %2629 = vmatpush1.bf16.msra.mxu0 0
        %2630 = vmatprep.subr.bf16.mxu0 0
        %2631 = vmatpush1.bf16.msra.mxu0 0
        %2632 = vmatprep.subr.bf16.mxu0 0
        %2633 = vmatpush1.bf16.msra.mxu0 0
        %2634 = vmatprep.subr.bf16.mxu0 0
        %2635 = vmatpush1.bf16.msra.mxu0 0
        %2636 = vmatprep.subr.bf16.mxu0 0
        %2637 = vmatpush1.bf16.msra.mxu0 0
        %2638 = vmatprep.subr.bf16.mxu0 0
        %2639 = vmatpush1.bf16.msra.mxu0 0
        %2640 = vmatprep.subr.bf16.mxu0 0
        %2641 = vmatpush1.bf16.msra.mxu0 0
        %2642 = vmatprep.subr.bf16.mxu0 0
        %2643 = vmatpush1.bf16.msra.mxu0 0
        %2644 = vmatprep.mubr.bf16.mxu0 0
        %2645 = vmatmul.mubr.bf16.gmra.mrb[0].mxu0 %v2601
        %v2646 = vpop.f32.mrb[0].mxu0
        %v2647 = vadd.f32 0.0, %v2646
        %v2648 = vpop.f32.mrb[0].mxu0
        %v2649 = vpop.f32.mrb[0].mxu0
        %v2650 = vadd.f32 0.0, %v2649
        %v2651 = vpop.f32.mrb[0].mxu0
        %2652 = vmatprep.mubr.bf16.mxu0 0
        %2653 = vmatmul.mubr.bf16.gmra.mrb[0].mxu0 %v2604
        %v2654 = vpop.f32.mrb[0].mxu0
        %v2655 = vadd.f32 0.0, %v2654
        %v2656 = vpop.f32.mrb[0].mxu0
        %v2657 = vpop.f32.mrb[0].mxu0
        %v2658 = vadd.f32 0.0, %v2657
        %v2659 = vpop.f32.mrb[0].mxu0
        %2660 = vmatprep.mubr.bf16.mxu0 0
        %2661 = vmatmul.mubr.bf16.gmra.mrb[0].mxu0 %v2607
        %v2662 = vpop.f32.mrb[0].mxu0
        %v2663 = vadd.f32 0.0, %v2662
        %v2664 = vpop.f32.mrb[0].mxu0
        %v2665 = vpop.f32.mrb[0].mxu0
        %v2666 = vadd.f32 0.0, %v2665
        %v2667 = vpop.f32.mrb[0].mxu0
        %2668 = vmatprep.mubr.bf16.mxu0 0
        %2669 = vmatmul.mubr.bf16.gmra.mrb[0].mxu0 %v2610
        %v2670 = vpop.f32.mrb[0].mxu0
        %v2671 = vadd.f32 0.0, %v2670
        %v2672 = vpop.f32.mrb[0].mxu0
        %v2673 = vpop.f32.mrb[0].mxu0
        %v2674 = vadd.f32 0.0, %v2673
        %v2675 = vpop.f32.mrb[0].mxu0
        %2676 = vdwg.mxu0
        %2681 = vrot.lane.b32.xlu0 %v1260, 64
        %v2682 = vpop.permute.xlu0 %2681
        %2683 = vrot.lane.b32.xlu0 %v1272, 64
        %v2684 = vpop.permute.xlu0 %2683
        %2685 = vrot.lane.b32.xlu0 %v1284, 64
        %v2686 = vpop.permute.xlu0 %2685
        %2687 = vrot.lane.b32.xlu0 %v1296, 64
        %v2688 = vpop.permute.xlu0 %2687
        %2693 = vrot.lane.b32.xlu0 %v1264, 64
        %v2694 = vpop.permute.xlu0 %2693
        %2695 = vrot.lane.b32.xlu0 %v1276, 64
        %v2696 = vpop.permute.xlu0 %2695
        %2697 = vrot.lane.b32.xlu0 %v1288, 64
        %v2698 = vpop.permute.xlu0 %2697
        %2699 = vrot.lane.b32.xlu0 %v1300, 64
        %v2700 = vpop.permute.xlu0 %2699
        %v2702 = vsel %vm1306, %v2682, 0
        %v2705 = vsel %vm1306, %v2684, 0
        %v2708 = vsel %vm1306, %v2686, 0
        %v2711 = vsel %vm1306, %v2688, 0
        %v2714 = vsel %vm1306, %v2694, 0
        %v2717 = vsel %vm1306, %v2696, 0
        %v2720 = vsel %vm1306, %v2698, 0
        %v2723 = vsel %vm1306, %v2700, 0
        %2725 = vmatprep.subr.bf16.mxu0 0
        %2726 = vmatpush1.bf16.xpose.msra.mxu0 %v2714
        %2727 = vmatprep.subr.bf16.mxu0 0
        %2728 = vmatpush1.bf16.xpose.msra.mxu0 %v2717
        %2729 = vmatprep.subr.bf16.mxu0 0
        %2730 = vmatpush1.bf16.xpose.msra.mxu0 %v2720
        %2731 = vmatprep.subr.bf16.mxu0 0
        %2732 = vmatpush1.bf16.xpose.msra.mxu0 %v2723
        %2733 = vmatprep.subr.bf16.mxu0 0
        %2734 = vmatpush1.bf16.xpose.msra.mxu0 0
        %2735 = vmatprep.subr.bf16.mxu0 0
        %2736 = vmatpush1.bf16.xpose.msra.mxu0 0
        %2737 = vmatprep.subr.bf16.mxu0 0
        %2738 = vmatpush1.bf16.xpose.msra.mxu0 0
        %2739 = vmatprep.subr.bf16.mxu0 0
        %2740 = vmatpush1.bf16.xpose.msra.mxu0 0
        %2741 = vmatprep.subr.bf16.mxu0 0
        %2742 = vmatpush1.bf16.xpose.msra.mxu0 0
        %2743 = vmatprep.subr.bf16.mxu0 0
        %2744 = vmatpush1.bf16.xpose.msra.mxu0 0
        %2745 = vmatprep.subr.bf16.mxu0 0
        %2746 = vmatpush1.bf16.xpose.msra.mxu0 0
        %2747 = vmatprep.subr.bf16.mxu0 0
        %2748 = vmatpush1.bf16.xpose.msra.mxu0 0
        %2749 = vmatprep.subr.bf16.mxu0 0
        %2750 = vmatpush1.bf16.xpose.msra.mxu0 0
        %2751 = vmatprep.subr.bf16.mxu0 0
        %2752 = vmatpush1.bf16.xpose.msra.mxu0 0
        %2753 = vmatprep.subr.bf16.mxu0 0
        %2754 = vmatpush1.bf16.xpose.msra.mxu0 0
        %2755 = vmatprep.subr.bf16.mxu0 0
        %2756 = vmatpush1.bf16.xpose.msra.mxu0 0
        %2757 = vmatprep.mubr.bf16.mxu0 0
        %2758 = vmatmul.mubr.bf16.gmra.mrb[0].mxu0 %v2702
        %v2759 = vpop.f32.mrb[0].mxu0
        %v2760 = vadd.f32 0.0, %v2759
        %v2761 = vpop.f32.mrb[0].mxu0
        %v2762 = vpop.f32.mrb[0].mxu0
        %v2763 = vadd.f32 0.0, %v2762
        %v2764 = vpop.f32.mrb[0].mxu0
        %2765 = vmatprep.mubr.bf16.mxu0 0
        %2766 = vmatmul.mubr.bf16.gmra.mrb[0].mxu0 %v2705
        %v2767 = vpop.f32.mrb[0].mxu0
        %v2768 = vadd.f32 0.0, %v2767
        %v2769 = vpop.f32.mrb[0].mxu0
        %v2770 = vpop.f32.mrb[0].mxu0
        %v2771 = vadd.f32 0.0, %v2770
        %v2772 = vpop.f32.mrb[0].mxu0
        %2773 = vmatprep.mubr.bf16.mxu0 0
        %2774 = vmatmul.mubr.bf16.gmra.mrb[0].mxu0 %v2708
        %v2775 = vpop.f32.mrb[0].mxu0
        %v2776 = vadd.f32 0.0, %v2775
        %v2777 = vpop.f32.mrb[0].mxu0
        %v2778 = vpop.f32.mrb[0].mxu0
        %v2779 = vadd.f32 0.0, %v2778
        %v2780 = vpop.f32.mrb[0].mxu0
        %2781 = vmatprep.mubr.bf16.mxu0 0
        %2782 = vmatmul.mubr.bf16.gmra.mrb[0].mxu0 %v2711
        %v2783 = vpop.f32.mrb[0].mxu0
        %v2784 = vadd.f32 0.0, %v2783
        %v2785 = vpop.f32.mrb[0].mxu0
        %v2786 = vpop.f32.mrb[0].mxu0
        %v2787 = vadd.f32 0.0, %v2786
        %v2788 = vpop.f32.mrb[0].mxu0
        %2789 = vdwg.mxu0
        %v2790 = vsel %vm1306, %v2760, -inf
        %2791 = vmax.xlane.f32.xlu0 %v2790
        %v2792 = vpop.xlane.xlu0 %2791
        %v2793 = vsel %vm1306, %v2763, -inf
        %2794 = vmax.xlane.f32.xlu0 %v2793
        %v2795 = vpop.xlane.xlu0 %2794
        %v2796 = vsel %vm1306, %v2768, -inf
        %2797 = vmax.xlane.f32.xlu0 %v2796
        %v2798 = vpop.xlane.xlu0 %2797
        %v2799 = vsel %vm1306, %v2771, -inf
        %2800 = vmax.xlane.f32.xlu0 %v2799
        %v2801 = vpop.xlane.xlu0 %2800
        %v2802 = vsel %vm1306, %v2776, -inf
        %2803 = vmax.xlane.f32.xlu0 %v2802
        %v2804 = vpop.xlane.xlu0 %2803
        %v2805 = vsel %vm1306, %v2779, -inf
        %2806 = vmax.xlane.f32.xlu0 %v2805
        %v2807 = vpop.xlane.xlu0 %2806
        %v2808 = vsel %vm1306, %v2784, -inf
        %2809 = vmax.xlane.f32.xlu0 %v2808
        %v2810 = vpop.xlane.xlu0 %2809
        %v2811 = vsel %vm1306, %v2787, -inf
        %2812 = vmax.xlane.f32.xlu0 %v2811
        %v2813 = vpop.xlane.xlu0 %2812
        %v2814 = vsub.f32 %v2760, %v2792
        %v2815 = vsub.f32 %v2763, %v2795
        %v2816 = vsub.f32 %v2768, %v2798
        %v2817 = vsub.f32 %v2771, %v2801
        %v2818 = vsub.f32 %v2776, %v2804
        %v2819 = vsub.f32 %v2779, %v2807
        %v2820 = vsub.f32 %v2784, %v2810
        %v2821 = vsub.f32 %v2787, %v2813
        %v2822 = vmul.f32 %v2814, 1.442695
        %v2823 = vpow.pop %v2822
        %v2824 = vmul.f32 %v2815, 1.442695
        %v2825 = vpow.pop %v2824
        %v2826 = vmul.f32 %v2816, 1.442695
        %v2827 = vpow.pop %v2826
        %v2828 = vmul.f32 %v2817, 1.442695
        %v2829 = vpow.pop %v2828
        %v2830 = vmul.f32 %v2818, 1.442695
        %v2831 = vpow.pop %v2830
        %v2832 = vmul.f32 %v2819, 1.442695
        %v2833 = vpow.pop %v2832
        %v2834 = vmul.f32 %v2820, 1.442695
        %v2835 = vpow.pop %v2834
        %v2836 = vmul.f32 %v2821, 1.442695
        %v2837 = vpow.pop %v2836
        %v2838 = vsel %vm1306, %v2823, 0.0
        %2839 = vadd.xlane.f32.xlu0 %v2838
        %v2840 = vpop.xlane.xlu0 %2839
        %v2841 = vsel %vm1306, %v2825, 0.0
        %2842 = vadd.xlane.f32.xlu0 %v2841
        %v2843 = vpop.xlane.xlu0 %2842
        %v2844 = vsel %vm1306, %v2827, 0.0
        %2845 = vadd.xlane.f32.xlu0 %v2844
        %v2846 = vpop.xlane.xlu0 %2845
        %v2847 = vsel %vm1306, %v2829, 0.0
        %2848 = vadd.xlane.f32.xlu0 %v2847
        %v2849 = vpop.xlane.xlu0 %2848
        %v2850 = vsel %vm1306, %v2831, 0.0
        %2851 = vadd.xlane.f32.xlu0 %v2850
        %v2852 = vpop.xlane.xlu0 %2851
        %v2853 = vsel %vm1306, %v2833, 0.0
        %2854 = vadd.xlane.f32.xlu0 %v2853
        %v2855 = vpop.xlane.xlu0 %2854
        %v2856 = vsel %vm1306, %v2835, 0.0
        %2857 = vadd.xlane.f32.xlu0 %v2856
        %v2858 = vpop.xlane.xlu0 %2857
        %v2859 = vsel %vm1306, %v2837, 0.0
        %2860 = vadd.xlane.f32.xlu0 %v2859
        %v2861 = vpop.xlane.xlu0 %2860
        %v2862 = vrcp.pop %v2840
        %v2863 = vrcp.pop %v2843
        %v2864 = vrcp.pop %v2846
        %v2865 = vrcp.pop %v2849
        %v2866 = vrcp.pop %v2852
        %v2867 = vrcp.pop %v2855
        %v2868 = vrcp.pop %v2858
        %v2869 = vrcp.pop %v2861
        %v2870 = vmul.f32 %v2823, %v2862
        %v2871 = vmul.f32 %v2825, %v2863
        %v2872 = vmul.f32 %v2827, %v2864
        %v2873 = vmul.f32 %v2829, %v2865
        %v2874 = vmul.f32 %v2831, %v2866
        %v2875 = vmul.f32 %v2833, %v2867
        %v2876 = vmul.f32 %v2835, %v2868
        %v2877 = vmul.f32 %v2837, %v2869
        %v2878 = vpack.c.bf16 %v2871, %v2870
        %v2879 = vpack.c.bf16 %v2873, %v2872
        %v2880 = vpack.c.bf16 %v2875, %v2874
        %v2881 = vpack.c.bf16 %v2877, %v2876
        %2886 = vrot.lane.b32.xlu0 %v1268, 64
        %v2887 = vpop.permute.xlu0 %2886
        %2888 = vrot.lane.b32.xlu0 %v1280, 64
        %v2889 = vpop.permute.xlu0 %2888
        %2890 = vrot.lane.b32.xlu0 %v1292, 64
        %v2891 = vpop.permute.xlu0 %2890
        %2892 = vrot.lane.b32.xlu0 %v1304, 64
        %v2893 = vpop.permute.xlu0 %2892
        %v2899 = vsel %vm1306, %v2878, 0
        %v2902 = vsel %vm1306, %v2879, 0
        %v2905 = vsel %vm1306, %v2880, 0
        %v2908 = vsel %vm1306, %v2881, 0
        %2910 = vmatprep.subr.bf16.mxu0 0
        %2911 = vmatpush1.bf16.msra.mxu0 %v2887
        %2912 = vmatprep.subr.bf16.mxu0 0
        %2913 = vmatpush1.bf16.msra.mxu0 %v2889
        %2914 = vmatprep.subr.bf16.mxu0 0
        %2915 = vmatpush1.bf16.msra.mxu0 %v2891
        %2916 = vmatprep.subr.bf16.mxu0 0
        %2917 = vmatpush1.bf16.msra.mxu0 %v2893
        %2918 = vmatprep.subr.bf16.mxu0 0
        %2919 = vmatpush1.bf16.msra.mxu0 0
        %2920 = vmatprep.subr.bf16.mxu0 0
        %2921 = vmatpush1.bf16.msra.mxu0 0
        %2922 = vmatprep.subr.bf16.mxu0 0
        %2923 = vmatpush1.bf16.msra.mxu0 0
        %2924 = vmatprep.subr.bf16.mxu0 0
        %2925 = vmatpush1.bf16.msra.mxu0 0
        %2926 = vmatprep.subr.bf16.mxu0 0
        %2927 = vmatpush1.bf16.msra.mxu0 0
        %2928 = vmatprep.subr.bf16.mxu0 0
        %2929 = vmatpush1.bf16.msra.mxu0 0
        %2930 = vmatprep.subr.bf16.mxu0 0
        %2931 = vmatpush1.bf16.msra.mxu0 0
        %2932 = vmatprep.subr.bf16.mxu0 0
        %2933 = vmatpush1.bf16.msra.mxu0 0
        %2934 = vmatprep.subr.bf16.mxu0 0
        %2935 = vmatpush1.bf16.msra.mxu0 0
        %2936 = vmatprep.subr.bf16.mxu0 0
        %2937 = vmatpush1.bf16.msra.mxu0 0
        %2938 = vmatprep.subr.bf16.mxu0 0
        %2939 = vmatpush1.bf16.msra.mxu0 0
        %2940 = vmatprep.subr.bf16.mxu0 0
        %2941 = vmatpush1.bf16.msra.mxu0 0
        %2942 = vmatprep.mubr.bf16.mxu0 0
        %2943 = vmatmul.mubr.bf16.gmra.mrb[0].mxu0 %v2899
        %v2944 = vpop.f32.mrb[0].mxu0
        %v2945 = vadd.f32 0.0, %v2944
        %v2946 = vpop.f32.mrb[0].mxu0
        %v2947 = vpop.f32.mrb[0].mxu0
        %v2948 = vadd.f32 0.0, %v2947
        %v2949 = vpop.f32.mrb[0].mxu0
        %2950 = vmatprep.mubr.bf16.mxu0 0
        %2951 = vmatmul.mubr.bf16.gmra.mrb[0].mxu0 %v2902
        %v2952 = vpop.f32.mrb[0].mxu0
        %v2953 = vadd.f32 0.0, %v2952
        %v2954 = vpop.f32.mrb[0].mxu0
        %v2955 = vpop.f32.mrb[0].mxu0
        %v2956 = vadd.f32 0.0, %v2955
        %v2957 = vpop.f32.mrb[0].mxu0
        %2958 = vmatprep.mubr.bf16.mxu0 0
        %2959 = vmatmul.mubr.bf16.gmra.mrb[0].mxu0 %v2905
        %v2960 = vpop.f32.mrb[0].mxu0
        %v2961 = vadd.f32 0.0, %v2960
        %v2962 = vpop.f32.mrb[0].mxu0
        %v2963 = vpop.f32.mrb[0].mxu0
        %v2964 = vadd.f32 0.0, %v2963
        %v2965 = vpop.f32.mrb[0].mxu0
        %2966 = vmatprep.mubr.bf16.mxu0 0
        %2967 = vmatmul.mubr.bf16.gmra.mrb[0].mxu0 %v2908
        %v2968 = vpop.f32.mrb[0].mxu0
        %v2969 = vadd.f32 0.0, %v2968
        %v2970 = vpop.f32.mrb[0].mxu0
        %v2971 = vpop.f32.mrb[0].mxu0
        %v2972 = vadd.f32 0.0, %v2971
        %v2973 = vpop.f32.mrb[0].mxu0
        %2974 = vdwg.mxu0
        %v2976 = vsel %vm1306, %v1261, 0
        %v2979 = vsel %vm1306, %v1273, 0
        %v2982 = vsel %vm1306, %v1285, 0
        %v2985 = vsel %vm1306, %v1297, 0
        %v2988 = vsel %vm1306, %v1265, 0
        %v2991 = vsel %vm1306, %v1277, 0
        %v2994 = vsel %vm1306, %v1289, 0
        %v2997 = vsel %vm1306, %v1301, 0
        %2999 = vmatprep.subr.bf16.mxu0 0
        %3000 = vmatpush1.bf16.xpose.msra.mxu0 %v2988
        %3001 = vmatprep.subr.bf16.mxu0 0
        %3002 = vmatpush1.bf16.xpose.msra.mxu0 %v2991
        %3003 = vmatprep.subr.bf16.mxu0 0
        %3004 = vmatpush1.bf16.xpose.msra.mxu0 %v2994
        %3005 = vmatprep.subr.bf16.mxu0 0
        %3006 = vmatpush1.bf16.xpose.msra.mxu0 %v2997
        %3007 = vmatprep.subr.bf16.mxu0 0
        %3008 = vmatpush1.bf16.xpose.msra.mxu0 0
        %3009 = vmatprep.subr.bf16.mxu0 0
        %3010 = vmatpush1.bf16.xpose.msra.mxu0 0
        %3011 = vmatprep.subr.bf16.mxu0 0
        %3012 = vmatpush1.bf16.xpose.msra.mxu0 0
        %3013 = vmatprep.subr.bf16.mxu0 0
        %3014 = vmatpush1.bf16.xpose.msra.mxu0 0
        %3015 = vmatprep.subr.bf16.mxu0 0
        %3016 = vmatpush1.bf16.xpose.msra.mxu0 0
        %3017 = vmatprep.subr.bf16.mxu0 0
        %3018 = vmatpush1.bf16.xpose.msra.mxu0 0
        %3019 = vmatprep.subr.bf16.mxu0 0
        %3020 = vmatpush1.bf16.xpose.msra.mxu0 0
        %3021 = vmatprep.subr.bf16.mxu0 0
        %3022 = vmatpush1.bf16.xpose.msra.mxu0 0
        %3023 = vmatprep.subr.bf16.mxu0 0
        %3024 = vmatpush1.bf16.xpose.msra.mxu0 0
        %3025 = vmatprep.subr.bf16.mxu0 0
        %3026 = vmatpush1.bf16.xpose.msra.mxu0 0
        %3027 = vmatprep.subr.bf16.mxu0 0
        %3028 = vmatpush1.bf16.xpose.msra.mxu0 0
        %3029 = vmatprep.subr.bf16.mxu0 0
        %3030 = vmatpush1.bf16.xpose.msra.mxu0 0
        %3031 = vmatprep.mubr.bf16.mxu0 0
        %3032 = vmatmul.mubr.bf16.gmra.mrb[0].mxu0 %v2976
        %v3033 = vpop.f32.mrb[0].mxu0
        %v3034 = vadd.f32 0.0, %v3033
        %v3035 = vpop.f32.mrb[0].mxu0
        %v3036 = vpop.f32.mrb[0].mxu0
        %v3037 = vadd.f32 0.0, %v3036
        %v3038 = vpop.f32.mrb[0].mxu0
        %3039 = vmatprep.mubr.bf16.mxu0 0
        %3040 = vmatmul.mubr.bf16.gmra.mrb[0].mxu0 %v2979
        %v3041 = vpop.f32.mrb[0].mxu0
        %v3042 = vadd.f32 0.0, %v3041
        %v3043 = vpop.f32.mrb[0].mxu0
        %v3044 = vpop.f32.mrb[0].mxu0
        %v3045 = vadd.f32 0.0, %v3044
        %v3046 = vpop.f32.mrb[0].mxu0
        %3047 = vmatprep.mubr.bf16.mxu0 0
        %3048 = vmatmul.mubr.bf16.gmra.mrb[0].mxu0 %v2982
        %v3049 = vpop.f32.mrb[0].mxu0
        %v3050 = vadd.f32 0.0, %v3049
        %v3051 = vpop.f32.mrb[0].mxu0
        %v3052 = vpop.f32.mrb[0].mxu0
        %v3053 = vadd.f32 0.0, %v3052
        %v3054 = vpop.f32.mrb[0].mxu0
        %3055 = vmatprep.mubr.bf16.mxu0 0
        %3056 = vmatmul.mubr.bf16.gmra.mrb[0].mxu0 %v2985
        %v3057 = vpop.f32.mrb[0].mxu0
        %v3058 = vadd.f32 0.0, %v3057
        %v3059 = vpop.f32.mrb[0].mxu0
        %v3060 = vpop.f32.mrb[0].mxu0
        %v3061 = vadd.f32 0.0, %v3060
        %v3062 = vpop.f32.mrb[0].mxu0
        %3063 = vdwg.mxu0
        %v3064 = vsel %vm1306, %v3034, -inf
        %3065 = vmax.xlane.f32.xlu0 %v3064
        %v3066 = vpop.xlane.xlu0 %3065
        %v3067 = vsel %vm1306, %v3037, -inf
        %3068 = vmax.xlane.f32.xlu0 %v3067
        %v3069 = vpop.xlane.xlu0 %3068
        %v3070 = vsel %vm1306, %v3042, -inf
        %3071 = vmax.xlane.f32.xlu0 %v3070
        %v3072 = vpop.xlane.xlu0 %3071
        %v3073 = vsel %vm1306, %v3045, -inf
        %3074 = vmax.xlane.f32.xlu0 %v3073
        %v3075 = vpop.xlane.xlu0 %3074
        %v3076 = vsel %vm1306, %v3050, -inf
        %3077 = vmax.xlane.f32.xlu0 %v3076
        %v3078 = vpop.xlane.xlu0 %3077
        %v3079 = vsel %vm1306, %v3053, -inf
        %3080 = vmax.xlane.f32.xlu0 %v3079
        %v3081 = vpop.xlane.xlu0 %3080
        %v3082 = vsel %vm1306, %v3058, -inf
        %3083 = vmax.xlane.f32.xlu0 %v3082
        %v3084 = vpop.xlane.xlu0 %3083
        %v3085 = vsel %vm1306, %v3061, -inf
        %3086 = vmax.xlane.f32.xlu0 %v3085
        %v3087 = vpop.xlane.xlu0 %3086
        %v3088 = vsub.f32 %v3034, %v3066
        %v3089 = vsub.f32 %v3037, %v3069
        %v3090 = vsub.f32 %v3042, %v3072
        %v3091 = vsub.f32 %v3045, %v3075
        %v3092 = vsub.f32 %v3050, %v3078
        %v3093 = vsub.f32 %v3053, %v3081
        %v3094 = vsub.f32 %v3058, %v3084
        %v3095 = vsub.f32 %v3061, %v3087
        %v3096 = vmul.f32 %v3088, 1.442695
        %v3097 = vpow.pop %v3096
        %v3098 = vmul.f32 %v3089, 1.442695
        %v3099 = vpow.pop %v3098
        %v3100 = vmul.f32 %v3090, 1.442695
        %v3101 = vpow.pop %v3100
        %v3102 = vmul.f32 %v3091, 1.442695
        %v3103 = vpow.pop %v3102
        %v3104 = vmul.f32 %v3092, 1.442695
        %v3105 = vpow.pop %v3104
        %v3106 = vmul.f32 %v3093, 1.442695
        %v3107 = vpow.pop %v3106
        %v3108 = vmul.f32 %v3094, 1.442695
        %v3109 = vpow.pop %v3108
        %v3110 = vmul.f32 %v3095, 1.442695
        %v3111 = vpow.pop %v3110
        %v3112 = vsel %vm1306, %v3097, 0.0
        %3113 = vadd.xlane.f32.xlu0 %v3112
        %v3114 = vpop.xlane.xlu0 %3113
        %v3115 = vsel %vm1306, %v3099, 0.0
        %3116 = vadd.xlane.f32.xlu0 %v3115
        %v3117 = vpop.xlane.xlu0 %3116
        %v3118 = vsel %vm1306, %v3101, 0.0
        %3119 = vadd.xlane.f32.xlu0 %v3118
        %v3120 = vpop.xlane.xlu0 %3119
        %v3121 = vsel %vm1306, %v3103, 0.0
        %3122 = vadd.xlane.f32.xlu0 %v3121
        %v3123 = vpop.xlane.xlu0 %3122
        %v3124 = vsel %vm1306, %v3105, 0.0
        %3125 = vadd.xlane.f32.xlu0 %v3124
        %v3126 = vpop.xlane.xlu0 %3125
        %v3127 = vsel %vm1306, %v3107, 0.0
        %3128 = vadd.xlane.f32.xlu0 %v3127
        %v3129 = vpop.xlane.xlu0 %3128
        %v3130 = vsel %vm1306, %v3109, 0.0
        %3131 = vadd.xlane.f32.xlu0 %v3130
        %v3132 = vpop.xlane.xlu0 %3131
        %v3133 = vsel %vm1306, %v3111, 0.0
        %3134 = vadd.xlane.f32.xlu0 %v3133
        %v3135 = vpop.xlane.xlu0 %3134
        %v3136 = vrcp.pop %v3114
        %v3137 = vrcp.pop %v3117
        %v3138 = vrcp.pop %v3120
        %v3139 = vrcp.pop %v3123
        %v3140 = vrcp.pop %v3126
        %v3141 = vrcp.pop %v3129
        %v3142 = vrcp.pop %v3132
        %v3143 = vrcp.pop %v3135
        %v3144 = vmul.f32 %v3097, %v3136
        %v3145 = vmul.f32 %v3099, %v3137
        %v3146 = vmul.f32 %v3101, %v3138
        %v3147 = vmul.f32 %v3103, %v3139
        %v3148 = vmul.f32 %v3105, %v3140
        %v3149 = vmul.f32 %v3107, %v3141
        %v3150 = vmul.f32 %v3109, %v3142
        %v3151 = vmul.f32 %v3111, %v3143
        %v3152 = vpack.c.bf16 %v3145, %v3144
        %v3153 = vpack.c.bf16 %v3147, %v3146
        %v3154 = vpack.c.bf16 %v3149, %v3148
        %v3155 = vpack.c.bf16 %v3151, %v3150
        %v3157 = vsel %vm1306, %v3152, 0
        %v3160 = vsel %vm1306, %v3153, 0
        %v3163 = vsel %vm1306, %v3154, 0
        %v3166 = vsel %vm1306, %v3155, 0
        %3168 = vmatprep.subr.bf16.mxu0 0
        %3169 = vmatpush1.bf16.msra.mxu0 %v1269
        %3170 = vmatprep.subr.bf16.mxu0 0
        %3171 = vmatpush1.bf16.msra.mxu0 %v1281
        %3172 = vmatprep.subr.bf16.mxu0 0
        %3173 = vmatpush1.bf16.msra.mxu0 %v1293
        %3174 = vmatprep.subr.bf16.mxu0 0
        %3175 = vmatpush1.bf16.msra.mxu0 %v1305
        %3176 = vmatprep.subr.bf16.mxu0 0
        %3177 = vmatpush1.bf16.msra.mxu0 0
        %3178 = vmatprep.subr.bf16.mxu0 0
        %3179 = vmatpush1.bf16.msra.mxu0 0
        %3180 = vmatprep.subr.bf16.mxu0 0
        %3181 = vmatpush1.bf16.msra.mxu0 0
        %3182 = vmatprep.subr.bf16.mxu0 0
        %3183 = vmatpush1.bf16.msra.mxu0 0
        %3184 = vmatprep.subr.bf16.mxu0 0
        %3185 = vmatpush1.bf16.msra.mxu0 0
        %3186 = vmatprep.subr.bf16.mxu0 0
        %3187 = vmatpush1.bf16.msra.mxu0 0
        %3188 = vmatprep.subr.bf16.mxu0 0
        %3189 = vmatpush1.bf16.msra.mxu0 0
        %3190 = vmatprep.subr.bf16.mxu0 0
        %3191 = vmatpush1.bf16.msra.mxu0 0
        %3192 = vmatprep.subr.bf16.mxu0 0
        %3193 = vmatpush1.bf16.msra.mxu0 0
        %3194 = vmatprep.subr.bf16.mxu0 0
        %3195 = vmatpush1.bf16.msra.mxu0 0
        %3196 = vmatprep.subr.bf16.mxu0 0
        %3197 = vmatpush1.bf16.msra.mxu0 0
        %3198 = vmatprep.subr.bf16.mxu0 0
        %3199 = vmatpush1.bf16.msra.mxu0 0
        %3200 = vmatprep.mubr.bf16.mxu0 0
        %3201 = vmatmul.mubr.bf16.gmra.mrb[0].mxu0 %v3157
        %v3202 = vpop.f32.mrb[0].mxu0
        %v3203 = vadd.f32 0.0, %v3202
        %v3204 = vpop.f32.mrb[0].mxu0
        %v3205 = vpop.f32.mrb[0].mxu0
        %v3206 = vadd.f32 0.0, %v3205
        %v3207 = vpop.f32.mrb[0].mxu0
        %3208 = vmatprep.mubr.bf16.mxu0 0
        %3209 = vmatmul.mubr.bf16.gmra.mrb[0].mxu0 %v3160
        %v3210 = vpop.f32.mrb[0].mxu0
        %v3211 = vadd.f32 0.0, %v3210
        %v3212 = vpop.f32.mrb[0].mxu0
        %v3213 = vpop.f32.mrb[0].mxu0
        %v3214 = vadd.f32 0.0, %v3213
        %v3215 = vpop.f32.mrb[0].mxu0
        %3216 = vmatprep.mubr.bf16.mxu0 0
        %3217 = vmatmul.mubr.bf16.gmra.mrb[0].mxu0 %v3163
        %v3218 = vpop.f32.mrb[0].mxu0
        %v3219 = vadd.f32 0.0, %v3218
        %v3220 = vpop.f32.mrb[0].mxu0
        %v3221 = vpop.f32.mrb[0].mxu0
        %v3222 = vadd.f32 0.0, %v3221
        %v3223 = vpop.f32.mrb[0].mxu0
        %3224 = vmatprep.mubr.bf16.mxu0 0
        %3225 = vmatmul.mubr.bf16.gmra.mrb[0].mxu0 %v3166
        %v3226 = vpop.f32.mrb[0].mxu0
        %v3227 = vadd.f32 0.0, %v3226
        %v3228 = vpop.f32.mrb[0].mxu0
        %v3229 = vpop.f32.mrb[0].mxu0
        %v3230 = vadd.f32 0.0, %v3229
        %v3231 = vpop.f32.mrb[0].mxu0
        %3232 = vdwg.mxu0
        %3237 = vrot.lane.b32.xlu0 %v1261, 64
        %v3238 = vpop.permute.xlu0 %3237
        %3239 = vrot.lane.b32.xlu0 %v1273, 64
        %v3240 = vpop.permute.xlu0 %3239
        %3241 = vrot.lane.b32.xlu0 %v1285, 64
        %v3242 = vpop.permute.xlu0 %3241
        %3243 = vrot.lane.b32.xlu0 %v1297, 64
        %v3244 = vpop.permute.xlu0 %3243
        %3249 = vrot.lane.b32.xlu0 %v1265, 64
        %v3250 = vpop.permute.xlu0 %3249
        %3251 = vrot.lane.b32.xlu0 %v1277, 64
        %v3252 = vpop.permute.xlu0 %3251
        %3253 = vrot.lane.b32.xlu0 %v1289, 64
        %v3254 = vpop.permute.xlu0 %3253
        %3255 = vrot.lane.b32.xlu0 %v1301, 64
        %v3256 = vpop.permute.xlu0 %3255
        %v3258 = vsel %vm1306, %v3238, 0
        %v3261 = vsel %vm1306, %v3240, 0
        %v3264 = vsel %vm1306, %v3242, 0
        %v3267 = vsel %vm1306, %v3244, 0
        %v3270 = vsel %vm1306, %v3250, 0
        %v3273 = vsel %vm1306, %v3252, 0
        %v3276 = vsel %vm1306, %v3254, 0
        %v3279 = vsel %vm1306, %v3256, 0
        %3281 = vmatprep.subr.bf16.mxu0 0
        %3282 = vmatpush1.bf16.xpose.msra.mxu0 %v3270
        %3283 = vmatprep.subr.bf16.mxu0 0
        %3284 = vmatpush1.bf16.xpose.msra.mxu0 %v3273
        %3285 = vmatprep.subr.bf16.mxu0 0
        %3286 = vmatpush1.bf16.xpose.msra.mxu0 %v3276
        %3287 = vmatprep.subr.bf16.mxu0 0
        %3288 = vmatpush1.bf16.xpose.msra.mxu0 %v3279
        %3289 = vmatprep.subr.bf16.mxu0 0
        %3290 = vmatpush1.bf16.xpose.msra.mxu0 0
        %3291 = vmatprep.subr.bf16.mxu0 0
        %3292 = vmatpush1.bf16.xpose.msra.mxu0 0
        %3293 = vmatprep.subr.bf16.mxu0 0
        %3294 = vmatpush1.bf16.xpose.msra.mxu0 0
        %3295 = vmatprep.subr.bf16.mxu0 0
        %3296 = vmatpush1.bf16.xpose.msra.mxu0 0
        %3297 = vmatprep.subr.bf16.mxu0 0
        %3298 = vmatpush1.bf16.xpose.msra.mxu0 0
        %3299 = vmatprep.subr.bf16.mxu0 0
        %3300 = vmatpush1.bf16.xpose.msra.mxu0 0
        %3301 = vmatprep.subr.bf16.mxu0 0
        %3302 = vmatpush1.bf16.xpose.msra.mxu0 0
        %3303 = vmatprep.subr.bf16.mxu0 0
        %3304 = vmatpush1.bf16.xpose.msra.mxu0 0
        %3305 = vmatprep.subr.bf16.mxu0 0
        %3306 = vmatpush1.bf16.xpose.msra.mxu0 0
        %3307 = vmatprep.subr.bf16.mxu0 0
        %3308 = vmatpush1.bf16.xpose.msra.mxu0 0
        %3309 = vmatprep.subr.bf16.mxu0 0
        %3310 = vmatpush1.bf16.xpose.msra.mxu0 0
        %3311 = vmatprep.subr.bf16.mxu0 0
        %3312 = vmatpush1.bf16.xpose.msra.mxu0 0
        %3313 = vmatprep.mubr.bf16.mxu0 0
        %3314 = vmatmul.mubr.bf16.gmra.mrb[0].mxu0 %v3258
        %v3315 = vpop.f32.mrb[0].mxu0
        %v3316 = vadd.f32 0.0, %v3315
        %v3317 = vpop.f32.mrb[0].mxu0
        %v3318 = vpop.f32.mrb[0].mxu0
        %v3319 = vadd.f32 0.0, %v3318
        %v3320 = vpop.f32.mrb[0].mxu0
        %3321 = vmatprep.mubr.bf16.mxu0 0
        %3322 = vmatmul.mubr.bf16.gmra.mrb[0].mxu0 %v3261
        %v3323 = vpop.f32.mrb[0].mxu0
        %v3324 = vadd.f32 0.0, %v3323
        %v3325 = vpop.f32.mrb[0].mxu0
        %v3326 = vpop.f32.mrb[0].mxu0
        %v3327 = vadd.f32 0.0, %v3326
        %v3328 = vpop.f32.mrb[0].mxu0
        %3329 = vmatprep.mubr.bf16.mxu0 0
        %3330 = vmatmul.mubr.bf16.gmra.mrb[0].mxu0 %v3264
        %v3331 = vpop.f32.mrb[0].mxu0
        %v3332 = vadd.f32 0.0, %v3331
        %v3333 = vpop.f32.mrb[0].mxu0
        %v3334 = vpop.f32.mrb[0].mxu0
        %v3335 = vadd.f32 0.0, %v3334
        %v3336 = vpop.f32.mrb[0].mxu0
        %3337 = vmatprep.mubr.bf16.mxu0 0
        %3338 = vmatmul.mubr.bf16.gmra.mrb[0].mxu0 %v3267
        %v3339 = vpop.f32.mrb[0].mxu0
        %v3340 = vadd.f32 0.0, %v3339
        %v3341 = vpop.f32.mrb[0].mxu0
        %v3342 = vpop.f32.mrb[0].mxu0
        %v3343 = vadd.f32 0.0, %v3342
        %v3344 = vpop.f32.mrb[0].mxu0
        %3345 = vdwg.mxu0
        %v3346 = vsel %vm1306, %v3316, -inf
        %3347 = vmax.xlane.f32.xlu0 %v3346
        %v3348 = vpop.xlane.xlu0 %3347
        %v3349 = vsel %vm1306, %v3319, -inf
        %3350 = vmax.xlane.f32.xlu0 %v3349
        %v3351 = vpop.xlane.xlu0 %3350
        %v3352 = vsel %vm1306, %v3324, -inf
        %3353 = vmax.xlane.f32.xlu0 %v3352
        %v3354 = vpop.xlane.xlu0 %3353
        %v3355 = vsel %vm1306, %v3327, -inf
        %3356 = vmax.xlane.f32.xlu0 %v3355
        %v3357 = vpop.xlane.xlu0 %3356
        %v3358 = vsel %vm1306, %v3332, -inf
        %3359 = vmax.xlane.f32.xlu0 %v3358
        %v3360 = vpop.xlane.xlu0 %3359
        %v3361 = vsel %vm1306, %v3335, -inf
        %3362 = vmax.xlane.f32.xlu0 %v3361
        %v3363 = vpop.xlane.xlu0 %3362
        %v3364 = vsel %vm1306, %v3340, -inf
        %3365 = vmax.xlane.f32.xlu0 %v3364
        %v3366 = vpop.xlane.xlu0 %3365
        %v3367 = vsel %vm1306, %v3343, -inf
        %3368 = vmax.xlane.f32.xlu0 %v3367
        %v3369 = vpop.xlane.xlu0 %3368
        %v3370 = vsub.f32 %v3316, %v3348
        %v3371 = vsub.f32 %v3319, %v3351
        %v3372 = vsub.f32 %v3324, %v3354
        %v3373 = vsub.f32 %v3327, %v3357
        %v3374 = vsub.f32 %v3332, %v3360
        %v3375 = vsub.f32 %v3335, %v3363
        %v3376 = vsub.f32 %v3340, %v3366
        %v3377 = vsub.f32 %v3343, %v3369
        %v3378 = vmul.f32 %v3370, 1.442695
        %v3379 = vpow.pop %v3378
        %v3380 = vmul.f32 %v3371, 1.442695
        %v3381 = vpow.pop %v3380
        %v3382 = vmul.f32 %v3372, 1.442695
        %v3383 = vpow.pop %v3382
        %v3384 = vmul.f32 %v3373, 1.442695
        %v3385 = vpow.pop %v3384
        %v3386 = vmul.f32 %v3374, 1.442695
        %v3387 = vpow.pop %v3386
        %v3388 = vmul.f32 %v3375, 1.442695
        %v3389 = vpow.pop %v3388
        %v3390 = vmul.f32 %v3376, 1.442695
        %v3391 = vpow.pop %v3390
        %v3392 = vmul.f32 %v3377, 1.442695
        %v3393 = vpow.pop %v3392
        %v3394 = vsel %vm1306, %v3379, 0.0
        %3395 = vadd.xlane.f32.xlu0 %v3394
        %v3396 = vpop.xlane.xlu0 %3395
        %v3397 = vsel %vm1306, %v3381, 0.0
        %3398 = vadd.xlane.f32.xlu0 %v3397
        %v3399 = vpop.xlane.xlu0 %3398
        %v3400 = vsel %vm1306, %v3383, 0.0
        %3401 = vadd.xlane.f32.xlu0 %v3400
        %v3402 = vpop.xlane.xlu0 %3401
        %v3403 = vsel %vm1306, %v3385, 0.0
        %3404 = vadd.xlane.f32.xlu0 %v3403
        %v3405 = vpop.xlane.xlu0 %3404
        %v3406 = vsel %vm1306, %v3387, 0.0
        %3407 = vadd.xlane.f32.xlu0 %v3406
        %v3408 = vpop.xlane.xlu0 %3407
        %v3409 = vsel %vm1306, %v3389, 0.0
        %3410 = vadd.xlane.f32.xlu0 %v3409
        %v3411 = vpop.xlane.xlu0 %3410
        %v3412 = vsel %vm1306, %v3391, 0.0
        %3413 = vadd.xlane.f32.xlu0 %v3412
        %v3414 = vpop.xlane.xlu0 %3413
        %v3415 = vsel %vm1306, %v3393, 0.0
        %3416 = vadd.xlane.f32.xlu0 %v3415
        %v3417 = vpop.xlane.xlu0 %3416
        %v3418 = vrcp.pop %v3396
        %v3419 = vrcp.pop %v3399
        %v3420 = vrcp.pop %v3402
        %v3421 = vrcp.pop %v3405
        %v3422 = vrcp.pop %v3408
        %v3423 = vrcp.pop %v3411
        %v3424 = vrcp.pop %v3414
        %v3425 = vrcp.pop %v3417
        %v3426 = vmul.f32 %v3379, %v3418
        %v3427 = vmul.f32 %v3381, %v3419
        %v3428 = vmul.f32 %v3383, %v3420
        %v3429 = vmul.f32 %v3385, %v3421
        %v3430 = vmul.f32 %v3387, %v3422
        %v3431 = vmul.f32 %v3389, %v3423
        %v3432 = vmul.f32 %v3391, %v3424
        %v3433 = vmul.f32 %v3393, %v3425
        %v3434 = vpack.c.bf16 %v3427, %v3426
        %v3435 = vpack.c.bf16 %v3429, %v3428
        %v3436 = vpack.c.bf16 %v3431, %v3430
        %v3437 = vpack.c.bf16 %v3433, %v3432
        %3442 = vrot.lane.b32.xlu0 %v1269, 64
        %v3443 = vpop.permute.xlu0 %3442
        %3444 = vrot.lane.b32.xlu0 %v1281, 64
        %v3445 = vpop.permute.xlu0 %3444
        %3446 = vrot.lane.b32.xlu0 %v1293, 64
        %v3447 = vpop.permute.xlu0 %3446
        %3448 = vrot.lane.b32.xlu0 %v1305, 64
        %v3449 = vpop.permute.xlu0 %3448
        %v3455 = vsel %vm1306, %v3434, 0
        %v3458 = vsel %vm1306, %v3435, 0
        %v3461 = vsel %vm1306, %v3436, 0
        %v3464 = vsel %vm1306, %v3437, 0
        %3466 = vmatprep.subr.bf16.mxu0 0
        %3467 = vmatpush1.bf16.msra.mxu0 %v3443
        %3468 = vmatprep.subr.bf16.mxu0 0
        %3469 = vmatpush1.bf16.msra.mxu0 %v3445
        %3470 = vmatprep.subr.bf16.mxu0 0
        %3471 = vmatpush1.bf16.msra.mxu0 %v3447
        %3472 = vmatprep.subr.bf16.mxu0 0
        %3473 = vmatpush1.bf16.msra.mxu0 %v3449
        %3474 = vmatprep.subr.bf16.mxu0 0
        %3475 = vmatpush1.bf16.msra.mxu0 0
        %3476 = vmatprep.subr.bf16.mxu0 0
        %3477 = vmatpush1.bf16.msra.mxu0 0
        %3478 = vmatprep.subr.bf16.mxu0 0
        %3479 = vmatpush1.bf16.msra.mxu0 0
        %3480 = vmatprep.subr.bf16.mxu0 0
        %3481 = vmatpush1.bf16.msra.mxu0 0
        %3482 = vmatprep.subr.bf16.mxu0 0
        %3483 = vmatpush1.bf16.msra.mxu0 0
        %3484 = vmatprep.subr.bf16.mxu0 0
        %3485 = vmatpush1.bf16.msra.mxu0 0
        %3486 = vmatprep.subr.bf16.mxu0 0
        %3487 = vmatpush1.bf16.msra.mxu0 0
        %3488 = vmatprep.subr.bf16.mxu0 0
        %3489 = vmatpush1.bf16.msra.mxu0 0
        %3490 = vmatprep.subr.bf16.mxu0 0
        %3491 = vmatpush1.bf16.msra.mxu0 0
        %3492 = vmatprep.subr.bf16.mxu0 0
        %3493 = vmatpush1.bf16.msra.mxu0 0
        %3494 = vmatprep.subr.bf16.mxu0 0
        %3495 = vmatpush1.bf16.msra.mxu0 0
        %3496 = vmatprep.subr.bf16.mxu0 0
        %3497 = vmatpush1.bf16.msra.mxu0 0
        %3498 = vmatprep.mubr.bf16.mxu0 0
        %3499 = vmatmul.mubr.bf16.gmra.mrb[0].mxu0 %v3455
        %v3500 = vpop.f32.mrb[0].mxu0
        %v3501 = vadd.f32 0.0, %v3500
        %v3502 = vpop.f32.mrb[0].mxu0
        %v3503 = vpop.f32.mrb[0].mxu0
        %v3504 = vadd.f32 0.0, %v3503
        %v3505 = vpop.f32.mrb[0].mxu0
        %3506 = vmatprep.mubr.bf16.mxu0 0
        %3507 = vmatmul.mubr.bf16.gmra.mrb[0].mxu0 %v3458
        %v3508 = vpop.f32.mrb[0].mxu0
        %v3509 = vadd.f32 0.0, %v3508
        %v3510 = vpop.f32.mrb[0].mxu0
        %v3511 = vpop.f32.mrb[0].mxu0
        %v3512 = vadd.f32 0.0, %v3511
        %v3513 = vpop.f32.mrb[0].mxu0
        %3514 = vmatprep.mubr.bf16.mxu0 0
        %3515 = vmatmul.mubr.bf16.gmra.mrb[0].mxu0 %v3461
        %v3516 = vpop.f32.mrb[0].mxu0
        %v3517 = vadd.f32 0.0, %v3516
        %v3518 = vpop.f32.mrb[0].mxu0
        %v3519 = vpop.f32.mrb[0].mxu0
        %v3520 = vadd.f32 0.0, %v3519
        %v3521 = vpop.f32.mrb[0].mxu0
        %3522 = vmatprep.mubr.bf16.mxu0 0
        %3523 = vmatmul.mubr.bf16.gmra.mrb[0].mxu0 %v3464
        %v3524 = vpop.f32.mrb[0].mxu0
        %v3525 = vadd.f32 0.0, %v3524
        %v3526 = vpop.f32.mrb[0].mxu0
        %v3527 = vpop.f32.mrb[0].mxu0
        %v3528 = vadd.f32 0.0, %v3527
        %v3529 = vpop.f32.mrb[0].mxu0
        %3530 = vdwg.mxu0
        %3539 = vrot.lane.b32.xlu0 %v1833, 64
        %v3540 = vpop.permute.xlu0 %3539
        %3541 = vrot.lane.b32.xlu0 %v1836, 64
        %v3542 = vpop.permute.xlu0 %3541
        %3543 = vrot.lane.b32.xlu0 %v1841, 64
        %v3544 = vpop.permute.xlu0 %3543
        %3545 = vrot.lane.b32.xlu0 %v1844, 64
        %v3546 = vpop.permute.xlu0 %3545
        %3547 = vrot.lane.b32.xlu0 %v1849, 64
        %v3548 = vpop.permute.xlu0 %3547
        %3549 = vrot.lane.b32.xlu0 %v1852, 64
        %v3550 = vpop.permute.xlu0 %3549
        %3551 = vrot.lane.b32.xlu0 %v1857, 64
        %v3552 = vpop.permute.xlu0 %3551
        %3553 = vrot.lane.b32.xlu0 %v1860, 64
        %v3554 = vpop.permute.xlu0 %3553
        %3571 = vrot.lane.b32.xlu0 %v2389, 64
        %v3572 = vpop.permute.xlu0 %3571
        %3573 = vrot.lane.b32.xlu0 %v2392, 64
        %v3574 = vpop.permute.xlu0 %3573
        %3575 = vrot.lane.b32.xlu0 %v2397, 64
        %v3576 = vpop.permute.xlu0 %3575
        %3577 = vrot.lane.b32.xlu0 %v2400, 64
        %v3578 = vpop.permute.xlu0 %3577
        %3579 = vrot.lane.b32.xlu0 %v2405, 64
        %v3580 = vpop.permute.xlu0 %3579
        %3581 = vrot.lane.b32.xlu0 %v2408, 64
        %v3582 = vpop.permute.xlu0 %3581
        %3583 = vrot.lane.b32.xlu0 %v2413, 64
        %v3584 = vpop.permute.xlu0 %3583
        %3585 = vrot.lane.b32.xlu0 %v2416, 64
        %v3586 = vpop.permute.xlu0 %3585
        %3603 = vrot.lane.b32.xlu0 %v2945, 64
        %v3604 = vpop.permute.xlu0 %3603
        %3605 = vrot.lane.b32.xlu0 %v2948, 64
        %v3606 = vpop.permute.xlu0 %3605
        %3607 = vrot.lane.b32.xlu0 %v2953, 64
        %v3608 = vpop.permute.xlu0 %3607
        %3609 = vrot.lane.b32.xlu0 %v2956, 64
        %v3610 = vpop.permute.xlu0 %3609
        %3611 = vrot.lane.b32.xlu0 %v2961, 64
        %v3612 = vpop.permute.xlu0 %3611
        %3613 = vrot.lane.b32.xlu0 %v2964, 64
        %v3614 = vpop.permute.xlu0 %3613
        %3615 = vrot.lane.b32.xlu0 %v2969, 64
        %v3616 = vpop.permute.xlu0 %3615
        %3617 = vrot.lane.b32.xlu0 %v2972, 64
        %v3618 = vpop.permute.xlu0 %3617
        %3635 = vrot.lane.b32.xlu0 %v3501, 64
        %v3636 = vpop.permute.xlu0 %3635
        %3637 = vrot.lane.b32.xlu0 %v3504, 64
        %v3638 = vpop.permute.xlu0 %3637
        %3639 = vrot.lane.b32.xlu0 %v3509, 64
        %v3640 = vpop.permute.xlu0 %3639
        %3641 = vrot.lane.b32.xlu0 %v3512, 64
        %v3642 = vpop.permute.xlu0 %3641
        %3643 = vrot.lane.b32.xlu0 %v3517, 64
        %v3644 = vpop.permute.xlu0 %3643
        %3645 = vrot.lane.b32.xlu0 %v3520, 64
        %v3646 = vpop.permute.xlu0 %3645
        %3647 = vrot.lane.b32.xlu0 %v3525, 64
        %v3648 = vpop.permute.xlu0 %3647
        %3649 = vrot.lane.b32.xlu0 %v3528, 64
        %v3650 = vpop.permute.xlu0 %3649
        %v3659 = vsel %vm1306, %v1535, %v3540
        %v3660 = vsel %vm1306, %v1538, %v3542
        %v3661 = vsel %vm1306, %v1543, %v3544
        %v3662 = vsel %vm1306, %v1546, %v3546
        %v3663 = vsel %vm1306, %v1551, %v3548
        %v3664 = vsel %vm1306, %v1554, %v3550
        %v3665 = vsel %vm1306, %v1559, %v3552
        %v3666 = vsel %vm1306, %v1562, %v3554
        %v3667 = vsel %vm1306, %v2091, %v3572
        %v3668 = vsel %vm1306, %v2094, %v3574
        %v3669 = vsel %vm1306, %v2099, %v3576
        %v3670 = vsel %vm1306, %v2102, %v3578
        %v3671 = vsel %vm1306, %v2107, %v3580
        %v3672 = vsel %vm1306, %v2110, %v3582
        %v3673 = vsel %vm1306, %v2115, %v3584
        %v3674 = vsel %vm1306, %v2118, %v3586
        %v3675 = vsel %vm1306, %v2647, %v3604
        %v3676 = vsel %vm1306, %v2650, %v3606
        %v3677 = vsel %vm1306, %v2655, %v3608
        %v3678 = vsel %vm1306, %v2658, %v3610
        %v3679 = vsel %vm1306, %v2663, %v3612
        %v3680 = vsel %vm1306, %v2666, %v3614
        %v3681 = vsel %vm1306, %v2671, %v3616
        %v3682 = vsel %vm1306, %v2674, %v3618
        %v3683 = vsel %vm1306, %v3203, %v3636
        %v3684 = vsel %vm1306, %v3206, %v3638
        %v3685 = vsel %vm1306, %v3211, %v3640
        %v3686 = vsel %vm1306, %v3214, %v3642
        %v3687 = vsel %vm1306, %v3219, %v3644
        %v3688 = vsel %vm1306, %v3222, %v3646
        %v3689 = vsel %vm1306, %v3227, %v3648
        %v3690 = vsel %vm1306, %v3230, %v3650
        %v3691 = vpack.c.bf16 %v3660, %v3659
        %v3692 = vpack.c.bf16 %v3668, %v3667
        %v3693 = vpack.c.bf16 %v3676, %v3675
        %v3694 = vpack.c.bf16 %v3684, %v3683
        %v3695 = vpack.c.bf16 %v3662, %v3661
        %v3696 = vpack.c.bf16 %v3670, %v3669
        %v3697 = vpack.c.bf16 %v3678, %v3677
        %v3698 = vpack.c.bf16 %v3686, %v3685
        %v3699 = vpack.c.bf16 %v3664, %v3663
        %v3700 = vpack.c.bf16 %v3672, %v3671
        %v3701 = vpack.c.bf16 %v3680, %v3679
        %v3702 = vpack.c.bf16 %v3688, %v3687
        %v3703 = vpack.c.bf16 %v3666, %v3665
        %v3704 = vpack.c.bf16 %v3674, %v3673
        %v3705 = vpack.c.bf16 %v3682, %v3681
        %v3706 = vpack.c.bf16 %v3690, %v3689
        %s3707 = smul.u32 %s23, 64
        %s3708 = smul.addr %s3707, 4
        %s3709 = scalar_lea.vmem %s2, %s3708
        %v3710 = vld [vmem:[%s3709] sm:$0xf]
        %v3711 = vld [vmem:[%s3709 + $0x4] sm:$0xf]
        %v3712 = vld [vmem:[%s3709 + $0x8] sm:$0xf]
        %v3713 = vld [vmem:[%s3709 + $0xc] sm:$0xf]
        %v3714 = vld [vmem:[%s3709 + $0x10] sm:$0xf]
        %v3715 = vld [vmem:[%s3709 + $0x14] sm:$0xf]
        %v3716 = vld [vmem:[%s3709 + $0x18] sm:$0xf]
        %v3717 = vld [vmem:[%s3709 + $0x1c] sm:$0xf]
        %v3718 = vld [vmem:[%s3709 + $0x20] sm:$0xf]
        %v3719 = vld [vmem:[%s3709 + $0x24] sm:$0xf]
        %v3720 = vld [vmem:[%s3709 + $0x28] sm:$0xf]
        %v3721 = vld [vmem:[%s3709 + $0x2c] sm:$0xf]
        %v3722 = vld [vmem:[%s3709 + $0x30] sm:$0xf]
        %v3723 = vld [vmem:[%s3709 + $0x34] sm:$0xf]
        %v3724 = vld [vmem:[%s3709 + $0x38] sm:$0xf]
        %v3725 = vld [vmem:[%s3709 + $0x3c] sm:$0xf]
        %v3726 = vld [vmem:[%s3709 + $0x40] sm:$0xf]
        %v3727 = vld [vmem:[%s3709 + $0x44] sm:$0xf]
        %v3728 = vld [vmem:[%s3709 + $0x48] sm:$0xf]
        %v3729 = vld [vmem:[%s3709 + $0x4c] sm:$0xf]
        %v3730 = vld [vmem:[%s3709 + $0x50] sm:$0xf]
        %v3731 = vld [vmem:[%s3709 + $0x54] sm:$0xf]
        %v3732 = vld [vmem:[%s3709 + $0x58] sm:$0xf]
        %v3733 = vld [vmem:[%s3709 + $0x5c] sm:$0xf]
        %v3734 = vld [vmem:[%s3709 + $0x60] sm:$0xf]
        %v3735 = vld [vmem:[%s3709 + $0x64] sm:$0xf]
        %v3736 = vld [vmem:[%s3709 + $0x68] sm:$0xf]
        %v3737 = vld [vmem:[%s3709 + $0x6c] sm:$0xf]
        %v3738 = vld [vmem:[%s3709 + $0x70] sm:$0xf]
        %v3739 = vld [vmem:[%s3709 + $0x74] sm:$0xf]
        %v3740 = vld [vmem:[%s3709 + $0x78] sm:$0xf]
        %v3741 = vld [vmem:[%s3709 + $0x7c] sm:$0xf]
        %v3742 = vld [vmem:[%s3709 + $0x80] sm:$0xf]
        %v3743 = vld [vmem:[%s3709 + $0x84] sm:$0xf]
        %v3744 = vld [vmem:[%s3709 + $0x88] sm:$0xf]
        %v3745 = vld [vmem:[%s3709 + $0x8c] sm:$0xf]
        %v3746 = vld [vmem:[%s3709 + $0x90] sm:$0xf]
        %v3747 = vld [vmem:[%s3709 + $0x94] sm:$0xf]
        %v3748 = vld [vmem:[%s3709 + $0x98] sm:$0xf]
        %v3749 = vld [vmem:[%s3709 + $0x9c] sm:$0xf]
        %v3750 = vld [vmem:[%s3709 + $0xa0] sm:$0xf]
        %v3751 = vld [vmem:[%s3709 + $0xa4] sm:$0xf]
        %v3752 = vld [vmem:[%s3709 + $0xa8] sm:$0xf]
        %v3753 = vld [vmem:[%s3709 + $0xac] sm:$0xf]
        %v3754 = vld [vmem:[%s3709 + $0xb0] sm:$0xf]
        %v3755 = vld [vmem:[%s3709 + $0xb4] sm:$0xf]
        %v3756 = vld [vmem:[%s3709 + $0xb8] sm:$0xf]
        %v3757 = vld [vmem:[%s3709 + $0xbc] sm:$0xf]
        %v3758 = vld [vmem:[%s3709 + $0xc0] sm:$0xf]
        %v3759 = vld [vmem:[%s3709 + $0xc4] sm:$0xf]
        %v3760 = vld [vmem:[%s3709 + $0xc8] sm:$0xf]
        %v3761 = vld [vmem:[%s3709 + $0xcc] sm:$0xf]
        %v3762 = vld [vmem:[%s3709 + $0xd0] sm:$0xf]
        %v3763 = vld [vmem:[%s3709 + $0xd4] sm:$0xf]
        %v3764 = vld [vmem:[%s3709 + $0xd8] sm:$0xf]
        %v3765 = vld [vmem:[%s3709 + $0xdc] sm:$0xf]
        %v3766 = vld [vmem:[%s3709 + $0xe0] sm:$0xf]
        %v3767 = vld [vmem:[%s3709 + $0xe4] sm:$0xf]
        %v3768 = vld [vmem:[%s3709 + $0xe8] sm:$0xf]
        %v3769 = vld [vmem:[%s3709 + $0xec] sm:$0xf]
        %v3770 = vld [vmem:[%s3709 + $0xf0] sm:$0xf]
        %v3771 = vld [vmem:[%s3709 + $0xf4] sm:$0xf]
        %v3772 = vld [vmem:[%s3709 + $0xf8] sm:$0xf]
        %v3773 = vld [vmem:[%s3709 + $0xfc] sm:$0xf]
        %v3838 = vunpack.c.l.b16 %v3710
        %v3839 = vunpack.c.l.b16 %v3711
        %v3840 = vunpack.c.l.b16 %v3712
        %v3841 = vunpack.c.l.b16 %v3713
        %v3842 = vunpack.c.l.b16 %v3714
        %v3843 = vunpack.c.l.b16 %v3715
        %v3844 = vunpack.c.l.b16 %v3716
        %v3845 = vunpack.c.l.b16 %v3717
        %v3846 = vunpack.c.l.b16 %v3718
        %v3847 = vunpack.c.l.b16 %v3719
        %v3848 = vunpack.c.l.b16 %v3720
        %v3849 = vunpack.c.l.b16 %v3721
        %v3850 = vunpack.c.l.b16 %v3722
        %v3851 = vunpack.c.l.b16 %v3723
        %v3852 = vunpack.c.l.b16 %v3724
        %v3853 = vunpack.c.l.b16 %v3725
        %v3854 = vunpack.c.l.b16 %v3726
        %v3855 = vunpack.c.l.b16 %v3727
        %v3856 = vunpack.c.l.b16 %v3728
        %v3857 = vunpack.c.l.b16 %v3729
        %v3858 = vunpack.c.l.b16 %v3730
        %v3859 = vunpack.c.l.b16 %v3731
        %v3860 = vunpack.c.l.b16 %v3732
        %v3861 = vunpack.c.l.b16 %v3733
        %v3862 = vunpack.c.l.b16 %v3734
        %v3863 = vunpack.c.l.b16 %v3735
        %v3864 = vunpack.c.l.b16 %v3736
        %v3865 = vunpack.c.l.b16 %v3737
        %v3866 = vunpack.c.l.b16 %v3738
        %v3867 = vunpack.c.l.b16 %v3739
        %v3868 = vunpack.c.l.b16 %v3740
        %v3869 = vunpack.c.l.b16 %v3741
        %v3870 = vunpack.c.l.b16 %v3742
        %v3871 = vunpack.c.l.b16 %v3743
        %v3872 = vunpack.c.l.b16 %v3744
        %v3873 = vunpack.c.l.b16 %v3745
        %v3874 = vunpack.c.l.b16 %v3746
        %v3875 = vunpack.c.l.b16 %v3747
        %v3876 = vunpack.c.l.b16 %v3748
        %v3877 = vunpack.c.l.b16 %v3749
        %v3878 = vunpack.c.l.b16 %v3750
        %v3879 = vunpack.c.l.b16 %v3751
        %v3880 = vunpack.c.l.b16 %v3752
        %v3881 = vunpack.c.l.b16 %v3753
        %v3882 = vunpack.c.l.b16 %v3754
        %v3883 = vunpack.c.l.b16 %v3755
        %v3884 = vunpack.c.l.b16 %v3756
        %v3885 = vunpack.c.l.b16 %v3757
        %v3886 = vunpack.c.l.b16 %v3758
        %v3887 = vunpack.c.l.b16 %v3759
        %v3888 = vunpack.c.l.b16 %v3760
        %v3889 = vunpack.c.l.b16 %v3761
        %v3890 = vunpack.c.l.b16 %v3762
        %v3891 = vunpack.c.l.b16 %v3763
        %v3892 = vunpack.c.l.b16 %v3764
        %v3893 = vunpack.c.l.b16 %v3765
        %v3894 = vunpack.c.l.b16 %v3766
        %v3895 = vunpack.c.l.b16 %v3767
        %v3896 = vunpack.c.l.b16 %v3768
        %v3897 = vunpack.c.l.b16 %v3769
        %v3898 = vunpack.c.l.b16 %v3770
        %v3899 = vunpack.c.l.b16 %v3771
        %v3900 = vunpack.c.l.b16 %v3772
        %v3901 = vunpack.c.l.b16 %v3773
        %v3902 = vpack.c.b16 %v3839, %v3838
        %v3903 = vpack.c.b16 %v3841, %v3840
        %v3904 = vpack.c.b16 %v3843, %v3842
        %v3905 = vpack.c.b16 %v3845, %v3844
        %v3906 = vpack.c.b16 %v3847, %v3846
        %v3907 = vpack.c.b16 %v3849, %v3848
        %v3908 = vpack.c.b16 %v3851, %v3850
        %v3909 = vpack.c.b16 %v3853, %v3852
        %v3910 = vpack.c.b16 %v3855, %v3854
        %v3911 = vpack.c.b16 %v3857, %v3856
        %v3912 = vpack.c.b16 %v3859, %v3858
        %v3913 = vpack.c.b16 %v3861, %v3860
        %v3914 = vpack.c.b16 %v3863, %v3862
        %v3915 = vpack.c.b16 %v3865, %v3864
        %v3916 = vpack.c.b16 %v3867, %v3866
        %v3917 = vpack.c.b16 %v3869, %v3868
        %v3918 = vpack.c.b16 %v3871, %v3870
        %v3919 = vpack.c.b16 %v3873, %v3872
        %v3920 = vpack.c.b16 %v3875, %v3874
        %v3921 = vpack.c.b16 %v3877, %v3876
        %v3922 = vpack.c.b16 %v3879, %v3878
        %v3923 = vpack.c.b16 %v3881, %v3880
        %v3924 = vpack.c.b16 %v3883, %v3882
        %v3925 = vpack.c.b16 %v3885, %v3884
        %v3926 = vpack.c.b16 %v3887, %v3886
        %v3927 = vpack.c.b16 %v3889, %v3888
        %v3928 = vpack.c.b16 %v3891, %v3890
        %v3929 = vpack.c.b16 %v3893, %v3892
        %v3930 = vpack.c.b16 %v3895, %v3894
        %v3931 = vpack.c.b16 %v3897, %v3896
        %v3932 = vpack.c.b16 %v3899, %v3898
        %v3933 = vpack.c.b16 %v3901, %v3900
        %3966 = vmatprep.subr.bf16.mxu0 0
        %3967 = vmatpush1.bf16.msra.mxu0 %v3902
        %3968 = vmatprep.subr.bf16.mxu0 0
        %3969 = vmatpush1.bf16.msra.mxu0 %v3903
        %3970 = vmatprep.subr.bf16.mxu0 0
        %3971 = vmatpush1.bf16.msra.mxu0 %v3904
        %3972 = vmatprep.subr.bf16.mxu0 0
        %3973 = vmatpush1.bf16.msra.mxu0 %v3905
        %3974 = vmatprep.subr.bf16.mxu0 0
        %3975 = vmatpush1.bf16.msra.mxu0 %v3906
        %3976 = vmatprep.subr.bf16.mxu0 0
        %3977 = vmatpush1.bf16.msra.mxu0 %v3907
        %3978 = vmatprep.subr.bf16.mxu0 0
        %3979 = vmatpush1.bf16.msra.mxu0 %v3908
        %3980 = vmatprep.subr.bf16.mxu0 0
        %3981 = vmatpush1.bf16.msra.mxu0 %v3909
        %3982 = vmatprep.subr.bf16.mxu0 0
        %3983 = vmatpush1.bf16.msra.mxu0 %v3910
        %3984 = vmatprep.subr.bf16.mxu0 0
        %3985 = vmatpush1.bf16.msra.mxu0 %v3911
        %3986 = vmatprep.subr.bf16.mxu0 0
        %3987 = vmatpush1.bf16.msra.mxu0 %v3912
        %3988 = vmatprep.subr.bf16.mxu0 0
        %3989 = vmatpush1.bf16.msra.mxu0 %v3913
        %3990 = vmatprep.subr.bf16.mxu0 0
        %3991 = vmatpush1.bf16.msra.mxu0 %v3914
        %3992 = vmatprep.subr.bf16.mxu0 0
        %3993 = vmatpush1.bf16.msra.mxu0 %v3915
        %3994 = vmatprep.subr.bf16.mxu0 0
        %3995 = vmatpush1.bf16.msra.mxu0 %v3916
        %3996 = vmatprep.subr.bf16.mxu0 0
        %3997 = vmatpush1.bf16.msra.mxu0 %v3917
        %3998 = vmatprep.mubr.bf16.mxu0 %v3692
        %3999 = vmatmul.mubr.bf16.gmra.mrb[0].mxu0 %v3691
        %v4000 = vpop.f32.mrb[0].mxu0
        %v4001 = vadd.f32 0.0, %v4000
        %v4002 = vpop.f32.mrb[0].mxu0
        %v4003 = vpop.f32.mrb[0].mxu0
        %v4004 = vadd.f32 0.0, %v4003
        %v4005 = vpop.f32.mrb[0].mxu0
        %4006 = vmatprep.mubr.bf16.mxu0 %v3696
        %4007 = vmatmul.mubr.bf16.gmra.mrb[0].mxu0 %v3695
        %v4008 = vpop.f32.mrb[0].mxu0
        %v4009 = vadd.f32 0.0, %v4008
        %v4010 = vpop.f32.mrb[0].mxu0
        %v4011 = vpop.f32.mrb[0].mxu0
        %v4012 = vadd.f32 0.0, %v4011
        %v4013 = vpop.f32.mrb[0].mxu0
        %4014 = vmatprep.mubr.bf16.mxu0 %v3700
        %4015 = vmatmul.mubr.bf16.gmra.mrb[0].mxu0 %v3699
        %v4016 = vpop.f32.mrb[0].mxu0
        %v4017 = vadd.f32 0.0, %v4016
        %v4018 = vpop.f32.mrb[0].mxu0
        %v4019 = vpop.f32.mrb[0].mxu0
        %v4020 = vadd.f32 0.0, %v4019
        %v4021 = vpop.f32.mrb[0].mxu0
        %4022 = vmatprep.mubr.bf16.mxu0 %v3704
        %4023 = vmatmul.mubr.bf16.gmra.mrb[0].mxu0 %v3703
        %v4024 = vpop.f32.mrb[0].mxu0
        %v4025 = vadd.f32 0.0, %v4024
        %v4026 = vpop.f32.mrb[0].mxu0
        %v4027 = vpop.f32.mrb[0].mxu0
        %v4028 = vadd.f32 0.0, %v4027
        %v4029 = vpop.f32.mrb[0].mxu0
        %4030 = vdwg.mxu0
        %4031 = vmatprep.subr.bf16.mxu0 0
        %4032 = vmatpush1.bf16.msra.mxu0 %v3918
        %4033 = vmatprep.subr.bf16.mxu0 0
        %4034 = vmatpush1.bf16.msra.mxu0 %v3919
        %4035 = vmatprep.subr.bf16.mxu0 0
        %4036 = vmatpush1.bf16.msra.mxu0 %v3920
        %4037 = vmatprep.subr.bf16.mxu0 0
        %4038 = vmatpush1.bf16.msra.mxu0 %v3921
        %4039 = vmatprep.subr.bf16.mxu0 0
        %4040 = vmatpush1.bf16.msra.mxu0 %v3922
        %4041 = vmatprep.subr.bf16.mxu0 0
        %4042 = vmatpush1.bf16.msra.mxu0 %v3923
        %4043 = vmatprep.subr.bf16.mxu0 0
        %4044 = vmatpush1.bf16.msra.mxu0 %v3924
        %4045 = vmatprep.subr.bf16.mxu0 0
        %4046 = vmatpush1.bf16.msra.mxu0 %v3925
        %4047 = vmatprep.subr.bf16.mxu0 0
        %4048 = vmatpush1.bf16.msra.mxu0 %v3926
        %4049 = vmatprep.subr.bf16.mxu0 0
        %4050 = vmatpush1.bf16.msra.mxu0 %v3927
        %4051 = vmatprep.subr.bf16.mxu0 0
        %4052 = vmatpush1.bf16.msra.mxu0 %v3928
        %4053 = vmatprep.subr.bf16.mxu0 0
        %4054 = vmatpush1.bf16.msra.mxu0 %v3929
        %4055 = vmatprep.subr.bf16.mxu0 0
        %4056 = vmatpush1.bf16.msra.mxu0 %v3930
        %4057 = vmatprep.subr.bf16.mxu0 0
        %4058 = vmatpush1.bf16.msra.mxu0 %v3931
        %4059 = vmatprep.subr.bf16.mxu0 0
        %4060 = vmatpush1.bf16.msra.mxu0 %v3932
        %4061 = vmatprep.subr.bf16.mxu0 0
        %4062 = vmatpush1.bf16.msra.mxu0 %v3933
        %4063 = vmatprep.mubr.bf16.mxu0 %v3694
        %4064 = vmatmul.mubr.bf16.gmra.mrb[0].mxu0 %v3693
        %v4065 = vpop.f32.mrb[0].mxu0
        %v4066 = vadd.f32 %v4001, %v4065
        %v4067 = vpop.f32.mrb[0].mxu0
        %v4068 = vpop.f32.mrb[0].mxu0
        %v4069 = vadd.f32 %v4004, %v4068
        %v4070 = vpop.f32.mrb[0].mxu0
        %4071 = vmatprep.mubr.bf16.mxu0 %v3698
        %4072 = vmatmul.mubr.bf16.gmra.mrb[0].mxu0 %v3697
        %v4073 = vpop.f32.mrb[0].mxu0
        %v4074 = vadd.f32 %v4009, %v4073
        %v4075 = vpop.f32.mrb[0].mxu0
        %v4076 = vpop.f32.mrb[0].mxu0
        %v4077 = vadd.f32 %v4012, %v4076
        %v4078 = vpop.f32.mrb[0].mxu0
        %4079 = vmatprep.mubr.bf16.mxu0 %v3702
        %4080 = vmatmul.mubr.bf16.gmra.mrb[0].mxu0 %v3701
        %v4081 = vpop.f32.mrb[0].mxu0
        %v4082 = vadd.f32 %v4017, %v4081
        %v4083 = vpop.f32.mrb[0].mxu0
        %v4084 = vpop.f32.mrb[0].mxu0
        %v4085 = vadd.f32 %v4020, %v4084
        %v4086 = vpop.f32.mrb[0].mxu0
        %4087 = vmatprep.mubr.bf16.mxu0 %v3706
        %4088 = vmatmul.mubr.bf16.gmra.mrb[0].mxu0 %v3705
        %v4089 = vpop.f32.mrb[0].mxu0
        %v4090 = vadd.f32 %v4025, %v4089
        %v4091 = vpop.f32.mrb[0].mxu0
        %v4092 = vpop.f32.mrb[0].mxu0
        %v4093 = vadd.f32 %v4028, %v4092
        %v4094 = vpop.f32.mrb[0].mxu0
        %4095 = vdwg.mxu0
        %p4096 = scmp.eq.s32.totalorder %s23, 0
        // Predicated region
        $region37: #{attention.1} parent=35 // pred_check
          %p4097 = pneg %p4096
        $region38: #{attention.1} parent=35 // pred_check_branch
          %4099 = sbr.rel (%p4097) target = $region40
        $region39: #{attention.1} parent=35 // pred_region
          %v4100 = vld [vmem:[%s3] sm:$0x1]
          %v4102 = vlaneseq
          %v4103 = vshrl.u32 %v4102, 7
          %v4104 = vsub.s32 0, %v4103
          %v4105 = vrot.slane %v4100, %v4104
          %4107 = vst [vmem:[%s202] sm:$0xff] %v4105
          %4108 = vst [vmem:[%s202 + $0x8] sm:$0xff] %v4105
          %4109 = vst [vmem:[%s202 + $0x10] sm:$0xff] %v4105
          %4110 = vst [vmem:[%s202 + $0x18] sm:$0xff] %v4105
          %4111 = vst [vmem:[%s202 + $0x20] sm:$0xff] %v4105
          %4112 = vst [vmem:[%s202 + $0x28] sm:$0xff] %v4105
          %4113 = vst [vmem:[%s202 + $0x30] sm:$0xff] %v4105
          %4114 = vst [vmem:[%s202 + $0x38] sm:$0xff] %v4105
        $region40: #{attention.1} parent=35 // pred_fallthru
          _
        %v4115 = vld [vmem:[%s202] sm:$0xff]
        %v4116 = vld [vmem:[%s202 + $0x8] sm:$0xff]
        %v4117 = vld [vmem:[%s202 + $0x10] sm:$0xff]
        %v4118 = vld [vmem:[%s202 + $0x18] sm:$0xff]
        %v4119 = vld [vmem:[%s202 + $0x20] sm:$0xff]
        %v4120 = vld [vmem:[%s202 + $0x28] sm:$0xff]
        %v4121 = vld [vmem:[%s202 + $0x30] sm:$0xff]
        %v4122 = vld [vmem:[%s202 + $0x38] sm:$0xff]
        %v4123 = vadd.f32 %v4115, %v4066
        %v4124 = vadd.f32 %v4116, %v4069
        %v4125 = vadd.f32 %v4117, %v4074
        %v4126 = vadd.f32 %v4118, %v4077
        %v4127 = vadd.f32 %v4119, %v4082
        %v4128 = vadd.f32 %v4120, %v4085
        %v4129 = vadd.f32 %v4121, %v4090
        %v4130 = vadd.f32 %v4122, %v4093
        %4131 = vst [vmem:[%s202] sm:$0xff] %v4123
        %4132 = vst [vmem:[%s202 + $0x8] sm:$0xff] %v4124
        %4133 = vst [vmem:[%s202 + $0x10] sm:$0xff] %v4125
        %4134 = vst [vmem:[%s202 + $0x18] sm:$0xff] %v4126
        %4135 = vst [vmem:[%s202 + $0x20] sm:$0xff] %v4127
        %4136 = vst [vmem:[%s202 + $0x28] sm:$0xff] %v4128
        %4137 = vst [vmem:[%s202 + $0x30] sm:$0xff] %v4129
        %4138 = vst [vmem:[%s202 + $0x38] sm:$0xff] %v4130
        %s4139 = sand.u32 %s127, 1
        %s4140 = scalar_lea.sflag [#allocation3], %s4139
        %s4141 = sand.u32 %s127, 1
        %s4142 = smul.addr %s4141, 64
        %s4143 = scalar_lea.vmem [#allocation2], %s4142
        // Predicated region
        $region41: #{attention.1} parent=35 // pred_check
          %p4144 = pneg %p137
        $region42: #{attention.1} parent=35 // pred_check_branch
          %4146 = sbr.rel (%p4144) target = $region44
        $region43: #{attention.1} parent=35 // pred_region
          %s4148 = ssub.s32 1024, 1024
          %4149 = vsyncadd %s4140, %s4148
          %s4150 = smul.addr %s22, 8
          %s4151 = smul.addr %s4150, 128
          %s4152 = scalar_lea.hbm %s4, %s4151
          %s4153 = sshll.u32 %s4143, 4
          %s4154 = int_to_ptr.vmem [resolvable:$true] %s4153
          %4159 = dma.vmem_to_hbm [thread:$0]  %s4154, 1024, %s4152, %s4140, 128, 128, 8
        $region44: #{attention.1} parent=35 // pred_fallthru
          _
      $region36: #{attention.1} parent=5 // pred_fallthru
        _
      %p4160 = scmp.le.s32.totalorder 2, %s13
      // Predicated region
      $region45: #{attention.1} parent=5 // pred_check
        %p4161 = pneg %p4160
      $region46: #{attention.1} parent=5 // pred_check_branch
        %4163 = sbr.rel (%p4161) target = $region48
      $region47: #{attention.1} parent=5 // pred_region
        %s4164 = ssub.s32 %s13, 2
        // Predicated region
        $region49: #{attention.1} parent=47 // pred_check
          %p4165 = pneg %p143
        $region50: #{attention.1} parent=47 // pred_check_branch
          %4167 = sbr.rel (%p4165) target = $region52
        $region51: #{attention.1} parent=47 // pred_region
          %s4168 = sand.u32 %s128, 1
          %s4169 = scalar_lea.sflag [#allocation3], %s4168
          %s4170 = sand.u32 %s128, 1
          %s4171 = smul.addr %s4170, 64
          %s4172 = scalar_lea.vmem [#allocation2], %s4171
          %4173 = dma.done %s4169, 1024
        $region52: #{attention.1} parent=47 // pred_fallthru
          _
      $region48: #{attention.1} parent=5 // pred_fallthru
        _
    $region6: #{attention.1} parent=1 // loop_footer
      %s17 = sadd.s32 1, %s13
    $region7: #{attention.1} parent=1 // loop_footer_branch
      %12 = sbr.rel target = $region3
    $region8: #{attention.1} parent=1 // loop_exit
      _
    %4174 = vsyncpa [#allocation3], 1
    %s4175 = scalar_lea.sflag [#allocation3], 1
    %4176 = vsyncpa %s4175, 1

</llo_original>
